<compile_context>
chip_gen: v5e
topology: v5e:2x2
jax: 0.10.0
libtpu: 0.0.40
codegen_flags: <defaults>
</compile_context>

<pallas_src>
import jax
import jax.numpy as jnp
from jax.experimental import pallas as pl
from jax.experimental.pallas import tpu as pltpu

BN_EPS = 1e-5
# HIGHEST keeps the 64x64 matmul ~f32-exact (3x bf16 passes).  Configurable:
# on v5e, DEFAULT / bf16 inputs trade accuracy for ~3x MXU throughput.
_MM_PREC = jax.lax.Precision.HIGHEST
_MIN_GRID_STEPS = 4   # keep both v7x TensorCores + double-buffering busy


# --------------------------------------------------------------------------
# Kernels (all operate on a (C, L_tile) channels-major tile)
# --------------------------------------------------------------------------
def _layer1(x, w1):
    """1x1 Conv1d(3,64) in channels-major layout as 3 VPU broadcast FMAs.

    x : (3, Lt), w1 : (64, 3)  ->  (64, Lt).  Conv bias omitted (cancels in BN);
    BN1's scale is already folded into w1 by the wrapper.
    """
    return (w1[:, 0:1] * x[0:1, :]
            + w1[:, 1:2] * x[1:2, :]
            + w1[:, 2:3] * x[2:3, :])


def _stats2_kernel(x_ref, w1_ref, sh1_ref, w2_ref, stats_ref):
    """Per-tile (sum, sumsq) of h2 = W2 @ relu(W1'@x + shift1).

    Single merged output tile (1, 1, 128, 1): rows [0:64] = per-channel sum,
    rows [64:128] = per-channel sum of squares.
    """
    h1 = jnp.maximum(_layer1(x_ref[0], w1_ref[...]) + sh1_ref[...], 0.0)
    h2 = jnp.dot(w2_ref[...], h1, precision=_MM_PREC,
                 preferred_element_type=jnp.float32)            # (64, Lt)
    stats_ref[:, :, 0:64, :] = jnp.sum(h2, axis=1, keepdims=True)[None, None]
    stats_ref[:, :, 64:128, :] = jnp.sum(h2 * h2, axis=1,
                                         keepdims=True)[None, None]


def _apply_kernel(x_ref, w1_ref, sh1_ref, w2_ref, sh2_ref, o_ref):
    """Fused forward for one (1, Lt) tile; both BN scales folded into weights."""
    h1 = jnp.maximum(_layer1(x_ref[0], w1_ref[...]) + sh1_ref[...], 0.0)
    h2 = jnp.dot(w2_ref[...], h1, precision=_MM_PREC,
                 preferred_element_type=jnp.float32)
    o_ref[0] = jnp.maximum(h2 + sh2_ref[...], 0.0)


# --------------------------------------------------------------------------
# Wrapper
# --------------------------------------------------------------------------
def _pick_tile(batch, length):
    """Largest 128-multiple divisor of `length` that keeps >= _MIN_GRID_STEPS
    grid steps (so v7x's two TCs and double-buffering stay busy) and a modest
    (<~2 MB) output tile."""
    candidates = (8192, 4096, 2048, 1024, 512, 256, 128)
    for t in candidates:
        if length % t == 0 and batch * (length // t) >= _MIN_GRID_STEPS:
            return t
    for t in candidates:                       # short L: accept fewer steps
        if length % t == 0:
            return t
    # TODO(synk): for L not a multiple of 128, pad L and mask the tail tile's
    # contribution to the BN stats instead of one full-length (lane-masked)
    # block.
    return length


def _bn_scale_shift(s, ss, count, gamma, beta):
    """Fold training-mode BN into per-channel scale/shift: y = h*scale + shift.

    One-pass variance (E[h^2] - E[h]^2) in f32; fine for roughly zero-mean
    activations, clamp guards the tiny-negative case.
    """
    mean = s / count
    var = jnp.maximum(ss / count - mean * mean, 0.0)
    scale = gamma * jax.lax.rsqrt(var + BN_EPS)
    shift = beta - mean * scale
    return scale, shift


def norm_mlp_forward(x, params, batch_size):
    """Mirrors NormMlp.forward; returns (B, 64, L) float32 (PyTorch NCL)."""
    data = x.reshape(batch_size, -1, 15)                         # (B, L, 15)
    B, L, _ = data.shape
    # PyTorch: data.transpose(1,2)[:, 12:] -> (B, 3, L). Channels-major with
    # the length axis on lanes is exactly what the kernels want.
    norm = jnp.transpose(data[:, :, 12:], (0, 2, 1)).astype(jnp.float32)

    w1 = params["w1"].astype(jnp.float32)                        # (64, 3)
    w2 = params["w2"].astype(jnp.float32)                        # (64, 64)
    M = B * L                                                    # BN over B*L

    # ---- layer-1 BN stats analytically from input moments (no kernel pass) --
    #   h1 = W1 @ x  (conv bias dropped: cancels in training-mode BN)
    #   sum_h1   = W1 @ sum_x
    #   sumsq_h1 = diag(W1 @ (sum_t x x^T) @ W1^T)
    sum_x = jnp.sum(norm, axis=(0, 2))                                   # (3,)
    m2 = jnp.einsum("bil,bjl->ij", norm, norm, precision=_MM_PREC)       # (3,3)
    sum_h1 = jnp.dot(w1, sum_x, precision=_MM_PREC)                      # (64,)
    sumsq_h1 = jnp.einsum("ci,ij,cj->c", w1, m2, w1, precision=_MM_PREC)
    sc1, sh1 = _bn_scale_shift(sum_h1, sumsq_h1, M,
                               params["g1"], params["be1"])
    w1s = sc1[:, None] * w1                    # BN1 scale folded into weights
    sh1c = sh1.reshape(64, 1)

    Lt = _pick_tile(B, L)
    nT = L // Lt
    grid = (B, nT)

    x_spec = pl.BlockSpec((1, 3, Lt), lambda b, t: (b, 0, t))
    w1_spec = pl.BlockSpec((64, 3), lambda b, t: (0, 0))
    w2_spec = pl.BlockSpec((64, 64), lambda b, t: (0, 0))
    vec_spec = pl.BlockSpec((64, 1), lambda b, t: (0, 0))
    stats_spec = pl.BlockSpec((1, 1, 128, 1), lambda b, t: (b, t, 0, 0))
    cparams = pltpu.CompilerParams(
        dimension_semantics=("parallel", "parallel"),
        vmem_limit_bytes=32 * 1024 * 1024)     # v7x-safe; v6e/v5e could go 64M

    # ---- pass 1 of 2: per-tile stats of h2 = W2 @ relu(BN1(h1)) ------------
    stats2 = pl.pallas_call(
        _stats2_kernel,
        out_shape=jax.ShapeDtypeStruct((B, nT, 128, 1), jnp.float32),
        grid=grid,
        in_specs=[x_spec, w1_spec, vec_spec, w2_spec],
        out_specs=stats_spec,
        compiler_params=cparams,
    )(norm, w1s, sh1c, w2)
    sum_h2 = jnp.sum(stats2[:, :, 0:64, 0], axis=(0, 1))
    sumsq_h2 = jnp.sum(stats2[:, :, 64:128, 0], axis=(0, 1))
    sc2, sh2 = _bn_scale_shift(sum_h2, sumsq_h2, M,
                               params["g2"], params["be2"])
    w2s = sc2[:, None] * w2                    # BN2 scale folded into weights
    sh2c = sh2.reshape(64, 1)

    # ---- pass 2 of 2: apply and write the NCL (B, 64, L) output directly ---
    out = pl.pallas_call(
        _apply_kernel,
        out_shape=jax.ShapeDtypeStruct((B, 64, L), jnp.float32),
        grid=grid,
        in_specs=[x_spec, w1_spec, vec_spec, w2_spec, vec_spec],
        out_specs=pl.BlockSpec((1, 64, Lt), lambda b, t: (b, 0, t)),
        compiler_params=cparams,
    )(norm, w1s, sh1c, w2s, sh2c)
    return out


# --------------------------------------------------------------------------
# Params & pure-JAX reference (keeps the conv biases to verify they cancel)
# --------------------------------------------------------------------------
def init_params(key):
    k1, k2, k3, k4 = jax.random.split(key, 4)
    # Conv1d weights stored kernel-squeezed in PyTorch (out, in) layout.
    w1 = jax.random.normal(k1, (64, 3), jnp.float32) * 0.2      # Conv1d(3,64,1)
    b1 = jax.random.normal(k2, (64,), jnp.float32) * 0.05
    w2 = jax.random.normal(k3, (64, 64), jnp.float32) * 0.1     # Conv1d(64,64,1)
    b2 = jax.random.normal(k4, (64,), jnp.float32) * 0.05
    g1 = jnp.ones((64,), jnp.float32)
    be1 = jnp.zeros((64,), jnp.float32)
    g2 = jnp.ones((64,), jnp.float32)
    be2 = jnp.zeros((64,), jnp.float32)
    return dict(w1=w1, b1=b1, g1=g1, be1=be1, w2=w2, b2=b2, g2=g2, be2=be2)


def _reference(x, params, batch_size):
    data = x.reshape(batch_size, -1, 15)
    norm = data[:, :, 12:]                                       # (B, L, 3)
    B, L, _ = norm.shape
    flat = norm.reshape(B * L, 3)
    h = jnp.dot(flat, params["w1"].T, precision=_MM_PREC) + params["b1"]
    m, v = jnp.mean(h, 0), jnp.var(h, 0)
    h = jnp.maximum((h - m) * jax.lax.rsqrt(v + BN_EPS) * params["g1"]
                    + params["be1"], 0.0)
    h2 = jnp.dot(h, params["w2"].T, precision=_MM_PREC) + params["b2"]
    m2, v2 = jnp.mean(h2, 0), jnp.var(h2, 0)
    h2 = jnp.maximum((h2 - m2) * jax.lax.rsqrt(v2 + BN_EPS) * params["g2"]
                     + params["be2"], 0.0)
    return h2.reshape(B, L, 64).transpose(0, 2, 1)


if __name__ == "__main__":
    key = jax.random.PRNGKey(0)
    kx, kp = jax.random.split(key)

    batch_size = 2
    L = 1024                                   # points per batch element
    # x has B * L * 15 elements, exactly what x.view(B, -1, 15) expects.
    x = jax.random.normal(kx, (batch_size, L * 15), jnp.float32)
    params = init_params(kp)

    fwd = jax.jit(norm_mlp_forward, static_argnums=2)
    out = jax.block_until_ready(fwd(x, params, batch_size))
    assert out.shape == (batch_size, 64, L), out.shape

    ref = _reference(x, params, batch_size)
    max_err = float(jnp.max(jnp.abs(out - ref)))
    assert jnp.allclose(out, ref, atol=1e-4, rtol=1e-4), max_err

    print("KERNEL_OK")
</pallas_src>

<mosaic_0001>
module attributes {stable_mosaic.version = 11 : i64} {
  func.func @_apply_kernel(%arg0: i32, %arg1: i32, %arg2: memref<1x3x512xf32, #tpu.memory_space<vmem>>, %arg3: memref<64x3xf32, #tpu.memory_space<vmem>>, %arg4: memref<64x1xf32, #tpu.memory_space<vmem>>, %arg5: memref<64x64xf32, #tpu.memory_space<vmem>>, %arg6: memref<64x1xf32, #tpu.memory_space<vmem>>, %arg7: memref<1x64x512xf32, #tpu.memory_space<vmem>>) attributes {dimension_semantics = [#tpu.dimension_semantics<parallel>, #tpu.dimension_semantics<parallel>], iteration_bounds = array<i64: 2, 2>, scalar_prefetch = 0 : i64, scratch_operands = 0 : i64, tpu.core_type = #tpu.core_type<tc>, window_params = [{transform_indices = @transform_0, window_bounds = array<i64: 1, 3, 512>}, {pipeline_mode = #tpu.pipeline_mode<synchronous>, transform_indices = @transform_1, window_bounds = array<i64: 64, 3>}, {pipeline_mode = #tpu.pipeline_mode<synchronous>, transform_indices = @transform_2, window_bounds = array<i64: 64, 1>}, {pipeline_mode = #tpu.pipeline_mode<synchronous>, transform_indices = @transform_3, window_bounds = array<i64: 64, 64>}, {pipeline_mode = #tpu.pipeline_mode<synchronous>, transform_indices = @transform_4, window_bounds = array<i64: 64, 1>}, {transform_indices = @transform_5, window_bounds = array<i64: 1, 64, 512>}]} {
    %c0 = arith.constant 0 : index
    %c0_0 = arith.constant 0 : index
    %c0_1 = arith.constant 0 : index
    %0 = vector.load %arg2[%c0, %c0_0, %c0_1] : memref<1x3x512xf32, #tpu.memory_space<vmem>>, vector<1x3x512xf32>
    %1 = vector.shape_cast %0 : vector<1x3x512xf32> to vector<3x512xf32>
    %c0_2 = arith.constant 0 : index
    %c0_3 = arith.constant 0 : index
    %2 = vector.load %arg3[%c0_2, %c0_3] : memref<64x3xf32, #tpu.memory_space<vmem>>, vector<64x3xf32>
    %3 = vector.extract_strided_slice %2 {offsets = [0, 0], sizes = [64, 1], strides = [1, 1]} : vector<64x3xf32> to vector<64x1xf32>
    %4 = vector.extract_strided_slice %1 {offsets = [0, 0], sizes = [1, 512], strides = [1, 1]} : vector<3x512xf32> to vector<1x512xf32>
    %5 = vector.broadcast %3 : vector<64x1xf32> to vector<64x512xf32>
    %6 = vector.broadcast %4 : vector<1x512xf32> to vector<64x512xf32>
    %7 = arith.mulf %5, %6 : vector<64x512xf32>
    %8 = vector.extract_strided_slice %2 {offsets = [0, 1], sizes = [64, 1], strides = [1, 1]} : vector<64x3xf32> to vector<64x1xf32>
    %9 = vector.extract_strided_slice %1 {offsets = [1, 0], sizes = [1, 512], strides = [1, 1]} : vector<3x512xf32> to vector<1x512xf32>
    %10 = vector.broadcast %8 : vector<64x1xf32> to vector<64x512xf32>
    %11 = vector.broadcast %9 : vector<1x512xf32> to vector<64x512xf32>
    %12 = arith.mulf %10, %11 : vector<64x512xf32>
    %13 = arith.addf %7, %12 : vector<64x512xf32>
    %14 = vector.extract_strided_slice %2 {offsets = [0, 2], sizes = [64, 1], strides = [1, 1]} : vector<64x3xf32> to vector<64x1xf32>
    %15 = vector.extract_strided_slice %1 {offsets = [2, 0], sizes = [1, 512], strides = [1, 1]} : vector<3x512xf32> to vector<1x512xf32>
    %16 = vector.broadcast %14 : vector<64x1xf32> to vector<64x512xf32>
    %17 = vector.broadcast %15 : vector<1x512xf32> to vector<64x512xf32>
    %18 = arith.mulf %16, %17 : vector<64x512xf32>
    %19 = arith.addf %13, %18 : vector<64x512xf32>
    %c0_4 = arith.constant 0 : index
    %c0_5 = arith.constant 0 : index
    %20 = vector.load %arg4[%c0_4, %c0_5] : memref<64x1xf32, #tpu.memory_space<vmem>>, vector<64x1xf32>
    %21 = vector.broadcast %20 : vector<64x1xf32> to vector<64x512xf32>
    %22 = arith.addf %19, %21 : vector<64x512xf32>
    %cst = arith.constant 0.000000e+00 : f32
    %23 = vector.broadcast %cst : f32 to vector<64x512xf32>
    %24 = arith.maximumf %22, %23 : vector<64x512xf32>
    %c0_6 = arith.constant 0 : index
    %c0_7 = arith.constant 0 : index
    %25 = vector.load %arg5[%c0_6, %c0_7] : memref<64x64xf32, #tpu.memory_space<vmem>>, vector<64x64xf32>
    %cst_8 = arith.constant dense<0.000000e+00> : vector<64x512xf32>
    %26 = tpu.matmul %25, %24, %cst_8 {dimension_numbers = #tpu.dot_dimension_numbers<[1], [0], [0], [1], [0, 0, 1, 1], [], []>, precision = #tpu.contract_precision<fp32>} : vector<64x64xf32>, vector<64x512xf32>, vector<64x512xf32> -> vector<64x512xf32>
    %c0_9 = arith.constant 0 : index
    %c0_10 = arith.constant 0 : index
    %27 = vector.load %arg6[%c0_9, %c0_10] : memref<64x1xf32, #tpu.memory_space<vmem>>, vector<64x1xf32>
    %28 = vector.broadcast %27 : vector<64x1xf32> to vector<64x512xf32>
    %29 = arith.addf %26, %28 : vector<64x512xf32>
    %cst_11 = arith.constant 0.000000e+00 : f32
    %30 = vector.broadcast %cst_11 : f32 to vector<64x512xf32>
    %31 = arith.maximumf %29, %30 : vector<64x512xf32>
    %c0_12 = arith.constant 0 : index
    %c0_13 = arith.constant 0 : index
    %c0_14 = arith.constant 0 : index
    %32 = vector.load %arg7[%c0_12, %c0_13, %c0_14] : memref<1x64x512xf32, #tpu.memory_space<vmem>>, vector<1x64x512xf32>
    %33 = vector.shape_cast %32 : vector<1x64x512xf32> to vector<64x512xf32>
    %34 = vector.shape_cast %31 : vector<64x512xf32> to vector<1x64x512xf32>
    tpu.vector_store %arg7[%c0_12, %c0_13, %c0_14], %34 {strides = array<i32>} : memref<1x64x512xf32, #tpu.memory_space<vmem>>, vector<1x64x512xf32>,
    return
  }
  func.func @transform_0(%arg0: i32, %arg1: i32) -> (i32, i32, i32) {
    %c0_i32 = arith.constant 0 : i32
    %c0_i32_0 = arith.constant 0 : i32
    return %arg0, %c0_i32, %arg1 : i32, i32, i32
  }
  func.func @transform_1(%arg0: i32, %arg1: i32) -> (i32, i32) {
    %c0_i32 = arith.constant 0 : i32
    %c0_i32_0 = arith.constant 0 : i32
    %c0_i32_1 = arith.constant 0 : i32
    return %c0_i32, %c0_i32_0 : i32, i32
  }
  func.func @transform_2(%arg0: i32, %arg1: i32) -> (i32, i32) {
    %c0_i32 = arith.constant 0 : i32
    %c0_i32_0 = arith.constant 0 : i32
    %c0_i32_1 = arith.constant 0 : i32
    return %c0_i32, %c0_i32_0 : i32, i32
  }
  func.func @transform_3(%arg0: i32, %arg1: i32) -> (i32, i32) {
    %c0_i32 = arith.constant 0 : i32
    %c0_i32_0 = arith.constant 0 : i32
    %c0_i32_1 = arith.constant 0 : i32
    return %c0_i32, %c0_i32_0 : i32, i32
  }
  func.func @transform_4(%arg0: i32, %arg1: i32) -> (i32, i32) {
    %c0_i32 = arith.constant 0 : i32
    %c0_i32_0 = arith.constant 0 : i32
    %c0_i32_1 = arith.constant 0 : i32
    return %c0_i32, %c0_i32_0 : i32, i32
  }
  func.func @transform_5(%arg0: i32, %arg1: i32) -> (i32, i32, i32) {
    %c0_i32 = arith.constant 0 : i32
    %c0_i32_0 = arith.constant 0 : i32
    return %arg0, %c0_i32, %arg1 : i32, i32, i32
  }
}

module attributes {stable_mosaic.version = 11 : i64} {
  func.func @_stats2_kernel(%arg0: i32, %arg1: i32, %arg2: memref<1x3x512xf32, #tpu.memory_space<vmem>>, %arg3: memref<64x3xf32, #tpu.memory_space<vmem>>, %arg4: memref<64x1xf32, #tpu.memory_space<vmem>>, %arg5: memref<64x64xf32, #tpu.memory_space<vmem>>, %arg6: memref<1x1x128x1xf32, #tpu.memory_space<vmem>>) attributes {dimension_semantics = [#tpu.dimension_semantics<parallel>, #tpu.dimension_semantics<parallel>], iteration_bounds = array<i64: 2, 2>, scalar_prefetch = 0 : i64, scratch_operands = 0 : i64, tpu.core_type = #tpu.core_type<tc>, window_params = [{transform_indices = @transform_0, window_bounds = array<i64: 1, 3, 512>}, {pipeline_mode = #tpu.pipeline_mode<synchronous>, transform_indices = @transform_1, window_bounds = array<i64: 64, 3>}, {pipeline_mode = #tpu.pipeline_mode<synchronous>, transform_indices = @transform_2, window_bounds = array<i64: 64, 1>}, {pipeline_mode = #tpu.pipeline_mode<synchronous>, transform_indices = @transform_3, window_bounds = array<i64: 64, 64>}, {transform_indices = @transform_4, window_bounds = array<i64: 1, 1, 128, 1>}]} {
    %c0 = arith.constant 0 : index
    %c0_0 = arith.constant 0 : index
    %c0_1 = arith.constant 0 : index
    %0 = vector.load %arg2[%c0, %c0_0, %c0_1] : memref<1x3x512xf32, #tpu.memory_space<vmem>>, vector<1x3x512xf32>
    %1 = vector.shape_cast %0 : vector<1x3x512xf32> to vector<3x512xf32>
    %c0_2 = arith.constant 0 : index
    %c0_3 = arith.constant 0 : index
    %2 = vector.load %arg3[%c0_2, %c0_3] : memref<64x3xf32, #tpu.memory_space<vmem>>, vector<64x3xf32>
    %3 = vector.extract_strided_slice %2 {offsets = [0, 0], sizes = [64, 1], strides = [1, 1]} : vector<64x3xf32> to vector<64x1xf32>
    %4 = vector.extract_strided_slice %1 {offsets = [0, 0], sizes = [1, 512], strides = [1, 1]} : vector<3x512xf32> to vector<1x512xf32>
    %5 = vector.broadcast %3 : vector<64x1xf32> to vector<64x512xf32>
    %6 = vector.broadcast %4 : vector<1x512xf32> to vector<64x512xf32>
    %7 = arith.mulf %5, %6 : vector<64x512xf32>
    %8 = vector.extract_strided_slice %2 {offsets = [0, 1], sizes = [64, 1], strides = [1, 1]} : vector<64x3xf32> to vector<64x1xf32>
    %9 = vector.extract_strided_slice %1 {offsets = [1, 0], sizes = [1, 512], strides = [1, 1]} : vector<3x512xf32> to vector<1x512xf32>
    %10 = vector.broadcast %8 : vector<64x1xf32> to vector<64x512xf32>
    %11 = vector.broadcast %9 : vector<1x512xf32> to vector<64x512xf32>
    %12 = arith.mulf %10, %11 : vector<64x512xf32>
    %13 = arith.addf %7, %12 : vector<64x512xf32>
    %14 = vector.extract_strided_slice %2 {offsets = [0, 2], sizes = [64, 1], strides = [1, 1]} : vector<64x3xf32> to vector<64x1xf32>
    %15 = vector.extract_strided_slice %1 {offsets = [2, 0], sizes = [1, 512], strides = [1, 1]} : vector<3x512xf32> to vector<1x512xf32>
    %16 = vector.broadcast %14 : vector<64x1xf32> to vector<64x512xf32>
    %17 = vector.broadcast %15 : vector<1x512xf32> to vector<64x512xf32>
    %18 = arith.mulf %16, %17 : vector<64x512xf32>
    %19 = arith.addf %13, %18 : vector<64x512xf32>
    %c0_4 = arith.constant 0 : index
    %c0_5 = arith.constant 0 : index
    %20 = vector.load %arg4[%c0_4, %c0_5] : memref<64x1xf32, #tpu.memory_space<vmem>>, vector<64x1xf32>
    %21 = vector.broadcast %20 : vector<64x1xf32> to vector<64x512xf32>
    %22 = arith.addf %19, %21 : vector<64x512xf32>
    %cst = arith.constant 0.000000e+00 : f32
    %23 = vector.broadcast %cst : f32 to vector<64x512xf32>
    %24 = arith.maximumf %22, %23 : vector<64x512xf32>
    %c0_6 = arith.constant 0 : index
    %c0_7 = arith.constant 0 : index
    %25 = vector.load %arg5[%c0_6, %c0_7] : memref<64x64xf32, #tpu.memory_space<vmem>>, vector<64x64xf32>
    %cst_8 = arith.constant dense<0.000000e+00> : vector<64x512xf32>
    %26 = tpu.matmul %25, %24, %cst_8 {dimension_numbers = #tpu.dot_dimension_numbers<[1], [0], [0], [1], [0, 0, 1, 1], [], []>, precision = #tpu.contract_precision<fp32>} : vector<64x64xf32>, vector<64x512xf32>, vector<64x512xf32> -> vector<64x512xf32>
    %cst_9 = arith.constant dense<0.000000e+00> : vector<64xf32>
    %27 = vector.multi_reduction <add>, %26, %cst_9 [1] : vector<64x512xf32> to vector<64xf32>
    %28 = vector.shape_cast %27 : vector<64xf32> to vector<64x1xf32>
    %29 = vector.shape_cast %28 : vector<64x1xf32> to vector<1x1x64x1xf32>
    %c0_10 = arith.constant 0 : index
    %c0_11 = arith.constant 0 : index
    %c0_12 = arith.constant 0 : index
    %c0_13 = arith.constant 0 : index
    %30 = vector.load %arg6[%c0_10, %c0_11, %c0_12, %c0_13] : memref<1x1x128x1xf32, #tpu.memory_space<vmem>>, vector<1x1x64x1xf32>
    tpu.vector_store %arg6[%c0_10, %c0_11, %c0_12, %c0_13], %29 {strides = array<i32>} : memref<1x1x128x1xf32, #tpu.memory_space<vmem>>, vector<1x1x64x1xf32>,
    %31 = arith.mulf %26, %26 : vector<64x512xf32>
    %cst_14 = arith.constant dense<0.000000e+00> : vector<64xf32>
    %32 = vector.multi_reduction <add>, %31, %cst_14 [1] : vector<64x512xf32> to vector<64xf32>
    %33 = vector.shape_cast %32 : vector<64xf32> to vector<64x1xf32>
    %34 = vector.shape_cast %33 : vector<64x1xf32> to vector<1x1x64x1xf32>
    %c0_15 = arith.constant 0 : index
    %c0_16 = arith.constant 0 : index
    %c64 = arith.constant 64 : index
    %c0_17 = arith.constant 0 : index
    %35 = vector.load %arg6[%c0_15, %c0_16, %c64, %c0_17] : memref<1x1x128x1xf32, #tpu.memory_space<vmem>>, vector<1x1x64x1xf32>
    tpu.vector_store %arg6[%c0_15, %c0_16, %c64, %c0_17], %34 {strides = array<i32>} : memref<1x1x128x1xf32, #tpu.memory_space<vmem>>, vector<1x1x64x1xf32>,
    return
  }
  func.func @transform_0(%arg0: i32, %arg1: i32) -> (i32, i32, i32) {
    %c0_i32 = arith.constant 0 : i32
    %c0_i32_0 = arith.constant 0 : i32
    return %arg0, %c0_i32, %arg1 : i32, i32, i32
  }
  func.func @transform_1(%arg0: i32, %arg1: i32) -> (i32, i32) {
    %c0_i32 = arith.constant 0 : i32
    %c0_i32_0 = arith.constant 0 : i32
    %c0_i32_1 = arith.constant 0 : i32
    return %c0_i32, %c0_i32_0 : i32, i32
  }
  func.func @transform_2(%arg0: i32, %arg1: i32) -> (i32, i32) {
    %c0_i32 = arith.constant 0 : i32
    %c0_i32_0 = arith.constant 0 : i32
    %c0_i32_1 = arith.constant 0 : i32
    return %c0_i32, %c0_i32_0 : i32, i32
  }
  func.func @transform_3(%arg0: i32, %arg1: i32) -> (i32, i32) {
    %c0_i32 = arith.constant 0 : i32
    %c0_i32_0 = arith.constant 0 : i32
    %c0_i32_1 = arith.constant 0 : i32
    return %c0_i32, %c0_i32_0 : i32, i32
  }
  func.func @transform_4(%arg0: i32, %arg1: i32) -> (i32, i32, i32, i32) {
    %c0_i32 = arith.constant 0 : i32
    %c0_i32_0 = arith.constant 0 : i32
    %c0_i32_1 = arith.constant 0 : i32
    return %arg0, %arg1, %c0_i32, %c0_i32_0 : i32, i32, i32, i32
  }
}

</mosaic_0001>

<llo_original>
// kernel: norm_mlp_forward.3
$region0: #{norm_mlp_forward.3}
  #allocation0 [shape = 'u32[]', space=smem, size = 0x4, offset = 0x4, fixed_abs, tag = 'smem constant byte address 0x4 - core index']
  #allocation1 [shape = 'u32[72,128]{1,0:T(1,128)}', space=vmem, size = 0x9000, scoped, tag = 'internal scratch']
  %s0 = inlined_call_operand.vmem [shape: f32[2,3,1024], index: 0, kind: input, shape index: {}]
  %s1 = inlined_call_operand.vmem [shape: f32[64,3], index: 1, kind: input, shape index: {}]
  %s2 = inlined_call_operand.vmem [shape: f32[64,1], index: 2, kind: input, shape index: {}]
  %s3 = inlined_call_operand.vmem [shape: f32[64,64], index: 3, kind: input, shape index: {}]
  %s4 = inlined_call_operand.vmem [shape: f32[64,1], index: 4, kind: input, shape index: {}]
  %s5 = inlined_call_operand.hbm [shape: f32[2,64,1024], index: 5, kind: output, shape index: {}]
  %s6 = sld [smem:[#allocation0]]
  $region53: #{norm_mlp_forward.3} parent=0
    _
  %s8 = ssub.s32 1, %s6
  %s9 = scalar_select 0, %s8, %s6
  $region1: #{norm_mlp_forward.3} parent=0
    #allocation2 [shape = 'u8[262144]{0}', space=vmem, size = 0x40000, scoped, tag = 'output window, operand 0']
    #allocation3 [shape = 's32[2]{0}', space=sflag, size = 0x8, scoped, tag = 'scoped memory for norm_mlp_forward.3']
    %10 = vsyncpa [#allocation3], 0
    %s11 = scalar_lea.sflag [#allocation3], 1
    %12 = vsyncpa %s11, 0
    loop: start=0, step=1, limit=6
    $region2: #{norm_mlp_forward.3} parent=1 // loop_pre_header
      _
    $region3: #{norm_mlp_forward.3} parent=1 // loop_header
      %s14 = sphi 0, %s18
      %p15 = scmp.ge.s32.totalorder %s14, 6
      %s21 = sphi 0, %s33
      %s22 = sphi 0, %s29
      %s23 = sphi 0, %s21
      %s24 = sphi 0, %s22
      %s25 = sphi 0, %s23
      %s26 = sphi 0, %s24
      %s38 = sphi 0, %s40
      %s41 = sphi 0, %s38
      %s42 = sphi 0, %s41
      %s58 = sphi 0, %s42
      %s62 = sphi 0, %s62
      %s64 = sphi 0, %s62
      %s65 = sphi 0, %s64
      %s79 = sphi 0, %s65
      %s83 = sphi 0, %s83
      %s85 = sphi 0, %s83
      %s86 = sphi 0, %s85
      %s100 = sphi 0, %s86
      %s104 = sphi 0, %s104
      %s106 = sphi 0, %s104
      %s107 = sphi 0, %s106
      %s121 = sphi 0, %s107
      %s125 = sphi 0, %s125
      %s127 = sphi 0, %s125
      %s128 = sphi 0, %s127
      %s142 = sphi 0, %s128
      %s150 = sphi 0, %s152
      %s153 = sphi 0, %s150
      %s154 = sphi 0, %s153
      %s170 = sphi 0, %s154
    $region4: #{norm_mlp_forward.3} parent=1 // loop_header_branch
      %17 = sbr.rel (%p15) target = $region8
    $region5: #{norm_mlp_forward.3} parent=1 // loop_body
      %s19 = ssub.s32 %s14, 1
      %s20 = ssub.s32 %s14, 2
      %s27 = sadd.s32 1, %s22
      %p28 = scmp.ge.s32.totalorder %s27, 2
      %s29 = scalar_select %p28, 0, %s27
      %s30 = sadd.s32 1, %s21
      %s31 = scalar_select %p28, %s30, %s21
      %p32 = scmp.ge.s32.totalorder %s31, 2
      %s33 = scalar_select %p32, 0, %s31
      %s34 = ssub.s32 %s21, %s33
      %s35 = ssub.s32 %s22, %s29
      %s36 = sor.u32 %s34, %s35
      %p37 = scmp.eq.s32.totalorder %s36, 0
      %s39 = sadd.s32 %s38, 1
      %s40 = scalar_select %p37, %s38, %s39
      %p43 = pneg %p37
      %p44 = scmp.eq.s32.totalorder %s14, 3
      %p45 = por %p43, %p44
      %p46 = scmp.ne.s32.totalorder %s38, %s41
      %p47 = scmp.eq.s32.totalorder %s14, 0
      %p48 = por %p46, %p47
      %p49 = scmp.ne.s32.totalorder %s38, %s41
      %p50 = scmp.eq.s32.totalorder %s19, 3
      %p51 = por %p49, %p50
      %p52 = scmp.ne.s32.totalorder %s41, %s42
      %p53 = scmp.eq.s32.totalorder %s19, 0
      %p54 = por %p52, %p53
      %p55 = scmp.ne.s32.totalorder %s41, %s42
      %p56 = scmp.eq.s32.totalorder %s20, 3
      %p57 = por %p55, %p56
      %p59 = scmp.ne.s32.totalorder %s42, %s58
      %p60 = scmp.eq.s32.totalorder %s20, 0
      %p61 = por %p59, %p60
      %s63 = sadd.s32 %s62, 1
      %p66 = scmp.eq.s32.totalorder %s14, 3
      %p67 = scmp.ne.s32.totalorder %s62, %s64
      %p68 = scmp.eq.s32.totalorder %s14, 0
      %p69 = por %p67, %p68
      %p70 = scmp.ne.s32.totalorder %s62, %s64
      %p71 = scmp.eq.s32.totalorder %s19, 3
      %p72 = por %p70, %p71
      %p73 = scmp.ne.s32.totalorder %s64, %s65
      %p74 = scmp.eq.s32.totalorder %s19, 0
      %p75 = por %p73, %p74
      %p76 = scmp.ne.s32.totalorder %s64, %s65
      %p77 = scmp.eq.s32.totalorder %s20, 3
      %p78 = por %p76, %p77
      %p80 = scmp.ne.s32.totalorder %s65, %s79
      %p81 = scmp.eq.s32.totalorder %s20, 0
      %p82 = por %p80, %p81
      %s84 = sadd.s32 %s83, 1
      %p87 = scmp.eq.s32.totalorder %s14, 3
      %p88 = scmp.ne.s32.totalorder %s83, %s85
      %p89 = scmp.eq.s32.totalorder %s14, 0
      %p90 = por %p88, %p89
      %p91 = scmp.ne.s32.totalorder %s83, %s85
      %p92 = scmp.eq.s32.totalorder %s19, 3
      %p93 = por %p91, %p92
      %p94 = scmp.ne.s32.totalorder %s85, %s86
      %p95 = scmp.eq.s32.totalorder %s19, 0
      %p96 = por %p94, %p95
      %p97 = scmp.ne.s32.totalorder %s85, %s86
      %p98 = scmp.eq.s32.totalorder %s20, 3
      %p99 = por %p97, %p98
      %p101 = scmp.ne.s32.totalorder %s86, %s100
      %p102 = scmp.eq.s32.totalorder %s20, 0
      %p103 = por %p101, %p102
      %s105 = sadd.s32 %s104, 1
      %p108 = scmp.eq.s32.totalorder %s14, 3
      %p109 = scmp.ne.s32.totalorder %s104, %s106
      %p110 = scmp.eq.s32.totalorder %s14, 0
      %p111 = por %p109, %p110
      %p112 = scmp.ne.s32.totalorder %s104, %s106
      %p113 = scmp.eq.s32.totalorder %s19, 3
      %p114 = por %p112, %p113
      %p115 = scmp.ne.s32.totalorder %s106, %s107
      %p116 = scmp.eq.s32.totalorder %s19, 0
      %p117 = por %p115, %p116
      %p118 = scmp.ne.s32.totalorder %s106, %s107
      %p119 = scmp.eq.s32.totalorder %s20, 3
      %p120 = por %p118, %p119
      %p122 = scmp.ne.s32.totalorder %s107, %s121
      %p123 = scmp.eq.s32.totalorder %s20, 0
      %p124 = por %p122, %p123
      %s126 = sadd.s32 %s125, 1
      %p129 = scmp.eq.s32.totalorder %s14, 3
      %p130 = scmp.ne.s32.totalorder %s125, %s127
      %p131 = scmp.eq.s32.totalorder %s14, 0
      %p132 = por %p130, %p131
      %p133 = scmp.ne.s32.totalorder %s125, %s127
      %p134 = scmp.eq.s32.totalorder %s19, 3
      %p135 = por %p133, %p134
      %p136 = scmp.ne.s32.totalorder %s127, %s128
      %p137 = scmp.eq.s32.totalorder %s19, 0
      %p138 = por %p136, %p137
      %p139 = scmp.ne.s32.totalorder %s127, %s128
      %p140 = scmp.eq.s32.totalorder %s20, 3
      %p141 = por %p139, %p140
      %p143 = scmp.ne.s32.totalorder %s128, %s142
      %p144 = scmp.eq.s32.totalorder %s20, 0
      %p145 = por %p143, %p144
      %s146 = ssub.s32 %s21, %s33
      %s147 = ssub.s32 %s22, %s29
      %s148 = sor.u32 %s146, %s147
      %p149 = scmp.eq.s32.totalorder %s148, 0
      %s151 = sadd.s32 %s150, 1
      %s152 = scalar_select %p149, %s150, %s151
      %p155 = pneg %p149
      %p156 = scmp.eq.s32.totalorder %s14, 3
      %p157 = por %p155, %p156
      %p158 = scmp.ne.s32.totalorder %s150, %s153
      %p159 = scmp.eq.s32.totalorder %s14, 0
      %p160 = por %p158, %p159
      %p161 = scmp.ne.s32.totalorder %s150, %s153
      %p162 = scmp.eq.s32.totalorder %s19, 3
      %p163 = por %p161, %p162
      %p164 = scmp.ne.s32.totalorder %s153, %s154
      %p165 = scmp.eq.s32.totalorder %s19, 0
      %p166 = por %p164, %p165
      %p167 = scmp.ne.s32.totalorder %s153, %s154
      %p168 = scmp.eq.s32.totalorder %s20, 3
      %p169 = por %p167, %p168
      %p171 = scmp.ne.s32.totalorder %s154, %s170
      %p172 = scmp.eq.s32.totalorder %s20, 0
      %p173 = por %p171, %p172
      %p174 = scmp.le.s32.totalorder 1, %s14
      %p175 = scmp.lt.s32.totalorder %s14, 5
      %p176 = pnand %p174, %p175
      %p177 = pneg %p176
      // Predicated region
      $region9: #{norm_mlp_forward.3} parent=5 // pred_check
        _
      $region10: #{norm_mlp_forward.3} parent=5 // pred_check_branch
        %179 = sbr.rel (%p176) target = $region12
      $region11: #{norm_mlp_forward.3} parent=5 // pred_region
        %s180 = ssub.s32 %s14, 1
        // Predicated region
        $region13: #{norm_mlp_forward.3} parent=11 // pred_check
          %p181 = pneg %p75
        $region14: #{norm_mlp_forward.3} parent=11 // pred_check_branch
          %183 = sbr.rel (%p181) target = $region16
        $region15: #{norm_mlp_forward.3} parent=11 // pred_region
          _
        $region16: #{norm_mlp_forward.3} parent=11 // pred_fallthru
          _
        // Predicated region
        $region17: #{norm_mlp_forward.3} parent=11 // pred_check
          %p184 = pneg %p96
        $region18: #{norm_mlp_forward.3} parent=11 // pred_check_branch
          %186 = sbr.rel (%p184) target = $region20
        $region19: #{norm_mlp_forward.3} parent=11 // pred_region
          _
        $region20: #{norm_mlp_forward.3} parent=11 // pred_fallthru
          _
        // Predicated region
        $region21: #{norm_mlp_forward.3} parent=11 // pred_check
          %p187 = pneg %p117
        $region22: #{norm_mlp_forward.3} parent=11 // pred_check_branch
          %189 = sbr.rel (%p187) target = $region24
        $region23: #{norm_mlp_forward.3} parent=11 // pred_region
          _
        $region24: #{norm_mlp_forward.3} parent=11 // pred_fallthru
          _
        // Predicated region
        $region25: #{norm_mlp_forward.3} parent=11 // pred_check
          %p190 = pneg %p138
        $region26: #{norm_mlp_forward.3} parent=11 // pred_check_branch
          %192 = sbr.rel (%p190) target = $region28
        $region27: #{norm_mlp_forward.3} parent=11 // pred_region
          _
        $region28: #{norm_mlp_forward.3} parent=11 // pred_fallthru
          _
      $region12: #{norm_mlp_forward.3} parent=5 // pred_fallthru
        _
      %p193 = scmp.lt.s32.totalorder %s14, 4
      // Predicated region
      $region29: #{norm_mlp_forward.3} parent=5 // pred_check
        %p194 = pneg %p193
      $region30: #{norm_mlp_forward.3} parent=5 // pred_check_branch
        %196 = sbr.rel (%p194) target = $region32
      $region31: #{norm_mlp_forward.3} parent=5 // pred_region
        // Predicated region
        $region33: #{norm_mlp_forward.3} parent=31 // pred_check
          %p197 = pneg %p48
        $region34: #{norm_mlp_forward.3} parent=31 // pred_check_branch
          %199 = sbr.rel (%p197) target = $region36
        $region35: #{norm_mlp_forward.3} parent=31 // pred_region
          %s200 = smul.u32 4, %s22
          %p201 = scmp.lt.s32.totalorder %s21, 1
          %s202 = scalar_select %p201, %s21, 1
          %p203 = scmp.lt.s32.totalorder %s200, 7
          %s204 = scalar_select %p203, %s200, 7
          %s205 = smul.addr %s202, 8
          %s206 = sadd.s32 %s204, %s205
          %s207 = smul.addr %s206, 4
          %s208 = scalar_lea.vmem %s0, %s207
          %s209 = smul.u32 4, %s22
        $region36: #{norm_mlp_forward.3} parent=31 // pred_fallthru
          _
      $region32: #{norm_mlp_forward.3} parent=5 // pred_fallthru
        _
      %p210 = scmp.le.s32.totalorder 1, %s14
      %p211 = scmp.lt.s32.totalorder %s14, 5
      %p212 = pnand %p210, %p211
      %p213 = pneg %p212
      // Predicated region
      $region37: #{norm_mlp_forward.3} parent=5 // pred_check
        _
      $region38: #{norm_mlp_forward.3} parent=5 // pred_check_branch
        %215 = sbr.rel (%p212) target = $region40
      $region39: #{norm_mlp_forward.3} parent=5 // pred_region
        %s216 = ssub.s32 %s14, 1
        %s217 = smul.u32 4, %s24
        %p218 = scmp.lt.s32.totalorder %s23, 1
        %s219 = scalar_select %p218, %s23, 1
        %p220 = scmp.lt.s32.totalorder %s217, 7
        %s221 = scalar_select %p220, %s217, 7
        %s222 = smul.addr %s219, 8
        %s223 = sadd.s32 %s221, %s222
        %s224 = smul.addr %s223, 4
        %s225 = scalar_lea.vmem %s0, %s224
        %p226 = pneg %p54
        %p227 = pneg %p51
        %p228 = pneg %p75
        %p229 = pneg %p72
        %p230 = pneg %p96
        %p231 = pneg %p93
        %p232 = pneg %p117
        %p233 = pneg %p114
        %p234 = pneg %p138
        %p235 = pneg %p135
        %p236 = pneg %p166
        %p237 = pneg %p163
        %s238 = sand.u32 %s153, 1
        %s239 = scalar_lea.sflag [#allocation3], %s238
        %s240 = sand.u32 %s153, 1
        %s241 = smul.addr %s240, 256
        %s242 = scalar_lea.vmem [#allocation2], %s241
        %s243 = smul.u32 4, %s24
        %p244 = scmp.lt.s32.totalorder %s23, 1
        %s245 = scalar_select %p244, %s23, 1
        %p246 = scmp.lt.s32.totalorder %s243, 7
        %s247 = scalar_select %p246, %s243, 7
        %s248 = smul.addr %s245, 8
        %s249 = sadd.s32 %s247, %s248
        %s250 = smul.addr %s249, 4
        %s251 = scalar_lea.vmem %s0, %s250
        %s252 = smul.u32 4, %s24
        %s253 = smul.u32 4, %s24
        %v254 = vld [vmem:[%s251] sm:$0x77]
        %v255 = vld [vmem:[%s251 + $0x8] sm:$0x77]
        %v256 = vld [vmem:[%s1] sm:$0xff]
        %v257 = vld [vmem:[%s1 + $0x8] sm:$0xff]
        %v258 = vld [vmem:[%s1 + $0x10] sm:$0xff]
        %v259 = vld [vmem:[%s1 + $0x18] sm:$0xff]
        %v260 = vld [vmem:[%s1 + $0x20] sm:$0xff]
        %v261 = vld [vmem:[%s1 + $0x28] sm:$0xff]
        %v262 = vld [vmem:[%s1 + $0x30] sm:$0xff]
        %v263 = vld [vmem:[%s1 + $0x38] sm:$0xff]
        %265 = vset.pattern.permute.xlu0 0
        %266 = vperm.xlu0 %265, %v256
        %v267 = vpop.permute.xlu0 %266
        %270 = vset.pattern.permute.xlu0 0
        %271 = vperm.xlu0 %270, %v257
        %v272 = vpop.permute.xlu0 %271
        %275 = vset.pattern.permute.xlu0 0
        %276 = vperm.xlu0 %275, %v258
        %v277 = vpop.permute.xlu0 %276
        %280 = vset.pattern.permute.xlu0 0
        %281 = vperm.xlu0 %280, %v259
        %v282 = vpop.permute.xlu0 %281
        %285 = vset.pattern.permute.xlu0 0
        %286 = vperm.xlu0 %285, %v260
        %v287 = vpop.permute.xlu0 %286
        %290 = vset.pattern.permute.xlu0 0
        %291 = vperm.xlu0 %290, %v261
        %v292 = vpop.permute.xlu0 %291
        %295 = vset.pattern.permute.xlu0 0
        %296 = vperm.xlu0 %295, %v262
        %v297 = vpop.permute.xlu0 %296
        %300 = vset.pattern.permute.xlu0 0
        %301 = vperm.xlu0 %300, %v263
        %v302 = vpop.permute.xlu0 %301
        %v306 = vperm.slane %v254, 0
        %v307 = vperm.slane %v254, 4
        %v308 = vperm.slane %v255, 0
        %v309 = vperm.slane %v255, 4
        %v314 = vperm.slane %v306, 0
        %v315 = vperm.slane %v307, 0
        %v316 = vperm.slane %v308, 0
        %v317 = vperm.slane %v309, 0
        %v318 = vmul.f32 %v267, %v314
        %v319 = vmul.f32 %v267, %v315
        %v320 = vmul.f32 %v267, %v316
        %v321 = vmul.f32 %v267, %v317
        %v322 = vmul.f32 %v272, %v314
        %v323 = vmul.f32 %v272, %v315
        %v324 = vmul.f32 %v272, %v316
        %v325 = vmul.f32 %v272, %v317
        %v326 = vmul.f32 %v277, %v314
        %v327 = vmul.f32 %v277, %v315
        %v328 = vmul.f32 %v277, %v316
        %v329 = vmul.f32 %v277, %v317
        %v330 = vmul.f32 %v282, %v314
        %v331 = vmul.f32 %v282, %v315
        %v332 = vmul.f32 %v282, %v316
        %v333 = vmul.f32 %v282, %v317
        %v334 = vmul.f32 %v287, %v314
        %v335 = vmul.f32 %v287, %v315
        %v336 = vmul.f32 %v287, %v316
        %v337 = vmul.f32 %v287, %v317
        %v338 = vmul.f32 %v292, %v314
        %v339 = vmul.f32 %v292, %v315
        %v340 = vmul.f32 %v292, %v316
        %v341 = vmul.f32 %v292, %v317
        %v342 = vmul.f32 %v297, %v314
        %v343 = vmul.f32 %v297, %v315
        %v344 = vmul.f32 %v297, %v316
        %v345 = vmul.f32 %v297, %v317
        %v346 = vmul.f32 %v302, %v314
        %v347 = vmul.f32 %v302, %v315
        %v348 = vmul.f32 %v302, %v316
        %v349 = vmul.f32 %v302, %v317
        %350 = vset.pattern.permute.xlu0 1
        %351 = vperm.xlu0 %350, %v256
        %v352 = vpop.permute.xlu0 %351
        %354 = vset.pattern.permute.xlu0 1
        %355 = vperm.xlu0 %354, %v257
        %v356 = vpop.permute.xlu0 %355
        %358 = vset.pattern.permute.xlu0 1
        %359 = vperm.xlu0 %358, %v258
        %v360 = vpop.permute.xlu0 %359
        %362 = vset.pattern.permute.xlu0 1
        %363 = vperm.xlu0 %362, %v259
        %v364 = vpop.permute.xlu0 %363
        %366 = vset.pattern.permute.xlu0 1
        %367 = vperm.xlu0 %366, %v260
        %v368 = vpop.permute.xlu0 %367
        %370 = vset.pattern.permute.xlu0 1
        %371 = vperm.xlu0 %370, %v261
        %v372 = vpop.permute.xlu0 %371
        %374 = vset.pattern.permute.xlu0 1
        %375 = vperm.xlu0 %374, %v262
        %v376 = vpop.permute.xlu0 %375
        %378 = vset.pattern.permute.xlu0 1
        %379 = vperm.xlu0 %378, %v263
        %v380 = vpop.permute.xlu0 %379
        %v382 = vperm.slane %v254, 1
        %v383 = vperm.slane %v254, 5
        %v384 = vperm.slane %v255, 1
        %v385 = vperm.slane %v255, 5
        %v390 = vperm.slane %v382, 1
        %v391 = vperm.slane %v383, 1
        %v392 = vperm.slane %v384, 1
        %v393 = vperm.slane %v385, 1
        %v394 = vmul.f32 %v352, %v390
        %v395 = vmul.f32 %v352, %v391
        %v396 = vmul.f32 %v352, %v392
        %v397 = vmul.f32 %v352, %v393
        %v398 = vmul.f32 %v356, %v390
        %v399 = vmul.f32 %v356, %v391
        %v400 = vmul.f32 %v356, %v392
        %v401 = vmul.f32 %v356, %v393
        %v402 = vmul.f32 %v360, %v390
        %v403 = vmul.f32 %v360, %v391
        %v404 = vmul.f32 %v360, %v392
        %v405 = vmul.f32 %v360, %v393
        %v406 = vmul.f32 %v364, %v390
        %v407 = vmul.f32 %v364, %v391
        %v408 = vmul.f32 %v364, %v392
        %v409 = vmul.f32 %v364, %v393
        %v410 = vmul.f32 %v368, %v390
        %v411 = vmul.f32 %v368, %v391
        %v412 = vmul.f32 %v368, %v392
        %v413 = vmul.f32 %v368, %v393
        %v414 = vmul.f32 %v372, %v390
        %v415 = vmul.f32 %v372, %v391
        %v416 = vmul.f32 %v372, %v392
        %v417 = vmul.f32 %v372, %v393
        %v418 = vmul.f32 %v376, %v390
        %v419 = vmul.f32 %v376, %v391
        %v420 = vmul.f32 %v376, %v392
        %v421 = vmul.f32 %v376, %v393
        %v422 = vmul.f32 %v380, %v390
        %v423 = vmul.f32 %v380, %v391
        %v424 = vmul.f32 %v380, %v392
        %v425 = vmul.f32 %v380, %v393
        %v426 = vadd.f32 %v318, %v394
        %v427 = vadd.f32 %v319, %v395
        %v428 = vadd.f32 %v320, %v396
        %v429 = vadd.f32 %v321, %v397
        %v430 = vadd.f32 %v322, %v398
        %v431 = vadd.f32 %v323, %v399
        %v432 = vadd.f32 %v324, %v400
        %v433 = vadd.f32 %v325, %v401
        %v434 = vadd.f32 %v326, %v402
        %v435 = vadd.f32 %v327, %v403
        %v436 = vadd.f32 %v328, %v404
        %v437 = vadd.f32 %v329, %v405
        %v438 = vadd.f32 %v330, %v406
        %v439 = vadd.f32 %v331, %v407
        %v440 = vadd.f32 %v332, %v408
        %v441 = vadd.f32 %v333, %v409
        %v442 = vadd.f32 %v334, %v410
        %v443 = vadd.f32 %v335, %v411
        %v444 = vadd.f32 %v336, %v412
        %v445 = vadd.f32 %v337, %v413
        %v446 = vadd.f32 %v338, %v414
        %v447 = vadd.f32 %v339, %v415
        %v448 = vadd.f32 %v340, %v416
        %v449 = vadd.f32 %v341, %v417
        %v450 = vadd.f32 %v342, %v418
        %v451 = vadd.f32 %v343, %v419
        %v452 = vadd.f32 %v344, %v420
        %v453 = vadd.f32 %v345, %v421
        %v454 = vadd.f32 %v346, %v422
        %v455 = vadd.f32 %v347, %v423
        %v456 = vadd.f32 %v348, %v424
        %v457 = vadd.f32 %v349, %v425
        %458 = vset.pattern.permute.xlu0 2
        %459 = vperm.xlu0 %458, %v256
        %v460 = vpop.permute.xlu0 %459
        %462 = vset.pattern.permute.xlu0 2
        %463 = vperm.xlu0 %462, %v257
        %v464 = vpop.permute.xlu0 %463
        %466 = vset.pattern.permute.xlu0 2
        %467 = vperm.xlu0 %466, %v258
        %v468 = vpop.permute.xlu0 %467
        %470 = vset.pattern.permute.xlu0 2
        %471 = vperm.xlu0 %470, %v259
        %v472 = vpop.permute.xlu0 %471
        %474 = vset.pattern.permute.xlu0 2
        %475 = vperm.xlu0 %474, %v260
        %v476 = vpop.permute.xlu0 %475
        %478 = vset.pattern.permute.xlu0 2
        %479 = vperm.xlu0 %478, %v261
        %v480 = vpop.permute.xlu0 %479
        %482 = vset.pattern.permute.xlu0 2
        %483 = vperm.xlu0 %482, %v262
        %v484 = vpop.permute.xlu0 %483
        %486 = vset.pattern.permute.xlu0 2
        %487 = vperm.xlu0 %486, %v263
        %v488 = vpop.permute.xlu0 %487
        %v490 = vperm.slane %v254, 2
        %v491 = vperm.slane %v254, 6
        %v492 = vperm.slane %v255, 2
        %v493 = vperm.slane %v255, 6
        %v498 = vperm.slane %v490, 2
        %v499 = vperm.slane %v491, 2
        %v500 = vperm.slane %v492, 2
        %v501 = vperm.slane %v493, 2
        %v502 = vmul.f32 %v460, %v498
        %v503 = vmul.f32 %v460, %v499
        %v504 = vmul.f32 %v460, %v500
        %v505 = vmul.f32 %v460, %v501
        %v506 = vmul.f32 %v464, %v498
        %v507 = vmul.f32 %v464, %v499
        %v508 = vmul.f32 %v464, %v500
        %v509 = vmul.f32 %v464, %v501
        %v510 = vmul.f32 %v468, %v498
        %v511 = vmul.f32 %v468, %v499
        %v512 = vmul.f32 %v468, %v500
        %v513 = vmul.f32 %v468, %v501
        %v514 = vmul.f32 %v472, %v498
        %v515 = vmul.f32 %v472, %v499
        %v516 = vmul.f32 %v472, %v500
        %v517 = vmul.f32 %v472, %v501
        %v518 = vmul.f32 %v476, %v498
        %v519 = vmul.f32 %v476, %v499
        %v520 = vmul.f32 %v476, %v500
        %v521 = vmul.f32 %v476, %v501
        %v522 = vmul.f32 %v480, %v498
        %v523 = vmul.f32 %v480, %v499
        %v524 = vmul.f32 %v480, %v500
        %v525 = vmul.f32 %v480, %v501
        %v526 = vmul.f32 %v484, %v498
        %v527 = vmul.f32 %v484, %v499
        %v528 = vmul.f32 %v484, %v500
        %v529 = vmul.f32 %v484, %v501
        %v530 = vmul.f32 %v488, %v498
        %v531 = vmul.f32 %v488, %v499
        %v532 = vmul.f32 %v488, %v500
        %v533 = vmul.f32 %v488, %v501
        %v534 = vadd.f32 %v426, %v502
        %v535 = vadd.f32 %v427, %v503
        %v536 = vadd.f32 %v428, %v504
        %v537 = vadd.f32 %v429, %v505
        %v538 = vadd.f32 %v430, %v506
        %v539 = vadd.f32 %v431, %v507
        %v540 = vadd.f32 %v432, %v508
        %v541 = vadd.f32 %v433, %v509
        %v542 = vadd.f32 %v434, %v510
        %v543 = vadd.f32 %v435, %v511
        %v544 = vadd.f32 %v436, %v512
        %v545 = vadd.f32 %v437, %v513
        %v546 = vadd.f32 %v438, %v514
        %v547 = vadd.f32 %v439, %v515
        %v548 = vadd.f32 %v440, %v516
        %v549 = vadd.f32 %v441, %v517
        %v550 = vadd.f32 %v442, %v518
        %v551 = vadd.f32 %v443, %v519
        %v552 = vadd.f32 %v444, %v520
        %v553 = vadd.f32 %v445, %v521
        %v554 = vadd.f32 %v446, %v522
        %v555 = vadd.f32 %v447, %v523
        %v556 = vadd.f32 %v448, %v524
        %v557 = vadd.f32 %v449, %v525
        %v558 = vadd.f32 %v450, %v526
        %v559 = vadd.f32 %v451, %v527
        %v560 = vadd.f32 %v452, %v528
        %v561 = vadd.f32 %v453, %v529
        %v562 = vadd.f32 %v454, %v530
        %v563 = vadd.f32 %v455, %v531
        %v564 = vadd.f32 %v456, %v532
        %v565 = vadd.f32 %v457, %v533
        %v566 = vld [vmem:[%s2] sm:$0xff]
        %v567 = vld [vmem:[%s2 + $0x8] sm:$0xff]
        %v568 = vld [vmem:[%s2 + $0x10] sm:$0xff]
        %v569 = vld [vmem:[%s2 + $0x18] sm:$0xff]
        %v570 = vld [vmem:[%s2 + $0x20] sm:$0xff]
        %v571 = vld [vmem:[%s2 + $0x28] sm:$0xff]
        %v572 = vld [vmem:[%s2 + $0x30] sm:$0xff]
        %v573 = vld [vmem:[%s2 + $0x38] sm:$0xff]
        %575 = vset.pattern.permute.xlu0 0
        %576 = vperm.xlu0 %575, %v566
        %v577 = vpop.permute.xlu0 %576
        %580 = vset.pattern.permute.xlu0 0
        %581 = vperm.xlu0 %580, %v567
        %v582 = vpop.permute.xlu0 %581
        %585 = vset.pattern.permute.xlu0 0
        %586 = vperm.xlu0 %585, %v568
        %v587 = vpop.permute.xlu0 %586
        %590 = vset.pattern.permute.xlu0 0
        %591 = vperm.xlu0 %590, %v569
        %v592 = vpop.permute.xlu0 %591
        %595 = vset.pattern.permute.xlu0 0
        %596 = vperm.xlu0 %595, %v570
        %v597 = vpop.permute.xlu0 %596
        %600 = vset.pattern.permute.xlu0 0
        %601 = vperm.xlu0 %600, %v571
        %v602 = vpop.permute.xlu0 %601
        %605 = vset.pattern.permute.xlu0 0
        %606 = vperm.xlu0 %605, %v572
        %v607 = vpop.permute.xlu0 %606
        %610 = vset.pattern.permute.xlu0 0
        %611 = vperm.xlu0 %610, %v573
        %v612 = vpop.permute.xlu0 %611
        %v614 = vadd.f32 %v534, %v577
        %v615 = vadd.f32 %v535, %v577
        %v616 = vadd.f32 %v536, %v577
        %v617 = vadd.f32 %v537, %v577
        %v618 = vadd.f32 %v538, %v582
        %v619 = vadd.f32 %v539, %v582
        %v620 = vadd.f32 %v540, %v582
        %v621 = vadd.f32 %v541, %v582
        %v622 = vadd.f32 %v542, %v587
        %v623 = vadd.f32 %v543, %v587
        %v624 = vadd.f32 %v544, %v587
        %v625 = vadd.f32 %v545, %v587
        %v626 = vadd.f32 %v546, %v592
        %v627 = vadd.f32 %v547, %v592
        %v628 = vadd.f32 %v548, %v592
        %v629 = vadd.f32 %v549, %v592
        %v630 = vadd.f32 %v550, %v597
        %v631 = vadd.f32 %v551, %v597
        %v632 = vadd.f32 %v552, %v597
        %v633 = vadd.f32 %v553, %v597
        %v634 = vadd.f32 %v554, %v602
        %v635 = vadd.f32 %v555, %v602
        %v636 = vadd.f32 %v556, %v602
        %v637 = vadd.f32 %v557, %v602
        %v638 = vadd.f32 %v558, %v607
        %v639 = vadd.f32 %v559, %v607
        %v640 = vadd.f32 %v560, %v607
        %v641 = vadd.f32 %v561, %v607
        %v642 = vadd.f32 %v562, %v612
        %v643 = vadd.f32 %v563, %v612
        %v644 = vadd.f32 %v564, %v612
        %v645 = vadd.f32 %v565, %v612
        %v646 = vmax.f32 %v614, 0.0
        %v647 = vmax.f32 %v615, 0.0
        %v648 = vmax.f32 %v616, 0.0
        %v649 = vmax.f32 %v617, 0.0
        %v650 = vmax.f32 %v618, 0.0
        %v651 = vmax.f32 %v619, 0.0
        %v652 = vmax.f32 %v620, 0.0
        %v653 = vmax.f32 %v621, 0.0
        %v654 = vmax.f32 %v622, 0.0
        %v655 = vmax.f32 %v623, 0.0
        %v656 = vmax.f32 %v624, 0.0
        %v657 = vmax.f32 %v625, 0.0
        %v658 = vmax.f32 %v626, 0.0
        %v659 = vmax.f32 %v627, 0.0
        %v660 = vmax.f32 %v628, 0.0
        %v661 = vmax.f32 %v629, 0.0
        %v662 = vmax.f32 %v630, 0.0
        %v663 = vmax.f32 %v631, 0.0
        %v664 = vmax.f32 %v632, 0.0
        %v665 = vmax.f32 %v633, 0.0
        %v666 = vmax.f32 %v634, 0.0
        %v667 = vmax.f32 %v635, 0.0
        %v668 = vmax.f32 %v636, 0.0
        %v669 = vmax.f32 %v637, 0.0
        %v670 = vmax.f32 %v638, 0.0
        %v671 = vmax.f32 %v639, 0.0
        %v672 = vmax.f32 %v640, 0.0
        %v673 = vmax.f32 %v641, 0.0
        %v674 = vmax.f32 %v642, 0.0
        %v675 = vmax.f32 %v643, 0.0
        %v676 = vmax.f32 %v644, 0.0
        %v677 = vmax.f32 %v645, 0.0
        %v678 = vld [vmem:[%s3] sm:$0xff]
        %v679 = vld [vmem:[%s3 + $0x8] sm:$0xff]
        %v680 = vld [vmem:[%s3 + $0x10] sm:$0xff]
        %v681 = vld [vmem:[%s3 + $0x18] sm:$0xff]
        %v682 = vld [vmem:[%s3 + $0x20] sm:$0xff]
        %v683 = vld [vmem:[%s3 + $0x28] sm:$0xff]
        %v684 = vld [vmem:[%s3 + $0x30] sm:$0xff]
        %v685 = vld [vmem:[%s3 + $0x38] sm:$0xff]
        %v686 = vld [vmem:[%s4] sm:$0xff]
        %v687 = vld [vmem:[%s4 + $0x8] sm:$0xff]
        %v688 = vld [vmem:[%s4 + $0x10] sm:$0xff]
        %v689 = vld [vmem:[%s4 + $0x18] sm:$0xff]
        %v690 = vld [vmem:[%s4 + $0x20] sm:$0xff]
        %v691 = vld [vmem:[%s4 + $0x28] sm:$0xff]
        %v692 = vld [vmem:[%s4 + $0x30] sm:$0xff]
        %v693 = vld [vmem:[%s4 + $0x38] sm:$0xff]
        %695 = vset.pattern.permute.xlu0 0
        %696 = vperm.xlu0 %695, %v686
        %v697 = vpop.permute.xlu0 %696
        %700 = vset.pattern.permute.xlu0 0
        %701 = vperm.xlu0 %700, %v687
        %v702 = vpop.permute.xlu0 %701
        %705 = vset.pattern.permute.xlu0 0
        %706 = vperm.xlu0 %705, %v688
        %v707 = vpop.permute.xlu0 %706
        %710 = vset.pattern.permute.xlu0 0
        %711 = vperm.xlu0 %710, %v689
        %v712 = vpop.permute.xlu0 %711
        %715 = vset.pattern.permute.xlu0 0
        %716 = vperm.xlu0 %715, %v690
        %v717 = vpop.permute.xlu0 %716
        %720 = vset.pattern.permute.xlu0 0
        %721 = vperm.xlu0 %720, %v691
        %v722 = vpop.permute.xlu0 %721
        %725 = vset.pattern.permute.xlu0 0
        %726 = vperm.xlu0 %725, %v692
        %v727 = vpop.permute.xlu0 %726
        %730 = vset.pattern.permute.xlu0 0
        %731 = vperm.xlu0 %730, %v693
        %v732 = vpop.permute.xlu0 %731
        %vm734 = vcmask 523264
        %v736 = vsel %vm734, %v678, 0
        %v739 = vsel %vm734, %v679, 0
        %v742 = vsel %vm734, %v680, 0
        %v745 = vsel %vm734, %v681, 0
        %v748 = vsel %vm734, %v682, 0
        %v751 = vsel %vm734, %v683, 0
        %v754 = vsel %vm734, %v684, 0
        %v757 = vsel %vm734, %v685, 0
        %759 = vmatpush.msra.mxu0 0.0
        %760 = vmatpush.msra.mxu0 0.0
        %761 = vmatpush.msra.mxu0 0.0
        %762 = vmatpush.msra.mxu0 0.0
        %763 = vmatpush.msra.mxu0 0.0
        %764 = vmatpush.msra.mxu0 0.0
        %765 = vmatpush.msra.mxu0 0.0
        %766 = vmatpush.msra.mxu0 0.0
        %v767 = vand.u32 %v674, 4294901760
        %768 = vmatpush.msra.mxu0 %v767
        %v769 = vand.u32 %v670, 4294901760
        %770 = vmatpush.msra.mxu0 %v769
        %v771 = vand.u32 %v666, 4294901760
        %772 = vmatpush.msra.mxu0 %v771
        %v773 = vand.u32 %v662, 4294901760
        %774 = vmatpush.msra.mxu0 %v773
        %v775 = vand.u32 %v658, 4294901760
        %776 = vmatpush.msra.mxu0 %v775
        %v777 = vand.u32 %v654, 4294901760
        %778 = vmatpush.msra.mxu0 %v777
        %v779 = vand.u32 %v650, 4294901760
        %780 = vmatpush.msra.mxu0 %v779
        %v781 = vand.u32 %v646, 4294901760
        %782 = vmatpush.msra.mxu0 %v781
        %v783 = vand.u32 %v736, 4294901760
        %v784 = vsub.f32 %v736, %v783
        %v785 = vand.u32 %v784, 4294901760
        %v786 = vsub.f32 %v784, %v785
        %v787 = vand.u32 %v786, 4294901760
        %788 = vmatmul.f32.gmra.mxu0 %v787
        %v789 = vpop.f32.mrf.mxu0
        %v790 = vadd.f32 %v697, %v789
        %v791 = vand.u32 %v739, 4294901760
        %v792 = vsub.f32 %v739, %v791
        %v793 = vand.u32 %v792, 4294901760
        %v794 = vsub.f32 %v792, %v793
        %v795 = vand.u32 %v794, 4294901760
        %796 = vmatmul.f32.gmra.mxu0 %v795
        %v797 = vpop.f32.mrf.mxu0
        %v798 = vadd.f32 %v702, %v797
        %v799 = vand.u32 %v742, 4294901760
        %v800 = vsub.f32 %v742, %v799
        %v801 = vand.u32 %v800, 4294901760
        %v802 = vsub.f32 %v800, %v801
        %v803 = vand.u32 %v802, 4294901760
        %804 = vmatmul.f32.gmra.mxu0 %v803
        %v805 = vpop.f32.mrf.mxu0
        %v806 = vadd.f32 %v707, %v805
        %v807 = vand.u32 %v745, 4294901760
        %v808 = vsub.f32 %v745, %v807
        %v809 = vand.u32 %v808, 4294901760
        %v810 = vsub.f32 %v808, %v809
        %v811 = vand.u32 %v810, 4294901760
        %812 = vmatmul.f32.gmra.mxu0 %v811
        %v813 = vpop.f32.mrf.mxu0
        %v814 = vadd.f32 %v712, %v813
        %v815 = vand.u32 %v748, 4294901760
        %v816 = vsub.f32 %v748, %v815
        %v817 = vand.u32 %v816, 4294901760
        %v818 = vsub.f32 %v816, %v817
        %v819 = vand.u32 %v818, 4294901760
        %820 = vmatmul.f32.gmra.mxu0 %v819
        %v821 = vpop.f32.mrf.mxu0
        %v822 = vadd.f32 %v717, %v821
        %v823 = vand.u32 %v751, 4294901760
        %v824 = vsub.f32 %v751, %v823
        %v825 = vand.u32 %v824, 4294901760
        %v826 = vsub.f32 %v824, %v825
        %v827 = vand.u32 %v826, 4294901760
        %828 = vmatmul.f32.gmra.mxu0 %v827
        %v829 = vpop.f32.mrf.mxu0
        %v830 = vadd.f32 %v722, %v829
        %v831 = vand.u32 %v754, 4294901760
        %v832 = vsub.f32 %v754, %v831
        %v833 = vand.u32 %v832, 4294901760
        %v834 = vsub.f32 %v832, %v833
        %v835 = vand.u32 %v834, 4294901760
        %836 = vmatmul.f32.gmra.mxu0 %v835
        %v837 = vpop.f32.mrf.mxu0
        %v838 = vadd.f32 %v727, %v837
        %v839 = vand.u32 %v757, 4294901760
        %v840 = vsub.f32 %v757, %v839
        %v841 = vand.u32 %v840, 4294901760
        %v842 = vsub.f32 %v840, %v841
        %v843 = vand.u32 %v842, 4294901760
        %844 = vmatmul.f32.gmra.mxu0 %v843
        %v845 = vpop.f32.mrf.mxu0
        %v846 = vadd.f32 %v732, %v845
        %847 = vdwg.mxu0
        %848 = vmatpush.msra.mxu0 0.0
        %849 = vmatpush.msra.mxu0 0.0
        %850 = vmatpush.msra.mxu0 0.0
        %851 = vmatpush.msra.mxu0 0.0
        %852 = vmatpush.msra.mxu0 0.0
        %853 = vmatpush.msra.mxu0 0.0
        %854 = vmatpush.msra.mxu0 0.0
        %855 = vmatpush.msra.mxu0 0.0
        %v856 = vand.u32 %v674, 4294901760
        %v857 = vsub.f32 %v674, %v856
        %v858 = vand.u32 %v857, 4294901760
        %v859 = vsub.f32 %v857, %v858
        %v860 = vand.u32 %v859, 4294901760
        %861 = vmatpush.msra.mxu0 %v860
        %v862 = vand.u32 %v670, 4294901760
        %v863 = vsub.f32 %v670, %v862
        %v864 = vand.u32 %v863, 4294901760
        %v865 = vsub.f32 %v863, %v864
        %v866 = vand.u32 %v865, 4294901760
        %867 = vmatpush.msra.mxu0 %v866
        %v868 = vand.u32 %v666, 4294901760
        %v869 = vsub.f32 %v666, %v868
        %v870 = vand.u32 %v869, 4294901760
        %v871 = vsub.f32 %v869, %v870
        %v872 = vand.u32 %v871, 4294901760
        %873 = vmatpush.msra.mxu0 %v872
        %v874 = vand.u32 %v662, 4294901760
        %v875 = vsub.f32 %v662, %v874
        %v876 = vand.u32 %v875, 4294901760
        %v877 = vsub.f32 %v875, %v876
        %v878 = vand.u32 %v877, 4294901760
        %879 = vmatpush.msra.mxu0 %v878
        %v880 = vand.u32 %v658, 4294901760
        %v881 = vsub.f32 %v658, %v880
        %v882 = vand.u32 %v881, 4294901760
        %v883 = vsub.f32 %v881, %v882
        %v884 = vand.u32 %v883, 4294901760
        %885 = vmatpush.msra.mxu0 %v884
        %v886 = vand.u32 %v654, 4294901760
        %v887 = vsub.f32 %v654, %v886
        %v888 = vand.u32 %v887, 4294901760
        %v889 = vsub.f32 %v887, %v888
        %v890 = vand.u32 %v889, 4294901760
        %891 = vmatpush.msra.mxu0 %v890
        %v892 = vand.u32 %v650, 4294901760
        %v893 = vsub.f32 %v650, %v892
        %v894 = vand.u32 %v893, 4294901760
        %v895 = vsub.f32 %v893, %v894
        %v896 = vand.u32 %v895, 4294901760
        %897 = vmatpush.msra.mxu0 %v896
        %v898 = vand.u32 %v646, 4294901760
        %v899 = vsub.f32 %v646, %v898
        %v900 = vand.u32 %v899, 4294901760
        %v901 = vsub.f32 %v899, %v900
        %v902 = vand.u32 %v901, 4294901760
        %903 = vmatpush.msra.mxu0 %v902
        %v904 = vand.u32 %v736, 4294901760
        %905 = vmatmul.f32.gmra.mxu0 %v904
        %v906 = vpop.f32.mrf.mxu0
        %v907 = vadd.f32 %v790, %v906
        %v908 = vand.u32 %v739, 4294901760
        %909 = vmatmul.f32.gmra.mxu0 %v908
        %v910 = vpop.f32.mrf.mxu0
        %v911 = vadd.f32 %v798, %v910
        %v912 = vand.u32 %v742, 4294901760
        %913 = vmatmul.f32.gmra.mxu0 %v912
        %v914 = vpop.f32.mrf.mxu0
        %v915 = vadd.f32 %v806, %v914
        %v916 = vand.u32 %v745, 4294901760
        %917 = vmatmul.f32.gmra.mxu0 %v916
        %v918 = vpop.f32.mrf.mxu0
        %v919 = vadd.f32 %v814, %v918
        %v920 = vand.u32 %v748, 4294901760
        %921 = vmatmul.f32.gmra.mxu0 %v920
        %v922 = vpop.f32.mrf.mxu0
        %v923 = vadd.f32 %v822, %v922
        %v924 = vand.u32 %v751, 4294901760
        %925 = vmatmul.f32.gmra.mxu0 %v924
        %v926 = vpop.f32.mrf.mxu0
        %v927 = vadd.f32 %v830, %v926
        %v928 = vand.u32 %v754, 4294901760
        %929 = vmatmul.f32.gmra.mxu0 %v928
        %v930 = vpop.f32.mrf.mxu0
        %v931 = vadd.f32 %v838, %v930
        %v932 = vand.u32 %v757, 4294901760
        %933 = vmatmul.f32.gmra.mxu0 %v932
        %v934 = vpop.f32.mrf.mxu0
        %v935 = vadd.f32 %v846, %v934
        %936 = vdwg.mxu0
        %937 = vmatpush.msra.mxu0 0.0
        %938 = vmatpush.msra.mxu0 0.0
        %939 = vmatpush.msra.mxu0 0.0
        %940 = vmatpush.msra.mxu0 0.0
        %941 = vmatpush.msra.mxu0 0.0
        %942 = vmatpush.msra.mxu0 0.0
        %943 = vmatpush.msra.mxu0 0.0
        %944 = vmatpush.msra.mxu0 0.0
        %v945 = vand.u32 %v674, 4294901760
        %v946 = vsub.f32 %v674, %v945
        %947 = vmatpush.msra.mxu0 %v946
        %v948 = vand.u32 %v670, 4294901760
        %v949 = vsub.f32 %v670, %v948
        %950 = vmatpush.msra.mxu0 %v949
        %v951 = vand.u32 %v666, 4294901760
        %v952 = vsub.f32 %v666, %v951
        %953 = vmatpush.msra.mxu0 %v952
        %v954 = vand.u32 %v662, 4294901760
        %v955 = vsub.f32 %v662, %v954
        %956 = vmatpush.msra.mxu0 %v955
        %v957 = vand.u32 %v658, 4294901760
        %v958 = vsub.f32 %v658, %v957
        %959 = vmatpush.msra.mxu0 %v958
        %v960 = vand.u32 %v654, 4294901760
        %v961 = vsub.f32 %v654, %v960
        %962 = vmatpush.msra.mxu0 %v961
        %v963 = vand.u32 %v650, 4294901760
        %v964 = vsub.f32 %v650, %v963
        %965 = vmatpush.msra.mxu0 %v964
        %v966 = vand.u32 %v646, 4294901760
        %v967 = vsub.f32 %v646, %v966
        %968 = vmatpush.msra.mxu0 %v967
        %v969 = vand.u32 %v736, 4294901760
        %v970 = vsub.f32 %v736, %v969
        %971 = vmatmul.f32.gmra.mxu0 %v970
        %v972 = vpop.f32.mrf.mxu0
        %v973 = vadd.f32 %v907, %v972
        %v974 = vand.u32 %v739, 4294901760
        %v975 = vsub.f32 %v739, %v974
        %976 = vmatmul.f32.gmra.mxu0 %v975
        %v977 = vpop.f32.mrf.mxu0
        %v978 = vadd.f32 %v911, %v977
        %v979 = vand.u32 %v742, 4294901760
        %v980 = vsub.f32 %v742, %v979
        %981 = vmatmul.f32.gmra.mxu0 %v980
        %v982 = vpop.f32.mrf.mxu0
        %v983 = vadd.f32 %v915, %v982
        %v984 = vand.u32 %v745, 4294901760
        %v985 = vsub.f32 %v745, %v984
        %986 = vmatmul.f32.gmra.mxu0 %v985
        %v987 = vpop.f32.mrf.mxu0
        %v988 = vadd.f32 %v919, %v987
        %v989 = vand.u32 %v748, 4294901760
        %v990 = vsub.f32 %v748, %v989
        %991 = vmatmul.f32.gmra.mxu0 %v990
        %v992 = vpop.f32.mrf.mxu0
        %v993 = vadd.f32 %v923, %v992
        %v994 = vand.u32 %v751, 4294901760
        %v995 = vsub.f32 %v751, %v994
        %996 = vmatmul.f32.gmra.mxu0 %v995
        %v997 = vpop.f32.mrf.mxu0
        %v998 = vadd.f32 %v927, %v997
        %v999 = vand.u32 %v754, 4294901760
        %v1000 = vsub.f32 %v754, %v999
        %1001 = vmatmul.f32.gmra.mxu0 %v1000
        %v1002 = vpop.f32.mrf.mxu0
        %v1003 = vadd.f32 %v931, %v1002
        %v1004 = vand.u32 %v757, 4294901760
        %v1005 = vsub.f32 %v757, %v1004
        %1006 = vmatmul.f32.gmra.mxu0 %v1005
        %v1007 = vpop.f32.mrf.mxu0
        %v1008 = vadd.f32 %v935, %v1007
        %1009 = vdwg.mxu0
        %1010 = vmatpush.msra.mxu0 0.0
        %1011 = vmatpush.msra.mxu0 0.0
        %1012 = vmatpush.msra.mxu0 0.0
        %1013 = vmatpush.msra.mxu0 0.0
        %1014 = vmatpush.msra.mxu0 0.0
        %1015 = vmatpush.msra.mxu0 0.0
        %1016 = vmatpush.msra.mxu0 0.0
        %1017 = vmatpush.msra.mxu0 0.0
        %v1018 = vand.u32 %v674, 4294901760
        %1019 = vmatpush.msra.mxu0 %v1018
        %v1020 = vand.u32 %v670, 4294901760
        %1021 = vmatpush.msra.mxu0 %v1020
        %v1022 = vand.u32 %v666, 4294901760
        %1023 = vmatpush.msra.mxu0 %v1022
        %v1024 = vand.u32 %v662, 4294901760
        %1025 = vmatpush.msra.mxu0 %v1024
        %v1026 = vand.u32 %v658, 4294901760
        %1027 = vmatpush.msra.mxu0 %v1026
        %v1028 = vand.u32 %v654, 4294901760
        %1029 = vmatpush.msra.mxu0 %v1028
        %v1030 = vand.u32 %v650, 4294901760
        %1031 = vmatpush.msra.mxu0 %v1030
        %v1032 = vand.u32 %v646, 4294901760
        %1033 = vmatpush.msra.mxu0 %v1032
        %v1034 = vand.u32 %v736, 4294901760
        %v1035 = vsub.f32 %v736, %v1034
        %v1036 = vand.u32 %v1035, 4294901760
        %1037 = vmatmul.f32.gmra.mxu0 %v1036
        %v1038 = vpop.f32.mrf.mxu0
        %v1039 = vadd.f32 %v973, %v1038
        %v1040 = vand.u32 %v739, 4294901760
        %v1041 = vsub.f32 %v739, %v1040
        %v1042 = vand.u32 %v1041, 4294901760
        %1043 = vmatmul.f32.gmra.mxu0 %v1042
        %v1044 = vpop.f32.mrf.mxu0
        %v1045 = vadd.f32 %v978, %v1044
        %v1046 = vand.u32 %v742, 4294901760
        %v1047 = vsub.f32 %v742, %v1046
        %v1048 = vand.u32 %v1047, 4294901760
        %1049 = vmatmul.f32.gmra.mxu0 %v1048
        %v1050 = vpop.f32.mrf.mxu0
        %v1051 = vadd.f32 %v983, %v1050
        %v1052 = vand.u32 %v745, 4294901760
        %v1053 = vsub.f32 %v745, %v1052
        %v1054 = vand.u32 %v1053, 4294901760
        %1055 = vmatmul.f32.gmra.mxu0 %v1054
        %v1056 = vpop.f32.mrf.mxu0
        %v1057 = vadd.f32 %v988, %v1056
        %v1058 = vand.u32 %v748, 4294901760
        %v1059 = vsub.f32 %v748, %v1058
        %v1060 = vand.u32 %v1059, 4294901760
        %1061 = vmatmul.f32.gmra.mxu0 %v1060
        %v1062 = vpop.f32.mrf.mxu0
        %v1063 = vadd.f32 %v993, %v1062
        %v1064 = vand.u32 %v751, 4294901760
        %v1065 = vsub.f32 %v751, %v1064
        %v1066 = vand.u32 %v1065, 4294901760
        %1067 = vmatmul.f32.gmra.mxu0 %v1066
        %v1068 = vpop.f32.mrf.mxu0
        %v1069 = vadd.f32 %v998, %v1068
        %v1070 = vand.u32 %v754, 4294901760
        %v1071 = vsub.f32 %v754, %v1070
        %v1072 = vand.u32 %v1071, 4294901760
        %1073 = vmatmul.f32.gmra.mxu0 %v1072
        %v1074 = vpop.f32.mrf.mxu0
        %v1075 = vadd.f32 %v1003, %v1074
        %v1076 = vand.u32 %v757, 4294901760
        %v1077 = vsub.f32 %v757, %v1076
        %v1078 = vand.u32 %v1077, 4294901760
        %1079 = vmatmul.f32.gmra.mxu0 %v1078
        %v1080 = vpop.f32.mrf.mxu0
        %v1081 = vadd.f32 %v1008, %v1080
        %1082 = vdwg.mxu0
        %1083 = vmatpush.msra.mxu0 0.0
        %1084 = vmatpush.msra.mxu0 0.0
        %1085 = vmatpush.msra.mxu0 0.0
        %1086 = vmatpush.msra.mxu0 0.0
        %1087 = vmatpush.msra.mxu0 0.0
        %1088 = vmatpush.msra.mxu0 0.0
        %1089 = vmatpush.msra.mxu0 0.0
        %1090 = vmatpush.msra.mxu0 0.0
        %v1091 = vand.u32 %v674, 4294901760
        %v1092 = vsub.f32 %v674, %v1091
        %v1093 = vand.u32 %v1092, 4294901760
        %1094 = vmatpush.msra.mxu0 %v1093
        %v1095 = vand.u32 %v670, 4294901760
        %v1096 = vsub.f32 %v670, %v1095
        %v1097 = vand.u32 %v1096, 4294901760
        %1098 = vmatpush.msra.mxu0 %v1097
        %v1099 = vand.u32 %v666, 4294901760
        %v1100 = vsub.f32 %v666, %v1099
        %v1101 = vand.u32 %v1100, 4294901760
        %1102 = vmatpush.msra.mxu0 %v1101
        %v1103 = vand.u32 %v662, 4294901760
        %v1104 = vsub.f32 %v662, %v1103
        %v1105 = vand.u32 %v1104, 4294901760
        %1106 = vmatpush.msra.mxu0 %v1105
        %v1107 = vand.u32 %v658, 4294901760
        %v1108 = vsub.f32 %v658, %v1107
        %v1109 = vand.u32 %v1108, 4294901760
        %1110 = vmatpush.msra.mxu0 %v1109
        %v1111 = vand.u32 %v654, 4294901760
        %v1112 = vsub.f32 %v654, %v1111
        %v1113 = vand.u32 %v1112, 4294901760
        %1114 = vmatpush.msra.mxu0 %v1113
        %v1115 = vand.u32 %v650, 4294901760
        %v1116 = vsub.f32 %v650, %v1115
        %v1117 = vand.u32 %v1116, 4294901760
        %1118 = vmatpush.msra.mxu0 %v1117
        %v1119 = vand.u32 %v646, 4294901760
        %v1120 = vsub.f32 %v646, %v1119
        %v1121 = vand.u32 %v1120, 4294901760
        %1122 = vmatpush.msra.mxu0 %v1121
        %v1123 = vand.u32 %v736, 4294901760
        %1124 = vmatmul.f32.gmra.mxu0 %v1123
        %v1125 = vpop.f32.mrf.mxu0
        %v1126 = vadd.f32 %v1039, %v1125
        %v1127 = vand.u32 %v739, 4294901760
        %1128 = vmatmul.f32.gmra.mxu0 %v1127
        %v1129 = vpop.f32.mrf.mxu0
        %v1130 = vadd.f32 %v1045, %v1129
        %v1131 = vand.u32 %v742, 4294901760
        %1132 = vmatmul.f32.gmra.mxu0 %v1131
        %v1133 = vpop.f32.mrf.mxu0
        %v1134 = vadd.f32 %v1051, %v1133
        %v1135 = vand.u32 %v745, 4294901760
        %1136 = vmatmul.f32.gmra.mxu0 %v1135
        %v1137 = vpop.f32.mrf.mxu0
        %v1138 = vadd.f32 %v1057, %v1137
        %v1139 = vand.u32 %v748, 4294901760
        %1140 = vmatmul.f32.gmra.mxu0 %v1139
        %v1141 = vpop.f32.mrf.mxu0
        %v1142 = vadd.f32 %v1063, %v1141
        %v1143 = vand.u32 %v751, 4294901760
        %1144 = vmatmul.f32.gmra.mxu0 %v1143
        %v1145 = vpop.f32.mrf.mxu0
        %v1146 = vadd.f32 %v1069, %v1145
        %v1147 = vand.u32 %v754, 4294901760
        %1148 = vmatmul.f32.gmra.mxu0 %v1147
        %v1149 = vpop.f32.mrf.mxu0
        %v1150 = vadd.f32 %v1075, %v1149
        %v1151 = vand.u32 %v757, 4294901760
        %1152 = vmatmul.f32.gmra.mxu0 %v1151
        %v1153 = vpop.f32.mrf.mxu0
        %v1154 = vadd.f32 %v1081, %v1153
        %1155 = vdwg.mxu0
        %1156 = vmatpush.msra.mxu0 0.0
        %1157 = vmatpush.msra.mxu0 0.0
        %1158 = vmatpush.msra.mxu0 0.0
        %1159 = vmatpush.msra.mxu0 0.0
        %1160 = vmatpush.msra.mxu0 0.0
        %1161 = vmatpush.msra.mxu0 0.0
        %1162 = vmatpush.msra.mxu0 0.0
        %1163 = vmatpush.msra.mxu0 0.0
        %v1164 = vand.u32 %v674, 4294901760
        %1165 = vmatpush.msra.mxu0 %v1164
        %v1166 = vand.u32 %v670, 4294901760
        %1167 = vmatpush.msra.mxu0 %v1166
        %v1168 = vand.u32 %v666, 4294901760
        %1169 = vmatpush.msra.mxu0 %v1168
        %v1170 = vand.u32 %v662, 4294901760
        %1171 = vmatpush.msra.mxu0 %v1170
        %v1172 = vand.u32 %v658, 4294901760
        %1173 = vmatpush.msra.mxu0 %v1172
        %v1174 = vand.u32 %v654, 4294901760
        %1175 = vmatpush.msra.mxu0 %v1174
        %v1176 = vand.u32 %v650, 4294901760
        %1177 = vmatpush.msra.mxu0 %v1176
        %v1178 = vand.u32 %v646, 4294901760
        %1179 = vmatpush.msra.mxu0 %v1178
        %v1180 = vand.u32 %v736, 4294901760
        %1181 = vmatmul.f32.gmra.mxu0 %v1180
        %v1182 = vpop.f32.mrf.mxu0
        %v1183 = vadd.f32 %v1126, %v1182
        %v1184 = vand.u32 %v739, 4294901760
        %1185 = vmatmul.f32.gmra.mxu0 %v1184
        %v1186 = vpop.f32.mrf.mxu0
        %v1187 = vadd.f32 %v1130, %v1186
        %v1188 = vand.u32 %v742, 4294901760
        %1189 = vmatmul.f32.gmra.mxu0 %v1188
        %v1190 = vpop.f32.mrf.mxu0
        %v1191 = vadd.f32 %v1134, %v1190
        %v1192 = vand.u32 %v745, 4294901760
        %1193 = vmatmul.f32.gmra.mxu0 %v1192
        %v1194 = vpop.f32.mrf.mxu0
        %v1195 = vadd.f32 %v1138, %v1194
        %v1196 = vand.u32 %v748, 4294901760
        %1197 = vmatmul.f32.gmra.mxu0 %v1196
        %v1198 = vpop.f32.mrf.mxu0
        %v1199 = vadd.f32 %v1142, %v1198
        %v1200 = vand.u32 %v751, 4294901760
        %1201 = vmatmul.f32.gmra.mxu0 %v1200
        %v1202 = vpop.f32.mrf.mxu0
        %v1203 = vadd.f32 %v1146, %v1202
        %v1204 = vand.u32 %v754, 4294901760
        %1205 = vmatmul.f32.gmra.mxu0 %v1204
        %v1206 = vpop.f32.mrf.mxu0
        %v1207 = vadd.f32 %v1150, %v1206
        %v1208 = vand.u32 %v757, 4294901760
        %1209 = vmatmul.f32.gmra.mxu0 %v1208
        %v1210 = vpop.f32.mrf.mxu0
        %v1211 = vadd.f32 %v1154, %v1210
        %1212 = vdwg.mxu0
        %1213 = vmatpush.msra.mxu0 0.0
        %1214 = vmatpush.msra.mxu0 0.0
        %1215 = vmatpush.msra.mxu0 0.0
        %1216 = vmatpush.msra.mxu0 0.0
        %1217 = vmatpush.msra.mxu0 0.0
        %1218 = vmatpush.msra.mxu0 0.0
        %1219 = vmatpush.msra.mxu0 0.0
        %1220 = vmatpush.msra.mxu0 0.0
        %v1221 = vand.u32 %v675, 4294901760
        %1222 = vmatpush.msra.mxu0 %v1221
        %v1223 = vand.u32 %v671, 4294901760
        %1224 = vmatpush.msra.mxu0 %v1223
        %v1225 = vand.u32 %v667, 4294901760
        %1226 = vmatpush.msra.mxu0 %v1225
        %v1227 = vand.u32 %v663, 4294901760
        %1228 = vmatpush.msra.mxu0 %v1227
        %v1229 = vand.u32 %v659, 4294901760
        %1230 = vmatpush.msra.mxu0 %v1229
        %v1231 = vand.u32 %v655, 4294901760
        %1232 = vmatpush.msra.mxu0 %v1231
        %v1233 = vand.u32 %v651, 4294901760
        %1234 = vmatpush.msra.mxu0 %v1233
        %v1235 = vand.u32 %v647, 4294901760
        %1236 = vmatpush.msra.mxu0 %v1235
        %v1237 = vand.u32 %v736, 4294901760
        %v1238 = vsub.f32 %v736, %v1237
        %v1239 = vand.u32 %v1238, 4294901760
        %v1240 = vsub.f32 %v1238, %v1239
        %v1241 = vand.u32 %v1240, 4294901760
        %1242 = vmatmul.f32.gmra.mxu0 %v1241
        %v1243 = vpop.f32.mrf.mxu0
        %v1244 = vadd.f32 %v697, %v1243
        %v1245 = vand.u32 %v739, 4294901760
        %v1246 = vsub.f32 %v739, %v1245
        %v1247 = vand.u32 %v1246, 4294901760
        %v1248 = vsub.f32 %v1246, %v1247
        %v1249 = vand.u32 %v1248, 4294901760
        %1250 = vmatmul.f32.gmra.mxu0 %v1249
        %v1251 = vpop.f32.mrf.mxu0
        %v1252 = vadd.f32 %v702, %v1251
        %v1253 = vand.u32 %v742, 4294901760
        %v1254 = vsub.f32 %v742, %v1253
        %v1255 = vand.u32 %v1254, 4294901760
        %v1256 = vsub.f32 %v1254, %v1255
        %v1257 = vand.u32 %v1256, 4294901760
        %1258 = vmatmul.f32.gmra.mxu0 %v1257
        %v1259 = vpop.f32.mrf.mxu0
        %v1260 = vadd.f32 %v707, %v1259
        %v1261 = vand.u32 %v745, 4294901760
        %v1262 = vsub.f32 %v745, %v1261
        %v1263 = vand.u32 %v1262, 4294901760
        %v1264 = vsub.f32 %v1262, %v1263
        %v1265 = vand.u32 %v1264, 4294901760
        %1266 = vmatmul.f32.gmra.mxu0 %v1265
        %v1267 = vpop.f32.mrf.mxu0
        %v1268 = vadd.f32 %v712, %v1267
        %v1269 = vand.u32 %v748, 4294901760
        %v1270 = vsub.f32 %v748, %v1269
        %v1271 = vand.u32 %v1270, 4294901760
        %v1272 = vsub.f32 %v1270, %v1271
        %v1273 = vand.u32 %v1272, 4294901760
        %1274 = vmatmul.f32.gmra.mxu0 %v1273
        %v1275 = vpop.f32.mrf.mxu0
        %v1276 = vadd.f32 %v717, %v1275
        %v1277 = vand.u32 %v751, 4294901760
        %v1278 = vsub.f32 %v751, %v1277
        %v1279 = vand.u32 %v1278, 4294901760
        %v1280 = vsub.f32 %v1278, %v1279
        %v1281 = vand.u32 %v1280, 4294901760
        %1282 = vmatmul.f32.gmra.mxu0 %v1281
        %v1283 = vpop.f32.mrf.mxu0
        %v1284 = vadd.f32 %v722, %v1283
        %v1285 = vand.u32 %v754, 4294901760
        %v1286 = vsub.f32 %v754, %v1285
        %v1287 = vand.u32 %v1286, 4294901760
        %v1288 = vsub.f32 %v1286, %v1287
        %v1289 = vand.u32 %v1288, 4294901760
        %1290 = vmatmul.f32.gmra.mxu0 %v1289
        %v1291 = vpop.f32.mrf.mxu0
        %v1292 = vadd.f32 %v727, %v1291
        %v1293 = vand.u32 %v757, 4294901760
        %v1294 = vsub.f32 %v757, %v1293
        %v1295 = vand.u32 %v1294, 4294901760
        %v1296 = vsub.f32 %v1294, %v1295
        %v1297 = vand.u32 %v1296, 4294901760
        %1298 = vmatmul.f32.gmra.mxu0 %v1297
        %v1299 = vpop.f32.mrf.mxu0
        %v1300 = vadd.f32 %v732, %v1299
        %1301 = vdwg.mxu0
        %1302 = vmatpush.msra.mxu0 0.0
        %1303 = vmatpush.msra.mxu0 0.0
        %1304 = vmatpush.msra.mxu0 0.0
        %1305 = vmatpush.msra.mxu0 0.0
        %1306 = vmatpush.msra.mxu0 0.0
        %1307 = vmatpush.msra.mxu0 0.0
        %1308 = vmatpush.msra.mxu0 0.0
        %1309 = vmatpush.msra.mxu0 0.0
        %v1310 = vand.u32 %v675, 4294901760
        %v1311 = vsub.f32 %v675, %v1310
        %v1312 = vand.u32 %v1311, 4294901760
        %v1313 = vsub.f32 %v1311, %v1312
        %v1314 = vand.u32 %v1313, 4294901760
        %1315 = vmatpush.msra.mxu0 %v1314
        %v1316 = vand.u32 %v671, 4294901760
        %v1317 = vsub.f32 %v671, %v1316
        %v1318 = vand.u32 %v1317, 4294901760
        %v1319 = vsub.f32 %v1317, %v1318
        %v1320 = vand.u32 %v1319, 4294901760
        %1321 = vmatpush.msra.mxu0 %v1320
        %v1322 = vand.u32 %v667, 4294901760
        %v1323 = vsub.f32 %v667, %v1322
        %v1324 = vand.u32 %v1323, 4294901760
        %v1325 = vsub.f32 %v1323, %v1324
        %v1326 = vand.u32 %v1325, 4294901760
        %1327 = vmatpush.msra.mxu0 %v1326
        %v1328 = vand.u32 %v663, 4294901760
        %v1329 = vsub.f32 %v663, %v1328
        %v1330 = vand.u32 %v1329, 4294901760
        %v1331 = vsub.f32 %v1329, %v1330
        %v1332 = vand.u32 %v1331, 4294901760
        %1333 = vmatpush.msra.mxu0 %v1332
        %v1334 = vand.u32 %v659, 4294901760
        %v1335 = vsub.f32 %v659, %v1334
        %v1336 = vand.u32 %v1335, 4294901760
        %v1337 = vsub.f32 %v1335, %v1336
        %v1338 = vand.u32 %v1337, 4294901760
        %1339 = vmatpush.msra.mxu0 %v1338
        %v1340 = vand.u32 %v655, 4294901760
        %v1341 = vsub.f32 %v655, %v1340
        %v1342 = vand.u32 %v1341, 4294901760
        %v1343 = vsub.f32 %v1341, %v1342
        %v1344 = vand.u32 %v1343, 4294901760
        %1345 = vmatpush.msra.mxu0 %v1344
        %v1346 = vand.u32 %v651, 4294901760
        %v1347 = vsub.f32 %v651, %v1346
        %v1348 = vand.u32 %v1347, 4294901760
        %v1349 = vsub.f32 %v1347, %v1348
        %v1350 = vand.u32 %v1349, 4294901760
        %1351 = vmatpush.msra.mxu0 %v1350
        %v1352 = vand.u32 %v647, 4294901760
        %v1353 = vsub.f32 %v647, %v1352
        %v1354 = vand.u32 %v1353, 4294901760
        %v1355 = vsub.f32 %v1353, %v1354
        %v1356 = vand.u32 %v1355, 4294901760
        %1357 = vmatpush.msra.mxu0 %v1356
        %v1358 = vand.u32 %v736, 4294901760
        %1359 = vmatmul.f32.gmra.mxu0 %v1358
        %v1360 = vpop.f32.mrf.mxu0
        %v1361 = vadd.f32 %v1244, %v1360
        %v1362 = vand.u32 %v739, 4294901760
        %1363 = vmatmul.f32.gmra.mxu0 %v1362
        %v1364 = vpop.f32.mrf.mxu0
        %v1365 = vadd.f32 %v1252, %v1364
        %v1366 = vand.u32 %v742, 4294901760
        %1367 = vmatmul.f32.gmra.mxu0 %v1366
        %v1368 = vpop.f32.mrf.mxu0
        %v1369 = vadd.f32 %v1260, %v1368
        %v1370 = vand.u32 %v745, 4294901760
        %1371 = vmatmul.f32.gmra.mxu0 %v1370
        %v1372 = vpop.f32.mrf.mxu0
        %v1373 = vadd.f32 %v1268, %v1372
        %v1374 = vand.u32 %v748, 4294901760
        %1375 = vmatmul.f32.gmra.mxu0 %v1374
        %v1376 = vpop.f32.mrf.mxu0
        %v1377 = vadd.f32 %v1276, %v1376
        %v1378 = vand.u32 %v751, 4294901760
        %1379 = vmatmul.f32.gmra.mxu0 %v1378
        %v1380 = vpop.f32.mrf.mxu0
        %v1381 = vadd.f32 %v1284, %v1380
        %v1382 = vand.u32 %v754, 4294901760
        %1383 = vmatmul.f32.gmra.mxu0 %v1382
        %v1384 = vpop.f32.mrf.mxu0
        %v1385 = vadd.f32 %v1292, %v1384
        %v1386 = vand.u32 %v757, 4294901760
        %1387 = vmatmul.f32.gmra.mxu0 %v1386
        %v1388 = vpop.f32.mrf.mxu0
        %v1389 = vadd.f32 %v1300, %v1388
        %1390 = vdwg.mxu0
        %1391 = vmatpush.msra.mxu0 0.0
        %1392 = vmatpush.msra.mxu0 0.0
        %1393 = vmatpush.msra.mxu0 0.0
        %1394 = vmatpush.msra.mxu0 0.0
        %1395 = vmatpush.msra.mxu0 0.0
        %1396 = vmatpush.msra.mxu0 0.0
        %1397 = vmatpush.msra.mxu0 0.0
        %1398 = vmatpush.msra.mxu0 0.0
        %v1399 = vand.u32 %v675, 4294901760
        %v1400 = vsub.f32 %v675, %v1399
        %1401 = vmatpush.msra.mxu0 %v1400
        %v1402 = vand.u32 %v671, 4294901760
        %v1403 = vsub.f32 %v671, %v1402
        %1404 = vmatpush.msra.mxu0 %v1403
        %v1405 = vand.u32 %v667, 4294901760
        %v1406 = vsub.f32 %v667, %v1405
        %1407 = vmatpush.msra.mxu0 %v1406
        %v1408 = vand.u32 %v663, 4294901760
        %v1409 = vsub.f32 %v663, %v1408
        %1410 = vmatpush.msra.mxu0 %v1409
        %v1411 = vand.u32 %v659, 4294901760
        %v1412 = vsub.f32 %v659, %v1411
        %1413 = vmatpush.msra.mxu0 %v1412
        %v1414 = vand.u32 %v655, 4294901760
        %v1415 = vsub.f32 %v655, %v1414
        %1416 = vmatpush.msra.mxu0 %v1415
        %v1417 = vand.u32 %v651, 4294901760
        %v1418 = vsub.f32 %v651, %v1417
        %1419 = vmatpush.msra.mxu0 %v1418
        %v1420 = vand.u32 %v647, 4294901760
        %v1421 = vsub.f32 %v647, %v1420
        %1422 = vmatpush.msra.mxu0 %v1421
        %v1423 = vand.u32 %v736, 4294901760
        %v1424 = vsub.f32 %v736, %v1423
        %1425 = vmatmul.f32.gmra.mxu0 %v1424
        %v1426 = vpop.f32.mrf.mxu0
        %v1427 = vadd.f32 %v1361, %v1426
        %v1428 = vand.u32 %v739, 4294901760
        %v1429 = vsub.f32 %v739, %v1428
        %1430 = vmatmul.f32.gmra.mxu0 %v1429
        %v1431 = vpop.f32.mrf.mxu0
        %v1432 = vadd.f32 %v1365, %v1431
        %v1433 = vand.u32 %v742, 4294901760
        %v1434 = vsub.f32 %v742, %v1433
        %1435 = vmatmul.f32.gmra.mxu0 %v1434
        %v1436 = vpop.f32.mrf.mxu0
        %v1437 = vadd.f32 %v1369, %v1436
        %v1438 = vand.u32 %v745, 4294901760
        %v1439 = vsub.f32 %v745, %v1438
        %1440 = vmatmul.f32.gmra.mxu0 %v1439
        %v1441 = vpop.f32.mrf.mxu0
        %v1442 = vadd.f32 %v1373, %v1441
        %v1443 = vand.u32 %v748, 4294901760
        %v1444 = vsub.f32 %v748, %v1443
        %1445 = vmatmul.f32.gmra.mxu0 %v1444
        %v1446 = vpop.f32.mrf.mxu0
        %v1447 = vadd.f32 %v1377, %v1446
        %v1448 = vand.u32 %v751, 4294901760
        %v1449 = vsub.f32 %v751, %v1448
        %1450 = vmatmul.f32.gmra.mxu0 %v1449
        %v1451 = vpop.f32.mrf.mxu0
        %v1452 = vadd.f32 %v1381, %v1451
        %v1453 = vand.u32 %v754, 4294901760
        %v1454 = vsub.f32 %v754, %v1453
        %1455 = vmatmul.f32.gmra.mxu0 %v1454
        %v1456 = vpop.f32.mrf.mxu0
        %v1457 = vadd.f32 %v1385, %v1456
        %v1458 = vand.u32 %v757, 4294901760
        %v1459 = vsub.f32 %v757, %v1458
        %1460 = vmatmul.f32.gmra.mxu0 %v1459
        %v1461 = vpop.f32.mrf.mxu0
        %v1462 = vadd.f32 %v1389, %v1461
        %1463 = vdwg.mxu0
        %1464 = vmatpush.msra.mxu0 0.0
        %1465 = vmatpush.msra.mxu0 0.0
        %1466 = vmatpush.msra.mxu0 0.0
        %1467 = vmatpush.msra.mxu0 0.0
        %1468 = vmatpush.msra.mxu0 0.0
        %1469 = vmatpush.msra.mxu0 0.0
        %1470 = vmatpush.msra.mxu0 0.0
        %1471 = vmatpush.msra.mxu0 0.0
        %v1472 = vand.u32 %v675, 4294901760
        %1473 = vmatpush.msra.mxu0 %v1472
        %v1474 = vand.u32 %v671, 4294901760
        %1475 = vmatpush.msra.mxu0 %v1474
        %v1476 = vand.u32 %v667, 4294901760
        %1477 = vmatpush.msra.mxu0 %v1476
        %v1478 = vand.u32 %v663, 4294901760
        %1479 = vmatpush.msra.mxu0 %v1478
        %v1480 = vand.u32 %v659, 4294901760
        %1481 = vmatpush.msra.mxu0 %v1480
        %v1482 = vand.u32 %v655, 4294901760
        %1483 = vmatpush.msra.mxu0 %v1482
        %v1484 = vand.u32 %v651, 4294901760
        %1485 = vmatpush.msra.mxu0 %v1484
        %v1486 = vand.u32 %v647, 4294901760
        %1487 = vmatpush.msra.mxu0 %v1486
        %v1488 = vand.u32 %v736, 4294901760
        %v1489 = vsub.f32 %v736, %v1488
        %v1490 = vand.u32 %v1489, 4294901760
        %1491 = vmatmul.f32.gmra.mxu0 %v1490
        %v1492 = vpop.f32.mrf.mxu0
        %v1493 = vadd.f32 %v1427, %v1492
        %v1494 = vand.u32 %v739, 4294901760
        %v1495 = vsub.f32 %v739, %v1494
        %v1496 = vand.u32 %v1495, 4294901760
        %1497 = vmatmul.f32.gmra.mxu0 %v1496
        %v1498 = vpop.f32.mrf.mxu0
        %v1499 = vadd.f32 %v1432, %v1498
        %v1500 = vand.u32 %v742, 4294901760
        %v1501 = vsub.f32 %v742, %v1500
        %v1502 = vand.u32 %v1501, 4294901760
        %1503 = vmatmul.f32.gmra.mxu0 %v1502
        %v1504 = vpop.f32.mrf.mxu0
        %v1505 = vadd.f32 %v1437, %v1504
        %v1506 = vand.u32 %v745, 4294901760
        %v1507 = vsub.f32 %v745, %v1506
        %v1508 = vand.u32 %v1507, 4294901760
        %1509 = vmatmul.f32.gmra.mxu0 %v1508
        %v1510 = vpop.f32.mrf.mxu0
        %v1511 = vadd.f32 %v1442, %v1510
        %v1512 = vand.u32 %v748, 4294901760
        %v1513 = vsub.f32 %v748, %v1512
        %v1514 = vand.u32 %v1513, 4294901760
        %1515 = vmatmul.f32.gmra.mxu0 %v1514
        %v1516 = vpop.f32.mrf.mxu0
        %v1517 = vadd.f32 %v1447, %v1516
        %v1518 = vand.u32 %v751, 4294901760
        %v1519 = vsub.f32 %v751, %v1518
        %v1520 = vand.u32 %v1519, 4294901760
        %1521 = vmatmul.f32.gmra.mxu0 %v1520
        %v1522 = vpop.f32.mrf.mxu0
        %v1523 = vadd.f32 %v1452, %v1522
        %v1524 = vand.u32 %v754, 4294901760
        %v1525 = vsub.f32 %v754, %v1524
        %v1526 = vand.u32 %v1525, 4294901760
        %1527 = vmatmul.f32.gmra.mxu0 %v1526
        %v1528 = vpop.f32.mrf.mxu0
        %v1529 = vadd.f32 %v1457, %v1528
        %v1530 = vand.u32 %v757, 4294901760
        %v1531 = vsub.f32 %v757, %v1530
        %v1532 = vand.u32 %v1531, 4294901760
        %1533 = vmatmul.f32.gmra.mxu0 %v1532
        %v1534 = vpop.f32.mrf.mxu0
        %v1535 = vadd.f32 %v1462, %v1534
        %1536 = vdwg.mxu0
        %1537 = vmatpush.msra.mxu0 0.0
        %1538 = vmatpush.msra.mxu0 0.0
        %1539 = vmatpush.msra.mxu0 0.0
        %1540 = vmatpush.msra.mxu0 0.0
        %1541 = vmatpush.msra.mxu0 0.0
        %1542 = vmatpush.msra.mxu0 0.0
        %1543 = vmatpush.msra.mxu0 0.0
        %1544 = vmatpush.msra.mxu0 0.0
        %v1545 = vand.u32 %v675, 4294901760
        %v1546 = vsub.f32 %v675, %v1545
        %v1547 = vand.u32 %v1546, 4294901760
        %1548 = vmatpush.msra.mxu0 %v1547
        %v1549 = vand.u32 %v671, 4294901760
        %v1550 = vsub.f32 %v671, %v1549
        %v1551 = vand.u32 %v1550, 4294901760
        %1552 = vmatpush.msra.mxu0 %v1551
        %v1553 = vand.u32 %v667, 4294901760
        %v1554 = vsub.f32 %v667, %v1553
        %v1555 = vand.u32 %v1554, 4294901760
        %1556 = vmatpush.msra.mxu0 %v1555
        %v1557 = vand.u32 %v663, 4294901760
        %v1558 = vsub.f32 %v663, %v1557
        %v1559 = vand.u32 %v1558, 4294901760
        %1560 = vmatpush.msra.mxu0 %v1559
        %v1561 = vand.u32 %v659, 4294901760
        %v1562 = vsub.f32 %v659, %v1561
        %v1563 = vand.u32 %v1562, 4294901760
        %1564 = vmatpush.msra.mxu0 %v1563
        %v1565 = vand.u32 %v655, 4294901760
        %v1566 = vsub.f32 %v655, %v1565
        %v1567 = vand.u32 %v1566, 4294901760
        %1568 = vmatpush.msra.mxu0 %v1567
        %v1569 = vand.u32 %v651, 4294901760
        %v1570 = vsub.f32 %v651, %v1569
        %v1571 = vand.u32 %v1570, 4294901760
        %1572 = vmatpush.msra.mxu0 %v1571
        %v1573 = vand.u32 %v647, 4294901760
        %v1574 = vsub.f32 %v647, %v1573
        %v1575 = vand.u32 %v1574, 4294901760
        %1576 = vmatpush.msra.mxu0 %v1575
        %v1577 = vand.u32 %v736, 4294901760
        %1578 = vmatmul.f32.gmra.mxu0 %v1577
        %v1579 = vpop.f32.mrf.mxu0
        %v1580 = vadd.f32 %v1493, %v1579
        %v1581 = vand.u32 %v739, 4294901760
        %1582 = vmatmul.f32.gmra.mxu0 %v1581
        %v1583 = vpop.f32.mrf.mxu0
        %v1584 = vadd.f32 %v1499, %v1583
        %v1585 = vand.u32 %v742, 4294901760
        %1586 = vmatmul.f32.gmra.mxu0 %v1585
        %v1587 = vpop.f32.mrf.mxu0
        %v1588 = vadd.f32 %v1505, %v1587
        %v1589 = vand.u32 %v745, 4294901760
        %1590 = vmatmul.f32.gmra.mxu0 %v1589
        %v1591 = vpop.f32.mrf.mxu0
        %v1592 = vadd.f32 %v1511, %v1591
        %v1593 = vand.u32 %v748, 4294901760
        %1594 = vmatmul.f32.gmra.mxu0 %v1593
        %v1595 = vpop.f32.mrf.mxu0
        %v1596 = vadd.f32 %v1517, %v1595
        %v1597 = vand.u32 %v751, 4294901760
        %1598 = vmatmul.f32.gmra.mxu0 %v1597
        %v1599 = vpop.f32.mrf.mxu0
        %v1600 = vadd.f32 %v1523, %v1599
        %v1601 = vand.u32 %v754, 4294901760
        %1602 = vmatmul.f32.gmra.mxu0 %v1601
        %v1603 = vpop.f32.mrf.mxu0
        %v1604 = vadd.f32 %v1529, %v1603
        %v1605 = vand.u32 %v757, 4294901760
        %1606 = vmatmul.f32.gmra.mxu0 %v1605
        %v1607 = vpop.f32.mrf.mxu0
        %v1608 = vadd.f32 %v1535, %v1607
        %1609 = vdwg.mxu0
        %1610 = vmatpush.msra.mxu0 0.0
        %1611 = vmatpush.msra.mxu0 0.0
        %1612 = vmatpush.msra.mxu0 0.0
        %1613 = vmatpush.msra.mxu0 0.0
        %1614 = vmatpush.msra.mxu0 0.0
        %1615 = vmatpush.msra.mxu0 0.0
        %1616 = vmatpush.msra.mxu0 0.0
        %1617 = vmatpush.msra.mxu0 0.0
        %v1618 = vand.u32 %v675, 4294901760
        %1619 = vmatpush.msra.mxu0 %v1618
        %v1620 = vand.u32 %v671, 4294901760
        %1621 = vmatpush.msra.mxu0 %v1620
        %v1622 = vand.u32 %v667, 4294901760
        %1623 = vmatpush.msra.mxu0 %v1622
        %v1624 = vand.u32 %v663, 4294901760
        %1625 = vmatpush.msra.mxu0 %v1624
        %v1626 = vand.u32 %v659, 4294901760
        %1627 = vmatpush.msra.mxu0 %v1626
        %v1628 = vand.u32 %v655, 4294901760
        %1629 = vmatpush.msra.mxu0 %v1628
        %v1630 = vand.u32 %v651, 4294901760
        %1631 = vmatpush.msra.mxu0 %v1630
        %v1632 = vand.u32 %v647, 4294901760
        %1633 = vmatpush.msra.mxu0 %v1632
        %v1634 = vand.u32 %v736, 4294901760
        %1635 = vmatmul.f32.gmra.mxu0 %v1634
        %v1636 = vpop.f32.mrf.mxu0
        %v1637 = vadd.f32 %v1580, %v1636
        %v1638 = vand.u32 %v739, 4294901760
        %1639 = vmatmul.f32.gmra.mxu0 %v1638
        %v1640 = vpop.f32.mrf.mxu0
        %v1641 = vadd.f32 %v1584, %v1640
        %v1642 = vand.u32 %v742, 4294901760
        %1643 = vmatmul.f32.gmra.mxu0 %v1642
        %v1644 = vpop.f32.mrf.mxu0
        %v1645 = vadd.f32 %v1588, %v1644
        %v1646 = vand.u32 %v745, 4294901760
        %1647 = vmatmul.f32.gmra.mxu0 %v1646
        %v1648 = vpop.f32.mrf.mxu0
        %v1649 = vadd.f32 %v1592, %v1648
        %v1650 = vand.u32 %v748, 4294901760
        %1651 = vmatmul.f32.gmra.mxu0 %v1650
        %v1652 = vpop.f32.mrf.mxu0
        %v1653 = vadd.f32 %v1596, %v1652
        %v1654 = vand.u32 %v751, 4294901760
        %1655 = vmatmul.f32.gmra.mxu0 %v1654
        %v1656 = vpop.f32.mrf.mxu0
        %v1657 = vadd.f32 %v1600, %v1656
        %v1658 = vand.u32 %v754, 4294901760
        %1659 = vmatmul.f32.gmra.mxu0 %v1658
        %v1660 = vpop.f32.mrf.mxu0
        %v1661 = vadd.f32 %v1604, %v1660
        %v1662 = vand.u32 %v757, 4294901760
        %1663 = vmatmul.f32.gmra.mxu0 %v1662
        %v1664 = vpop.f32.mrf.mxu0
        %v1665 = vadd.f32 %v1608, %v1664
        %1666 = vdwg.mxu0
        %1667 = vmatpush.msra.mxu0 0.0
        %1668 = vmatpush.msra.mxu0 0.0
        %1669 = vmatpush.msra.mxu0 0.0
        %1670 = vmatpush.msra.mxu0 0.0
        %1671 = vmatpush.msra.mxu0 0.0
        %1672 = vmatpush.msra.mxu0 0.0
        %1673 = vmatpush.msra.mxu0 0.0
        %1674 = vmatpush.msra.mxu0 0.0
        %v1675 = vand.u32 %v676, 4294901760
        %1676 = vmatpush.msra.mxu0 %v1675
        %v1677 = vand.u32 %v672, 4294901760
        %1678 = vmatpush.msra.mxu0 %v1677
        %v1679 = vand.u32 %v668, 4294901760
        %1680 = vmatpush.msra.mxu0 %v1679
        %v1681 = vand.u32 %v664, 4294901760
        %1682 = vmatpush.msra.mxu0 %v1681
        %v1683 = vand.u32 %v660, 4294901760
        %1684 = vmatpush.msra.mxu0 %v1683
        %v1685 = vand.u32 %v656, 4294901760
        %1686 = vmatpush.msra.mxu0 %v1685
        %v1687 = vand.u32 %v652, 4294901760
        %1688 = vmatpush.msra.mxu0 %v1687
        %v1689 = vand.u32 %v648, 4294901760
        %1690 = vmatpush.msra.mxu0 %v1689
        %v1691 = vand.u32 %v736, 4294901760
        %v1692 = vsub.f32 %v736, %v1691
        %v1693 = vand.u32 %v1692, 4294901760
        %v1694 = vsub.f32 %v1692, %v1693
        %v1695 = vand.u32 %v1694, 4294901760
        %1696 = vmatmul.f32.gmra.mxu0 %v1695
        %v1697 = vpop.f32.mrf.mxu0
        %v1698 = vadd.f32 %v697, %v1697
        %v1699 = vand.u32 %v739, 4294901760
        %v1700 = vsub.f32 %v739, %v1699
        %v1701 = vand.u32 %v1700, 4294901760
        %v1702 = vsub.f32 %v1700, %v1701
        %v1703 = vand.u32 %v1702, 4294901760
        %1704 = vmatmul.f32.gmra.mxu0 %v1703
        %v1705 = vpop.f32.mrf.mxu0
        %v1706 = vadd.f32 %v702, %v1705
        %v1707 = vand.u32 %v742, 4294901760
        %v1708 = vsub.f32 %v742, %v1707
        %v1709 = vand.u32 %v1708, 4294901760
        %v1710 = vsub.f32 %v1708, %v1709
        %v1711 = vand.u32 %v1710, 4294901760
        %1712 = vmatmul.f32.gmra.mxu0 %v1711
        %v1713 = vpop.f32.mrf.mxu0
        %v1714 = vadd.f32 %v707, %v1713
        %v1715 = vand.u32 %v745, 4294901760
        %v1716 = vsub.f32 %v745, %v1715
        %v1717 = vand.u32 %v1716, 4294901760
        %v1718 = vsub.f32 %v1716, %v1717
        %v1719 = vand.u32 %v1718, 4294901760
        %1720 = vmatmul.f32.gmra.mxu0 %v1719
        %v1721 = vpop.f32.mrf.mxu0
        %v1722 = vadd.f32 %v712, %v1721
        %v1723 = vand.u32 %v748, 4294901760
        %v1724 = vsub.f32 %v748, %v1723
        %v1725 = vand.u32 %v1724, 4294901760
        %v1726 = vsub.f32 %v1724, %v1725
        %v1727 = vand.u32 %v1726, 4294901760
        %1728 = vmatmul.f32.gmra.mxu0 %v1727
        %v1729 = vpop.f32.mrf.mxu0
        %v1730 = vadd.f32 %v717, %v1729
        %v1731 = vand.u32 %v751, 4294901760
        %v1732 = vsub.f32 %v751, %v1731
        %v1733 = vand.u32 %v1732, 4294901760
        %v1734 = vsub.f32 %v1732, %v1733
        %v1735 = vand.u32 %v1734, 4294901760
        %1736 = vmatmul.f32.gmra.mxu0 %v1735
        %v1737 = vpop.f32.mrf.mxu0
        %v1738 = vadd.f32 %v722, %v1737
        %v1739 = vand.u32 %v754, 4294901760
        %v1740 = vsub.f32 %v754, %v1739
        %v1741 = vand.u32 %v1740, 4294901760
        %v1742 = vsub.f32 %v1740, %v1741
        %v1743 = vand.u32 %v1742, 4294901760
        %1744 = vmatmul.f32.gmra.mxu0 %v1743
        %v1745 = vpop.f32.mrf.mxu0
        %v1746 = vadd.f32 %v727, %v1745
        %v1747 = vand.u32 %v757, 4294901760
        %v1748 = vsub.f32 %v757, %v1747
        %v1749 = vand.u32 %v1748, 4294901760
        %v1750 = vsub.f32 %v1748, %v1749
        %v1751 = vand.u32 %v1750, 4294901760
        %1752 = vmatmul.f32.gmra.mxu0 %v1751
        %v1753 = vpop.f32.mrf.mxu0
        %v1754 = vadd.f32 %v732, %v1753
        %1755 = vdwg.mxu0
        %1756 = vmatpush.msra.mxu0 0.0
        %1757 = vmatpush.msra.mxu0 0.0
        %1758 = vmatpush.msra.mxu0 0.0
        %1759 = vmatpush.msra.mxu0 0.0
        %1760 = vmatpush.msra.mxu0 0.0
        %1761 = vmatpush.msra.mxu0 0.0
        %1762 = vmatpush.msra.mxu0 0.0
        %1763 = vmatpush.msra.mxu0 0.0
        %v1764 = vand.u32 %v676, 4294901760
        %v1765 = vsub.f32 %v676, %v1764
        %v1766 = vand.u32 %v1765, 4294901760
        %v1767 = vsub.f32 %v1765, %v1766
        %v1768 = vand.u32 %v1767, 4294901760
        %1769 = vmatpush.msra.mxu0 %v1768
        %v1770 = vand.u32 %v672, 4294901760
        %v1771 = vsub.f32 %v672, %v1770
        %v1772 = vand.u32 %v1771, 4294901760
        %v1773 = vsub.f32 %v1771, %v1772
        %v1774 = vand.u32 %v1773, 4294901760
        %1775 = vmatpush.msra.mxu0 %v1774
        %v1776 = vand.u32 %v668, 4294901760
        %v1777 = vsub.f32 %v668, %v1776
        %v1778 = vand.u32 %v1777, 4294901760
        %v1779 = vsub.f32 %v1777, %v1778
        %v1780 = vand.u32 %v1779, 4294901760
        %1781 = vmatpush.msra.mxu0 %v1780
        %v1782 = vand.u32 %v664, 4294901760
        %v1783 = vsub.f32 %v664, %v1782
        %v1784 = vand.u32 %v1783, 4294901760
        %v1785 = vsub.f32 %v1783, %v1784
        %v1786 = vand.u32 %v1785, 4294901760
        %1787 = vmatpush.msra.mxu0 %v1786
        %v1788 = vand.u32 %v660, 4294901760
        %v1789 = vsub.f32 %v660, %v1788
        %v1790 = vand.u32 %v1789, 4294901760
        %v1791 = vsub.f32 %v1789, %v1790
        %v1792 = vand.u32 %v1791, 4294901760
        %1793 = vmatpush.msra.mxu0 %v1792
        %v1794 = vand.u32 %v656, 4294901760
        %v1795 = vsub.f32 %v656, %v1794
        %v1796 = vand.u32 %v1795, 4294901760
        %v1797 = vsub.f32 %v1795, %v1796
        %v1798 = vand.u32 %v1797, 4294901760
        %1799 = vmatpush.msra.mxu0 %v1798
        %v1800 = vand.u32 %v652, 4294901760
        %v1801 = vsub.f32 %v652, %v1800
        %v1802 = vand.u32 %v1801, 4294901760
        %v1803 = vsub.f32 %v1801, %v1802
        %v1804 = vand.u32 %v1803, 4294901760
        %1805 = vmatpush.msra.mxu0 %v1804
        %v1806 = vand.u32 %v648, 4294901760
        %v1807 = vsub.f32 %v648, %v1806
        %v1808 = vand.u32 %v1807, 4294901760
        %v1809 = vsub.f32 %v1807, %v1808
        %v1810 = vand.u32 %v1809, 4294901760
        %1811 = vmatpush.msra.mxu0 %v1810
        %v1812 = vand.u32 %v736, 4294901760
        %1813 = vmatmul.f32.gmra.mxu0 %v1812
        %v1814 = vpop.f32.mrf.mxu0
        %v1815 = vadd.f32 %v1698, %v1814
        %v1816 = vand.u32 %v739, 4294901760
        %1817 = vmatmul.f32.gmra.mxu0 %v1816
        %v1818 = vpop.f32.mrf.mxu0
        %v1819 = vadd.f32 %v1706, %v1818
        %v1820 = vand.u32 %v742, 4294901760
        %1821 = vmatmul.f32.gmra.mxu0 %v1820
        %v1822 = vpop.f32.mrf.mxu0
        %v1823 = vadd.f32 %v1714, %v1822
        %v1824 = vand.u32 %v745, 4294901760
        %1825 = vmatmul.f32.gmra.mxu0 %v1824
        %v1826 = vpop.f32.mrf.mxu0
        %v1827 = vadd.f32 %v1722, %v1826
        %v1828 = vand.u32 %v748, 4294901760
        %1829 = vmatmul.f32.gmra.mxu0 %v1828
        %v1830 = vpop.f32.mrf.mxu0
        %v1831 = vadd.f32 %v1730, %v1830
        %v1832 = vand.u32 %v751, 4294901760
        %1833 = vmatmul.f32.gmra.mxu0 %v1832
        %v1834 = vpop.f32.mrf.mxu0
        %v1835 = vadd.f32 %v1738, %v1834
        %v1836 = vand.u32 %v754, 4294901760
        %1837 = vmatmul.f32.gmra.mxu0 %v1836
        %v1838 = vpop.f32.mrf.mxu0
        %v1839 = vadd.f32 %v1746, %v1838
        %v1840 = vand.u32 %v757, 4294901760
        %1841 = vmatmul.f32.gmra.mxu0 %v1840
        %v1842 = vpop.f32.mrf.mxu0
        %v1843 = vadd.f32 %v1754, %v1842
        %1844 = vdwg.mxu0
        %1845 = vmatpush.msra.mxu0 0.0
        %1846 = vmatpush.msra.mxu0 0.0
        %1847 = vmatpush.msra.mxu0 0.0
        %1848 = vmatpush.msra.mxu0 0.0
        %1849 = vmatpush.msra.mxu0 0.0
        %1850 = vmatpush.msra.mxu0 0.0
        %1851 = vmatpush.msra.mxu0 0.0
        %1852 = vmatpush.msra.mxu0 0.0
        %v1853 = vand.u32 %v676, 4294901760
        %v1854 = vsub.f32 %v676, %v1853
        %1855 = vmatpush.msra.mxu0 %v1854
        %v1856 = vand.u32 %v672, 4294901760
        %v1857 = vsub.f32 %v672, %v1856
        %1858 = vmatpush.msra.mxu0 %v1857
        %v1859 = vand.u32 %v668, 4294901760
        %v1860 = vsub.f32 %v668, %v1859
        %1861 = vmatpush.msra.mxu0 %v1860
        %v1862 = vand.u32 %v664, 4294901760
        %v1863 = vsub.f32 %v664, %v1862
        %1864 = vmatpush.msra.mxu0 %v1863
        %v1865 = vand.u32 %v660, 4294901760
        %v1866 = vsub.f32 %v660, %v1865
        %1867 = vmatpush.msra.mxu0 %v1866
        %v1868 = vand.u32 %v656, 4294901760
        %v1869 = vsub.f32 %v656, %v1868
        %1870 = vmatpush.msra.mxu0 %v1869
        %v1871 = vand.u32 %v652, 4294901760
        %v1872 = vsub.f32 %v652, %v1871
        %1873 = vmatpush.msra.mxu0 %v1872
        %v1874 = vand.u32 %v648, 4294901760
        %v1875 = vsub.f32 %v648, %v1874
        %1876 = vmatpush.msra.mxu0 %v1875
        %v1877 = vand.u32 %v736, 4294901760
        %v1878 = vsub.f32 %v736, %v1877
        %1879 = vmatmul.f32.gmra.mxu0 %v1878
        %v1880 = vpop.f32.mrf.mxu0
        %v1881 = vadd.f32 %v1815, %v1880
        %v1882 = vand.u32 %v739, 4294901760
        %v1883 = vsub.f32 %v739, %v1882
        %1884 = vmatmul.f32.gmra.mxu0 %v1883
        %v1885 = vpop.f32.mrf.mxu0
        %v1886 = vadd.f32 %v1819, %v1885
        %v1887 = vand.u32 %v742, 4294901760
        %v1888 = vsub.f32 %v742, %v1887
        %1889 = vmatmul.f32.gmra.mxu0 %v1888
        %v1890 = vpop.f32.mrf.mxu0
        %v1891 = vadd.f32 %v1823, %v1890
        %v1892 = vand.u32 %v745, 4294901760
        %v1893 = vsub.f32 %v745, %v1892
        %1894 = vmatmul.f32.gmra.mxu0 %v1893
        %v1895 = vpop.f32.mrf.mxu0
        %v1896 = vadd.f32 %v1827, %v1895
        %v1897 = vand.u32 %v748, 4294901760
        %v1898 = vsub.f32 %v748, %v1897
        %1899 = vmatmul.f32.gmra.mxu0 %v1898
        %v1900 = vpop.f32.mrf.mxu0
        %v1901 = vadd.f32 %v1831, %v1900
        %v1902 = vand.u32 %v751, 4294901760
        %v1903 = vsub.f32 %v751, %v1902
        %1904 = vmatmul.f32.gmra.mxu0 %v1903
        %v1905 = vpop.f32.mrf.mxu0
        %v1906 = vadd.f32 %v1835, %v1905
        %v1907 = vand.u32 %v754, 4294901760
        %v1908 = vsub.f32 %v754, %v1907
        %1909 = vmatmul.f32.gmra.mxu0 %v1908
        %v1910 = vpop.f32.mrf.mxu0
        %v1911 = vadd.f32 %v1839, %v1910
        %v1912 = vand.u32 %v757, 4294901760
        %v1913 = vsub.f32 %v757, %v1912
        %1914 = vmatmul.f32.gmra.mxu0 %v1913
        %v1915 = vpop.f32.mrf.mxu0
        %v1916 = vadd.f32 %v1843, %v1915
        %1917 = vdwg.mxu0
        %1918 = vmatpush.msra.mxu0 0.0
        %1919 = vmatpush.msra.mxu0 0.0
        %1920 = vmatpush.msra.mxu0 0.0
        %1921 = vmatpush.msra.mxu0 0.0
        %1922 = vmatpush.msra.mxu0 0.0
        %1923 = vmatpush.msra.mxu0 0.0
        %1924 = vmatpush.msra.mxu0 0.0
        %1925 = vmatpush.msra.mxu0 0.0
        %v1926 = vand.u32 %v676, 4294901760
        %1927 = vmatpush.msra.mxu0 %v1926
        %v1928 = vand.u32 %v672, 4294901760
        %1929 = vmatpush.msra.mxu0 %v1928
        %v1930 = vand.u32 %v668, 4294901760
        %1931 = vmatpush.msra.mxu0 %v1930
        %v1932 = vand.u32 %v664, 4294901760
        %1933 = vmatpush.msra.mxu0 %v1932
        %v1934 = vand.u32 %v660, 4294901760
        %1935 = vmatpush.msra.mxu0 %v1934
        %v1936 = vand.u32 %v656, 4294901760
        %1937 = vmatpush.msra.mxu0 %v1936
        %v1938 = vand.u32 %v652, 4294901760
        %1939 = vmatpush.msra.mxu0 %v1938
        %v1940 = vand.u32 %v648, 4294901760
        %1941 = vmatpush.msra.mxu0 %v1940
        %v1942 = vand.u32 %v736, 4294901760
        %v1943 = vsub.f32 %v736, %v1942
        %v1944 = vand.u32 %v1943, 4294901760
        %1945 = vmatmul.f32.gmra.mxu0 %v1944
        %v1946 = vpop.f32.mrf.mxu0
        %v1947 = vadd.f32 %v1881, %v1946
        %v1948 = vand.u32 %v739, 4294901760
        %v1949 = vsub.f32 %v739, %v1948
        %v1950 = vand.u32 %v1949, 4294901760
        %1951 = vmatmul.f32.gmra.mxu0 %v1950
        %v1952 = vpop.f32.mrf.mxu0
        %v1953 = vadd.f32 %v1886, %v1952
        %v1954 = vand.u32 %v742, 4294901760
        %v1955 = vsub.f32 %v742, %v1954
        %v1956 = vand.u32 %v1955, 4294901760
        %1957 = vmatmul.f32.gmra.mxu0 %v1956
        %v1958 = vpop.f32.mrf.mxu0
        %v1959 = vadd.f32 %v1891, %v1958
        %v1960 = vand.u32 %v745, 4294901760
        %v1961 = vsub.f32 %v745, %v1960
        %v1962 = vand.u32 %v1961, 4294901760
        %1963 = vmatmul.f32.gmra.mxu0 %v1962
        %v1964 = vpop.f32.mrf.mxu0
        %v1965 = vadd.f32 %v1896, %v1964
        %v1966 = vand.u32 %v748, 4294901760
        %v1967 = vsub.f32 %v748, %v1966
        %v1968 = vand.u32 %v1967, 4294901760
        %1969 = vmatmul.f32.gmra.mxu0 %v1968
        %v1970 = vpop.f32.mrf.mxu0
        %v1971 = vadd.f32 %v1901, %v1970
        %v1972 = vand.u32 %v751, 4294901760
        %v1973 = vsub.f32 %v751, %v1972
        %v1974 = vand.u32 %v1973, 4294901760
        %1975 = vmatmul.f32.gmra.mxu0 %v1974
        %v1976 = vpop.f32.mrf.mxu0
        %v1977 = vadd.f32 %v1906, %v1976
        %v1978 = vand.u32 %v754, 4294901760
        %v1979 = vsub.f32 %v754, %v1978
        %v1980 = vand.u32 %v1979, 4294901760
        %1981 = vmatmul.f32.gmra.mxu0 %v1980
        %v1982 = vpop.f32.mrf.mxu0
        %v1983 = vadd.f32 %v1911, %v1982
        %v1984 = vand.u32 %v757, 4294901760
        %v1985 = vsub.f32 %v757, %v1984
        %v1986 = vand.u32 %v1985, 4294901760
        %1987 = vmatmul.f32.gmra.mxu0 %v1986
        %v1988 = vpop.f32.mrf.mxu0
        %v1989 = vadd.f32 %v1916, %v1988
        %1990 = vdwg.mxu0
        %1991 = vmatpush.msra.mxu0 0.0
        %1992 = vmatpush.msra.mxu0 0.0
        %1993 = vmatpush.msra.mxu0 0.0
        %1994 = vmatpush.msra.mxu0 0.0
        %1995 = vmatpush.msra.mxu0 0.0
        %1996 = vmatpush.msra.mxu0 0.0
        %1997 = vmatpush.msra.mxu0 0.0
        %1998 = vmatpush.msra.mxu0 0.0
        %v1999 = vand.u32 %v676, 4294901760
        %v2000 = vsub.f32 %v676, %v1999
        %v2001 = vand.u32 %v2000, 4294901760
        %2002 = vmatpush.msra.mxu0 %v2001
        %v2003 = vand.u32 %v672, 4294901760
        %v2004 = vsub.f32 %v672, %v2003
        %v2005 = vand.u32 %v2004, 4294901760
        %2006 = vmatpush.msra.mxu0 %v2005
        %v2007 = vand.u32 %v668, 4294901760
        %v2008 = vsub.f32 %v668, %v2007
        %v2009 = vand.u32 %v2008, 4294901760
        %2010 = vmatpush.msra.mxu0 %v2009
        %v2011 = vand.u32 %v664, 4294901760
        %v2012 = vsub.f32 %v664, %v2011
        %v2013 = vand.u32 %v2012, 4294901760
        %2014 = vmatpush.msra.mxu0 %v2013
        %v2015 = vand.u32 %v660, 4294901760
        %v2016 = vsub.f32 %v660, %v2015
        %v2017 = vand.u32 %v2016, 4294901760
        %2018 = vmatpush.msra.mxu0 %v2017
        %v2019 = vand.u32 %v656, 4294901760
        %v2020 = vsub.f32 %v656, %v2019
        %v2021 = vand.u32 %v2020, 4294901760
        %2022 = vmatpush.msra.mxu0 %v2021
        %v2023 = vand.u32 %v652, 4294901760
        %v2024 = vsub.f32 %v652, %v2023
        %v2025 = vand.u32 %v2024, 4294901760
        %2026 = vmatpush.msra.mxu0 %v2025
        %v2027 = vand.u32 %v648, 4294901760
        %v2028 = vsub.f32 %v648, %v2027
        %v2029 = vand.u32 %v2028, 4294901760
        %2030 = vmatpush.msra.mxu0 %v2029
        %v2031 = vand.u32 %v736, 4294901760
        %2032 = vmatmul.f32.gmra.mxu0 %v2031
        %v2033 = vpop.f32.mrf.mxu0
        %v2034 = vadd.f32 %v1947, %v2033
        %v2035 = vand.u32 %v739, 4294901760
        %2036 = vmatmul.f32.gmra.mxu0 %v2035
        %v2037 = vpop.f32.mrf.mxu0
        %v2038 = vadd.f32 %v1953, %v2037
        %v2039 = vand.u32 %v742, 4294901760
        %2040 = vmatmul.f32.gmra.mxu0 %v2039
        %v2041 = vpop.f32.mrf.mxu0
        %v2042 = vadd.f32 %v1959, %v2041
        %v2043 = vand.u32 %v745, 4294901760
        %2044 = vmatmul.f32.gmra.mxu0 %v2043
        %v2045 = vpop.f32.mrf.mxu0
        %v2046 = vadd.f32 %v1965, %v2045
        %v2047 = vand.u32 %v748, 4294901760
        %2048 = vmatmul.f32.gmra.mxu0 %v2047
        %v2049 = vpop.f32.mrf.mxu0
        %v2050 = vadd.f32 %v1971, %v2049
        %v2051 = vand.u32 %v751, 4294901760
        %2052 = vmatmul.f32.gmra.mxu0 %v2051
        %v2053 = vpop.f32.mrf.mxu0
        %v2054 = vadd.f32 %v1977, %v2053
        %v2055 = vand.u32 %v754, 4294901760
        %2056 = vmatmul.f32.gmra.mxu0 %v2055
        %v2057 = vpop.f32.mrf.mxu0
        %v2058 = vadd.f32 %v1983, %v2057
        %v2059 = vand.u32 %v757, 4294901760
        %2060 = vmatmul.f32.gmra.mxu0 %v2059
        %v2061 = vpop.f32.mrf.mxu0
        %v2062 = vadd.f32 %v1989, %v2061
        %2063 = vdwg.mxu0
        %2064 = vmatpush.msra.mxu0 0.0
        %2065 = vmatpush.msra.mxu0 0.0
        %2066 = vmatpush.msra.mxu0 0.0
        %2067 = vmatpush.msra.mxu0 0.0
        %2068 = vmatpush.msra.mxu0 0.0
        %2069 = vmatpush.msra.mxu0 0.0
        %2070 = vmatpush.msra.mxu0 0.0
        %2071 = vmatpush.msra.mxu0 0.0
        %v2072 = vand.u32 %v676, 4294901760
        %2073 = vmatpush.msra.mxu0 %v2072
        %v2074 = vand.u32 %v672, 4294901760
        %2075 = vmatpush.msra.mxu0 %v2074
        %v2076 = vand.u32 %v668, 4294901760
        %2077 = vmatpush.msra.mxu0 %v2076
        %v2078 = vand.u32 %v664, 4294901760
        %2079 = vmatpush.msra.mxu0 %v2078
        %v2080 = vand.u32 %v660, 4294901760
        %2081 = vmatpush.msra.mxu0 %v2080
        %v2082 = vand.u32 %v656, 4294901760
        %2083 = vmatpush.msra.mxu0 %v2082
        %v2084 = vand.u32 %v652, 4294901760
        %2085 = vmatpush.msra.mxu0 %v2084
        %v2086 = vand.u32 %v648, 4294901760
        %2087 = vmatpush.msra.mxu0 %v2086
        %v2088 = vand.u32 %v736, 4294901760
        %2089 = vmatmul.f32.gmra.mxu0 %v2088
        %v2090 = vpop.f32.mrf.mxu0
        %v2091 = vadd.f32 %v2034, %v2090
        %v2092 = vand.u32 %v739, 4294901760
        %2093 = vmatmul.f32.gmra.mxu0 %v2092
        %v2094 = vpop.f32.mrf.mxu0
        %v2095 = vadd.f32 %v2038, %v2094
        %v2096 = vand.u32 %v742, 4294901760
        %2097 = vmatmul.f32.gmra.mxu0 %v2096
        %v2098 = vpop.f32.mrf.mxu0
        %v2099 = vadd.f32 %v2042, %v2098
        %v2100 = vand.u32 %v745, 4294901760
        %2101 = vmatmul.f32.gmra.mxu0 %v2100
        %v2102 = vpop.f32.mrf.mxu0
        %v2103 = vadd.f32 %v2046, %v2102
        %v2104 = vand.u32 %v748, 4294901760
        %2105 = vmatmul.f32.gmra.mxu0 %v2104
        %v2106 = vpop.f32.mrf.mxu0
        %v2107 = vadd.f32 %v2050, %v2106
        %v2108 = vand.u32 %v751, 4294901760
        %2109 = vmatmul.f32.gmra.mxu0 %v2108
        %v2110 = vpop.f32.mrf.mxu0
        %v2111 = vadd.f32 %v2054, %v2110
        %v2112 = vand.u32 %v754, 4294901760
        %2113 = vmatmul.f32.gmra.mxu0 %v2112
        %v2114 = vpop.f32.mrf.mxu0
        %v2115 = vadd.f32 %v2058, %v2114
        %v2116 = vand.u32 %v757, 4294901760
        %2117 = vmatmul.f32.gmra.mxu0 %v2116
        %v2118 = vpop.f32.mrf.mxu0
        %v2119 = vadd.f32 %v2062, %v2118
        %2120 = vdwg.mxu0
        %2121 = vmatpush.msra.mxu0 0.0
        %2122 = vmatpush.msra.mxu0 0.0
        %2123 = vmatpush.msra.mxu0 0.0
        %2124 = vmatpush.msra.mxu0 0.0
        %2125 = vmatpush.msra.mxu0 0.0
        %2126 = vmatpush.msra.mxu0 0.0
        %2127 = vmatpush.msra.mxu0 0.0
        %2128 = vmatpush.msra.mxu0 0.0
        %v2129 = vand.u32 %v677, 4294901760
        %2130 = vmatpush.msra.mxu0 %v2129
        %v2131 = vand.u32 %v673, 4294901760
        %2132 = vmatpush.msra.mxu0 %v2131
        %v2133 = vand.u32 %v669, 4294901760
        %2134 = vmatpush.msra.mxu0 %v2133
        %v2135 = vand.u32 %v665, 4294901760
        %2136 = vmatpush.msra.mxu0 %v2135
        %v2137 = vand.u32 %v661, 4294901760
        %2138 = vmatpush.msra.mxu0 %v2137
        %v2139 = vand.u32 %v657, 4294901760
        %2140 = vmatpush.msra.mxu0 %v2139
        %v2141 = vand.u32 %v653, 4294901760
        %2142 = vmatpush.msra.mxu0 %v2141
        %v2143 = vand.u32 %v649, 4294901760
        %2144 = vmatpush.msra.mxu0 %v2143
        %v2145 = vand.u32 %v736, 4294901760
        %v2146 = vsub.f32 %v736, %v2145
        %v2147 = vand.u32 %v2146, 4294901760
        %v2148 = vsub.f32 %v2146, %v2147
        %v2149 = vand.u32 %v2148, 4294901760
        %2150 = vmatmul.f32.gmra.mxu0 %v2149
        %v2151 = vpop.f32.mrf.mxu0
        %v2152 = vadd.f32 %v697, %v2151
        %v2153 = vand.u32 %v739, 4294901760
        %v2154 = vsub.f32 %v739, %v2153
        %v2155 = vand.u32 %v2154, 4294901760
        %v2156 = vsub.f32 %v2154, %v2155
        %v2157 = vand.u32 %v2156, 4294901760
        %2158 = vmatmul.f32.gmra.mxu0 %v2157
        %v2159 = vpop.f32.mrf.mxu0
        %v2160 = vadd.f32 %v702, %v2159
        %v2161 = vand.u32 %v742, 4294901760
        %v2162 = vsub.f32 %v742, %v2161
        %v2163 = vand.u32 %v2162, 4294901760
        %v2164 = vsub.f32 %v2162, %v2163
        %v2165 = vand.u32 %v2164, 4294901760
        %2166 = vmatmul.f32.gmra.mxu0 %v2165
        %v2167 = vpop.f32.mrf.mxu0
        %v2168 = vadd.f32 %v707, %v2167
        %v2169 = vand.u32 %v745, 4294901760
        %v2170 = vsub.f32 %v745, %v2169
        %v2171 = vand.u32 %v2170, 4294901760
        %v2172 = vsub.f32 %v2170, %v2171
        %v2173 = vand.u32 %v2172, 4294901760
        %2174 = vmatmul.f32.gmra.mxu0 %v2173
        %v2175 = vpop.f32.mrf.mxu0
        %v2176 = vadd.f32 %v712, %v2175
        %v2177 = vand.u32 %v748, 4294901760
        %v2178 = vsub.f32 %v748, %v2177
        %v2179 = vand.u32 %v2178, 4294901760
        %v2180 = vsub.f32 %v2178, %v2179
        %v2181 = vand.u32 %v2180, 4294901760
        %2182 = vmatmul.f32.gmra.mxu0 %v2181
        %v2183 = vpop.f32.mrf.mxu0
        %v2184 = vadd.f32 %v717, %v2183
        %v2185 = vand.u32 %v751, 4294901760
        %v2186 = vsub.f32 %v751, %v2185
        %v2187 = vand.u32 %v2186, 4294901760
        %v2188 = vsub.f32 %v2186, %v2187
        %v2189 = vand.u32 %v2188, 4294901760
        %2190 = vmatmul.f32.gmra.mxu0 %v2189
        %v2191 = vpop.f32.mrf.mxu0
        %v2192 = vadd.f32 %v722, %v2191
        %v2193 = vand.u32 %v754, 4294901760
        %v2194 = vsub.f32 %v754, %v2193
        %v2195 = vand.u32 %v2194, 4294901760
        %v2196 = vsub.f32 %v2194, %v2195
        %v2197 = vand.u32 %v2196, 4294901760
        %2198 = vmatmul.f32.gmra.mxu0 %v2197
        %v2199 = vpop.f32.mrf.mxu0
        %v2200 = vadd.f32 %v727, %v2199
        %v2201 = vand.u32 %v757, 4294901760
        %v2202 = vsub.f32 %v757, %v2201
        %v2203 = vand.u32 %v2202, 4294901760
        %v2204 = vsub.f32 %v2202, %v2203
        %v2205 = vand.u32 %v2204, 4294901760
        %2206 = vmatmul.f32.gmra.mxu0 %v2205
        %v2207 = vpop.f32.mrf.mxu0
        %v2208 = vadd.f32 %v732, %v2207
        %2209 = vdwg.mxu0
        %2210 = vmatpush.msra.mxu0 0.0
        %2211 = vmatpush.msra.mxu0 0.0
        %2212 = vmatpush.msra.mxu0 0.0
        %2213 = vmatpush.msra.mxu0 0.0
        %2214 = vmatpush.msra.mxu0 0.0
        %2215 = vmatpush.msra.mxu0 0.0
        %2216 = vmatpush.msra.mxu0 0.0
        %2217 = vmatpush.msra.mxu0 0.0
        %v2218 = vand.u32 %v677, 4294901760
        %v2219 = vsub.f32 %v677, %v2218
        %v2220 = vand.u32 %v2219, 4294901760
        %v2221 = vsub.f32 %v2219, %v2220
        %v2222 = vand.u32 %v2221, 4294901760
        %2223 = vmatpush.msra.mxu0 %v2222
        %v2224 = vand.u32 %v673, 4294901760
        %v2225 = vsub.f32 %v673, %v2224
        %v2226 = vand.u32 %v2225, 4294901760
        %v2227 = vsub.f32 %v2225, %v2226
        %v2228 = vand.u32 %v2227, 4294901760
        %2229 = vmatpush.msra.mxu0 %v2228
        %v2230 = vand.u32 %v669, 4294901760
        %v2231 = vsub.f32 %v669, %v2230
        %v2232 = vand.u32 %v2231, 4294901760
        %v2233 = vsub.f32 %v2231, %v2232
        %v2234 = vand.u32 %v2233, 4294901760
        %2235 = vmatpush.msra.mxu0 %v2234
        %v2236 = vand.u32 %v665, 4294901760
        %v2237 = vsub.f32 %v665, %v2236
        %v2238 = vand.u32 %v2237, 4294901760
        %v2239 = vsub.f32 %v2237, %v2238
        %v2240 = vand.u32 %v2239, 4294901760
        %2241 = vmatpush.msra.mxu0 %v2240
        %v2242 = vand.u32 %v661, 4294901760
        %v2243 = vsub.f32 %v661, %v2242
        %v2244 = vand.u32 %v2243, 4294901760
        %v2245 = vsub.f32 %v2243, %v2244
        %v2246 = vand.u32 %v2245, 4294901760
        %2247 = vmatpush.msra.mxu0 %v2246
        %v2248 = vand.u32 %v657, 4294901760
        %v2249 = vsub.f32 %v657, %v2248
        %v2250 = vand.u32 %v2249, 4294901760
        %v2251 = vsub.f32 %v2249, %v2250
        %v2252 = vand.u32 %v2251, 4294901760
        %2253 = vmatpush.msra.mxu0 %v2252
        %v2254 = vand.u32 %v653, 4294901760
        %v2255 = vsub.f32 %v653, %v2254
        %v2256 = vand.u32 %v2255, 4294901760
        %v2257 = vsub.f32 %v2255, %v2256
        %v2258 = vand.u32 %v2257, 4294901760
        %2259 = vmatpush.msra.mxu0 %v2258
        %v2260 = vand.u32 %v649, 4294901760
        %v2261 = vsub.f32 %v649, %v2260
        %v2262 = vand.u32 %v2261, 4294901760
        %v2263 = vsub.f32 %v2261, %v2262
        %v2264 = vand.u32 %v2263, 4294901760
        %2265 = vmatpush.msra.mxu0 %v2264
        %v2266 = vand.u32 %v736, 4294901760
        %2267 = vmatmul.f32.gmra.mxu0 %v2266
        %v2268 = vpop.f32.mrf.mxu0
        %v2269 = vadd.f32 %v2152, %v2268
        %v2270 = vand.u32 %v739, 4294901760
        %2271 = vmatmul.f32.gmra.mxu0 %v2270
        %v2272 = vpop.f32.mrf.mxu0
        %v2273 = vadd.f32 %v2160, %v2272
        %v2274 = vand.u32 %v742, 4294901760
        %2275 = vmatmul.f32.gmra.mxu0 %v2274
        %v2276 = vpop.f32.mrf.mxu0
        %v2277 = vadd.f32 %v2168, %v2276
        %v2278 = vand.u32 %v745, 4294901760
        %2279 = vmatmul.f32.gmra.mxu0 %v2278
        %v2280 = vpop.f32.mrf.mxu0
        %v2281 = vadd.f32 %v2176, %v2280
        %v2282 = vand.u32 %v748, 4294901760
        %2283 = vmatmul.f32.gmra.mxu0 %v2282
        %v2284 = vpop.f32.mrf.mxu0
        %v2285 = vadd.f32 %v2184, %v2284
        %v2286 = vand.u32 %v751, 4294901760
        %2287 = vmatmul.f32.gmra.mxu0 %v2286
        %v2288 = vpop.f32.mrf.mxu0
        %v2289 = vadd.f32 %v2192, %v2288
        %v2290 = vand.u32 %v754, 4294901760
        %2291 = vmatmul.f32.gmra.mxu0 %v2290
        %v2292 = vpop.f32.mrf.mxu0
        %v2293 = vadd.f32 %v2200, %v2292
        %v2294 = vand.u32 %v757, 4294901760
        %2295 = vmatmul.f32.gmra.mxu0 %v2294
        %v2296 = vpop.f32.mrf.mxu0
        %v2297 = vadd.f32 %v2208, %v2296
        %2298 = vdwg.mxu0
        %2299 = vmatpush.msra.mxu0 0.0
        %2300 = vmatpush.msra.mxu0 0.0
        %2301 = vmatpush.msra.mxu0 0.0
        %2302 = vmatpush.msra.mxu0 0.0
        %2303 = vmatpush.msra.mxu0 0.0
        %2304 = vmatpush.msra.mxu0 0.0
        %2305 = vmatpush.msra.mxu0 0.0
        %2306 = vmatpush.msra.mxu0 0.0
        %v2307 = vand.u32 %v677, 4294901760
        %v2308 = vsub.f32 %v677, %v2307
        %2309 = vmatpush.msra.mxu0 %v2308
        %v2310 = vand.u32 %v673, 4294901760
        %v2311 = vsub.f32 %v673, %v2310
        %2312 = vmatpush.msra.mxu0 %v2311
        %v2313 = vand.u32 %v669, 4294901760
        %v2314 = vsub.f32 %v669, %v2313
        %2315 = vmatpush.msra.mxu0 %v2314
        %v2316 = vand.u32 %v665, 4294901760
        %v2317 = vsub.f32 %v665, %v2316
        %2318 = vmatpush.msra.mxu0 %v2317
        %v2319 = vand.u32 %v661, 4294901760
        %v2320 = vsub.f32 %v661, %v2319
        %2321 = vmatpush.msra.mxu0 %v2320
        %v2322 = vand.u32 %v657, 4294901760
        %v2323 = vsub.f32 %v657, %v2322
        %2324 = vmatpush.msra.mxu0 %v2323
        %v2325 = vand.u32 %v653, 4294901760
        %v2326 = vsub.f32 %v653, %v2325
        %2327 = vmatpush.msra.mxu0 %v2326
        %v2328 = vand.u32 %v649, 4294901760
        %v2329 = vsub.f32 %v649, %v2328
        %2330 = vmatpush.msra.mxu0 %v2329
        %v2331 = vand.u32 %v736, 4294901760
        %v2332 = vsub.f32 %v736, %v2331
        %2333 = vmatmul.f32.gmra.mxu0 %v2332
        %v2334 = vpop.f32.mrf.mxu0
        %v2335 = vadd.f32 %v2269, %v2334
        %v2336 = vand.u32 %v739, 4294901760
        %v2337 = vsub.f32 %v739, %v2336
        %2338 = vmatmul.f32.gmra.mxu0 %v2337
        %v2339 = vpop.f32.mrf.mxu0
        %v2340 = vadd.f32 %v2273, %v2339
        %v2341 = vand.u32 %v742, 4294901760
        %v2342 = vsub.f32 %v742, %v2341
        %2343 = vmatmul.f32.gmra.mxu0 %v2342
        %v2344 = vpop.f32.mrf.mxu0
        %v2345 = vadd.f32 %v2277, %v2344
        %v2346 = vand.u32 %v745, 4294901760
        %v2347 = vsub.f32 %v745, %v2346
        %2348 = vmatmul.f32.gmra.mxu0 %v2347
        %v2349 = vpop.f32.mrf.mxu0
        %v2350 = vadd.f32 %v2281, %v2349
        %v2351 = vand.u32 %v748, 4294901760
        %v2352 = vsub.f32 %v748, %v2351
        %2353 = vmatmul.f32.gmra.mxu0 %v2352
        %v2354 = vpop.f32.mrf.mxu0
        %v2355 = vadd.f32 %v2285, %v2354
        %v2356 = vand.u32 %v751, 4294901760
        %v2357 = vsub.f32 %v751, %v2356
        %2358 = vmatmul.f32.gmra.mxu0 %v2357
        %v2359 = vpop.f32.mrf.mxu0
        %v2360 = vadd.f32 %v2289, %v2359
        %v2361 = vand.u32 %v754, 4294901760
        %v2362 = vsub.f32 %v754, %v2361
        %2363 = vmatmul.f32.gmra.mxu0 %v2362
        %v2364 = vpop.f32.mrf.mxu0
        %v2365 = vadd.f32 %v2293, %v2364
        %v2366 = vand.u32 %v757, 4294901760
        %v2367 = vsub.f32 %v757, %v2366
        %2368 = vmatmul.f32.gmra.mxu0 %v2367
        %v2369 = vpop.f32.mrf.mxu0
        %v2370 = vadd.f32 %v2297, %v2369
        %2371 = vdwg.mxu0
        %2372 = vmatpush.msra.mxu0 0.0
        %2373 = vmatpush.msra.mxu0 0.0
        %2374 = vmatpush.msra.mxu0 0.0
        %2375 = vmatpush.msra.mxu0 0.0
        %2376 = vmatpush.msra.mxu0 0.0
        %2377 = vmatpush.msra.mxu0 0.0
        %2378 = vmatpush.msra.mxu0 0.0
        %2379 = vmatpush.msra.mxu0 0.0
        %v2380 = vand.u32 %v677, 4294901760
        %2381 = vmatpush.msra.mxu0 %v2380
        %v2382 = vand.u32 %v673, 4294901760
        %2383 = vmatpush.msra.mxu0 %v2382
        %v2384 = vand.u32 %v669, 4294901760
        %2385 = vmatpush.msra.mxu0 %v2384
        %v2386 = vand.u32 %v665, 4294901760
        %2387 = vmatpush.msra.mxu0 %v2386
        %v2388 = vand.u32 %v661, 4294901760
        %2389 = vmatpush.msra.mxu0 %v2388
        %v2390 = vand.u32 %v657, 4294901760
        %2391 = vmatpush.msra.mxu0 %v2390
        %v2392 = vand.u32 %v653, 4294901760
        %2393 = vmatpush.msra.mxu0 %v2392
        %v2394 = vand.u32 %v649, 4294901760
        %2395 = vmatpush.msra.mxu0 %v2394
        %v2396 = vand.u32 %v736, 4294901760
        %v2397 = vsub.f32 %v736, %v2396
        %v2398 = vand.u32 %v2397, 4294901760
        %2399 = vmatmul.f32.gmra.mxu0 %v2398
        %v2400 = vpop.f32.mrf.mxu0
        %v2401 = vadd.f32 %v2335, %v2400
        %v2402 = vand.u32 %v739, 4294901760
        %v2403 = vsub.f32 %v739, %v2402
        %v2404 = vand.u32 %v2403, 4294901760
        %2405 = vmatmul.f32.gmra.mxu0 %v2404
        %v2406 = vpop.f32.mrf.mxu0
        %v2407 = vadd.f32 %v2340, %v2406
        %v2408 = vand.u32 %v742, 4294901760
        %v2409 = vsub.f32 %v742, %v2408
        %v2410 = vand.u32 %v2409, 4294901760
        %2411 = vmatmul.f32.gmra.mxu0 %v2410
        %v2412 = vpop.f32.mrf.mxu0
        %v2413 = vadd.f32 %v2345, %v2412
        %v2414 = vand.u32 %v745, 4294901760
        %v2415 = vsub.f32 %v745, %v2414
        %v2416 = vand.u32 %v2415, 4294901760
        %2417 = vmatmul.f32.gmra.mxu0 %v2416
        %v2418 = vpop.f32.mrf.mxu0
        %v2419 = vadd.f32 %v2350, %v2418
        %v2420 = vand.u32 %v748, 4294901760
        %v2421 = vsub.f32 %v748, %v2420
        %v2422 = vand.u32 %v2421, 4294901760
        %2423 = vmatmul.f32.gmra.mxu0 %v2422
        %v2424 = vpop.f32.mrf.mxu0
        %v2425 = vadd.f32 %v2355, %v2424
        %v2426 = vand.u32 %v751, 4294901760
        %v2427 = vsub.f32 %v751, %v2426
        %v2428 = vand.u32 %v2427, 4294901760
        %2429 = vmatmul.f32.gmra.mxu0 %v2428
        %v2430 = vpop.f32.mrf.mxu0
        %v2431 = vadd.f32 %v2360, %v2430
        %v2432 = vand.u32 %v754, 4294901760
        %v2433 = vsub.f32 %v754, %v2432
        %v2434 = vand.u32 %v2433, 4294901760
        %2435 = vmatmul.f32.gmra.mxu0 %v2434
        %v2436 = vpop.f32.mrf.mxu0
        %v2437 = vadd.f32 %v2365, %v2436
        %v2438 = vand.u32 %v757, 4294901760
        %v2439 = vsub.f32 %v757, %v2438
        %v2440 = vand.u32 %v2439, 4294901760
        %2441 = vmatmul.f32.gmra.mxu0 %v2440
        %v2442 = vpop.f32.mrf.mxu0
        %v2443 = vadd.f32 %v2370, %v2442
        %2444 = vdwg.mxu0
        %2445 = vmatpush.msra.mxu0 0.0
        %2446 = vmatpush.msra.mxu0 0.0
        %2447 = vmatpush.msra.mxu0 0.0
        %2448 = vmatpush.msra.mxu0 0.0
        %2449 = vmatpush.msra.mxu0 0.0
        %2450 = vmatpush.msra.mxu0 0.0
        %2451 = vmatpush.msra.mxu0 0.0
        %2452 = vmatpush.msra.mxu0 0.0
        %v2453 = vand.u32 %v677, 4294901760
        %v2454 = vsub.f32 %v677, %v2453
        %v2455 = vand.u32 %v2454, 4294901760
        %2456 = vmatpush.msra.mxu0 %v2455
        %v2457 = vand.u32 %v673, 4294901760
        %v2458 = vsub.f32 %v673, %v2457
        %v2459 = vand.u32 %v2458, 4294901760
        %2460 = vmatpush.msra.mxu0 %v2459
        %v2461 = vand.u32 %v669, 4294901760
        %v2462 = vsub.f32 %v669, %v2461
        %v2463 = vand.u32 %v2462, 4294901760
        %2464 = vmatpush.msra.mxu0 %v2463
        %v2465 = vand.u32 %v665, 4294901760
        %v2466 = vsub.f32 %v665, %v2465
        %v2467 = vand.u32 %v2466, 4294901760
        %2468 = vmatpush.msra.mxu0 %v2467
        %v2469 = vand.u32 %v661, 4294901760
        %v2470 = vsub.f32 %v661, %v2469
        %v2471 = vand.u32 %v2470, 4294901760
        %2472 = vmatpush.msra.mxu0 %v2471
        %v2473 = vand.u32 %v657, 4294901760
        %v2474 = vsub.f32 %v657, %v2473
        %v2475 = vand.u32 %v2474, 4294901760
        %2476 = vmatpush.msra.mxu0 %v2475
        %v2477 = vand.u32 %v653, 4294901760
        %v2478 = vsub.f32 %v653, %v2477
        %v2479 = vand.u32 %v2478, 4294901760
        %2480 = vmatpush.msra.mxu0 %v2479
        %v2481 = vand.u32 %v649, 4294901760
        %v2482 = vsub.f32 %v649, %v2481
        %v2483 = vand.u32 %v2482, 4294901760
        %2484 = vmatpush.msra.mxu0 %v2483
        %v2485 = vand.u32 %v736, 4294901760
        %2486 = vmatmul.f32.gmra.mxu0 %v2485
        %v2487 = vpop.f32.mrf.mxu0
        %v2488 = vadd.f32 %v2401, %v2487
        %v2489 = vand.u32 %v739, 4294901760
        %2490 = vmatmul.f32.gmra.mxu0 %v2489
        %v2491 = vpop.f32.mrf.mxu0
        %v2492 = vadd.f32 %v2407, %v2491
        %v2493 = vand.u32 %v742, 4294901760
        %2494 = vmatmul.f32.gmra.mxu0 %v2493
        %v2495 = vpop.f32.mrf.mxu0
        %v2496 = vadd.f32 %v2413, %v2495
        %v2497 = vand.u32 %v745, 4294901760
        %2498 = vmatmul.f32.gmra.mxu0 %v2497
        %v2499 = vpop.f32.mrf.mxu0
        %v2500 = vadd.f32 %v2419, %v2499
        %v2501 = vand.u32 %v748, 4294901760
        %2502 = vmatmul.f32.gmra.mxu0 %v2501
        %v2503 = vpop.f32.mrf.mxu0
        %v2504 = vadd.f32 %v2425, %v2503
        %v2505 = vand.u32 %v751, 4294901760
        %2506 = vmatmul.f32.gmra.mxu0 %v2505
        %v2507 = vpop.f32.mrf.mxu0
        %v2508 = vadd.f32 %v2431, %v2507
        %v2509 = vand.u32 %v754, 4294901760
        %2510 = vmatmul.f32.gmra.mxu0 %v2509
        %v2511 = vpop.f32.mrf.mxu0
        %v2512 = vadd.f32 %v2437, %v2511
        %v2513 = vand.u32 %v757, 4294901760
        %2514 = vmatmul.f32.gmra.mxu0 %v2513
        %v2515 = vpop.f32.mrf.mxu0
        %v2516 = vadd.f32 %v2443, %v2515
        %2517 = vdwg.mxu0
        %2518 = vmatpush.msra.mxu0 0.0
        %2519 = vmatpush.msra.mxu0 0.0
        %2520 = vmatpush.msra.mxu0 0.0
        %2521 = vmatpush.msra.mxu0 0.0
        %2522 = vmatpush.msra.mxu0 0.0
        %2523 = vmatpush.msra.mxu0 0.0
        %2524 = vmatpush.msra.mxu0 0.0
        %2525 = vmatpush.msra.mxu0 0.0
        %v2526 = vand.u32 %v677, 4294901760
        %2527 = vmatpush.msra.mxu0 %v2526
        %v2528 = vand.u32 %v673, 4294901760
        %2529 = vmatpush.msra.mxu0 %v2528
        %v2530 = vand.u32 %v669, 4294901760
        %2531 = vmatpush.msra.mxu0 %v2530
        %v2532 = vand.u32 %v665, 4294901760
        %2533 = vmatpush.msra.mxu0 %v2532
        %v2534 = vand.u32 %v661, 4294901760
        %2535 = vmatpush.msra.mxu0 %v2534
        %v2536 = vand.u32 %v657, 4294901760
        %2537 = vmatpush.msra.mxu0 %v2536
        %v2538 = vand.u32 %v653, 4294901760
        %2539 = vmatpush.msra.mxu0 %v2538
        %v2540 = vand.u32 %v649, 4294901760
        %2541 = vmatpush.msra.mxu0 %v2540
        %v2542 = vand.u32 %v736, 4294901760
        %2543 = vmatmul.f32.gmra.mxu0 %v2542
        %v2544 = vpop.f32.mrf.mxu0
        %v2545 = vadd.f32 %v2488, %v2544
        %v2546 = vand.u32 %v739, 4294901760
        %2547 = vmatmul.f32.gmra.mxu0 %v2546
        %v2548 = vpop.f32.mrf.mxu0
        %v2549 = vadd.f32 %v2492, %v2548
        %v2550 = vand.u32 %v742, 4294901760
        %2551 = vmatmul.f32.gmra.mxu0 %v2550
        %v2552 = vpop.f32.mrf.mxu0
        %v2553 = vadd.f32 %v2496, %v2552
        %v2554 = vand.u32 %v745, 4294901760
        %2555 = vmatmul.f32.gmra.mxu0 %v2554
        %v2556 = vpop.f32.mrf.mxu0
        %v2557 = vadd.f32 %v2500, %v2556
        %v2558 = vand.u32 %v748, 4294901760
        %2559 = vmatmul.f32.gmra.mxu0 %v2558
        %v2560 = vpop.f32.mrf.mxu0
        %v2561 = vadd.f32 %v2504, %v2560
        %v2562 = vand.u32 %v751, 4294901760
        %2563 = vmatmul.f32.gmra.mxu0 %v2562
        %v2564 = vpop.f32.mrf.mxu0
        %v2565 = vadd.f32 %v2508, %v2564
        %v2566 = vand.u32 %v754, 4294901760
        %2567 = vmatmul.f32.gmra.mxu0 %v2566
        %v2568 = vpop.f32.mrf.mxu0
        %v2569 = vadd.f32 %v2512, %v2568
        %v2570 = vand.u32 %v757, 4294901760
        %2571 = vmatmul.f32.gmra.mxu0 %v2570
        %v2572 = vpop.f32.mrf.mxu0
        %v2573 = vadd.f32 %v2516, %v2572
        %2574 = vdwg.mxu0
        %v2575 = vmax.f32 %v1183, 0.0
        %v2576 = vmax.f32 %v1637, 0.0
        %v2577 = vmax.f32 %v2091, 0.0
        %v2578 = vmax.f32 %v2545, 0.0
        %v2579 = vmax.f32 %v1187, 0.0
        %v2580 = vmax.f32 %v1641, 0.0
        %v2581 = vmax.f32 %v2095, 0.0
        %v2582 = vmax.f32 %v2549, 0.0
        %v2583 = vmax.f32 %v1191, 0.0
        %v2584 = vmax.f32 %v1645, 0.0
        %v2585 = vmax.f32 %v2099, 0.0
        %v2586 = vmax.f32 %v2553, 0.0
        %v2587 = vmax.f32 %v1195, 0.0
        %v2588 = vmax.f32 %v1649, 0.0
        %v2589 = vmax.f32 %v2103, 0.0
        %v2590 = vmax.f32 %v2557, 0.0
        %v2591 = vmax.f32 %v1199, 0.0
        %v2592 = vmax.f32 %v1653, 0.0
        %v2593 = vmax.f32 %v2107, 0.0
        %v2594 = vmax.f32 %v2561, 0.0
        %v2595 = vmax.f32 %v1203, 0.0
        %v2596 = vmax.f32 %v1657, 0.0
        %v2597 = vmax.f32 %v2111, 0.0
        %v2598 = vmax.f32 %v2565, 0.0
        %v2599 = vmax.f32 %v1207, 0.0
        %v2600 = vmax.f32 %v1661, 0.0
        %v2601 = vmax.f32 %v2115, 0.0
        %v2602 = vmax.f32 %v2569, 0.0
        %v2603 = vmax.f32 %v1211, 0.0
        %v2604 = vmax.f32 %v1665, 0.0
        %v2605 = vmax.f32 %v2119, 0.0
        %v2606 = vmax.f32 %v2573, 0.0
        %2607 = vst [vmem:[%s242] sm:$0xff] %v2575
        %2608 = vst [vmem:[%s242 + $0x8] sm:$0xff] %v2576
        %2609 = vst [vmem:[%s242 + $0x10] sm:$0xff] %v2577
        %2610 = vst [vmem:[%s242 + $0x18] sm:$0xff] %v2578
        %2611 = vst [vmem:[%s242 + $0x20] sm:$0xff] %v2579
        %2612 = vst [vmem:[%s242 + $0x28] sm:$0xff] %v2580
        %2613 = vst [vmem:[%s242 + $0x30] sm:$0xff] %v2581
        %2614 = vst [vmem:[%s242 + $0x38] sm:$0xff] %v2582
        %2615 = vst [vmem:[%s242 + $0x40] sm:$0xff] %v2583
        %2616 = vst [vmem:[%s242 + $0x48] sm:$0xff] %v2584
        %2617 = vst [vmem:[%s242 + $0x50] sm:$0xff] %v2585
        %2618 = vst [vmem:[%s242 + $0x58] sm:$0xff] %v2586
        %2619 = vst [vmem:[%s242 + $0x60] sm:$0xff] %v2587
        %2620 = vst [vmem:[%s242 + $0x68] sm:$0xff] %v2588
        %2621 = vst [vmem:[%s242 + $0x70] sm:$0xff] %v2589
        %2622 = vst [vmem:[%s242 + $0x78] sm:$0xff] %v2590
        %2623 = vst [vmem:[%s242 + $0x80] sm:$0xff] %v2591
        %2624 = vst [vmem:[%s242 + $0x88] sm:$0xff] %v2592
        %2625 = vst [vmem:[%s242 + $0x90] sm:$0xff] %v2593
        %2626 = vst [vmem:[%s242 + $0x98] sm:$0xff] %v2594
        %2627 = vst [vmem:[%s242 + $0xa0] sm:$0xff] %v2595
        %2628 = vst [vmem:[%s242 + $0xa8] sm:$0xff] %v2596
        %2629 = vst [vmem:[%s242 + $0xb0] sm:$0xff] %v2597
        %2630 = vst [vmem:[%s242 + $0xb8] sm:$0xff] %v2598
        %2631 = vst [vmem:[%s242 + $0xc0] sm:$0xff] %v2599
        %2632 = vst [vmem:[%s242 + $0xc8] sm:$0xff] %v2600
        %2633 = vst [vmem:[%s242 + $0xd0] sm:$0xff] %v2601
        %2634 = vst [vmem:[%s242 + $0xd8] sm:$0xff] %v2602
        %2635 = vst [vmem:[%s242 + $0xe0] sm:$0xff] %v2603
        %2636 = vst [vmem:[%s242 + $0xe8] sm:$0xff] %v2604
        %2637 = vst [vmem:[%s242 + $0xf0] sm:$0xff] %v2605
        %2638 = vst [vmem:[%s242 + $0xf8] sm:$0xff] %v2606
        %s2639 = sand.u32 %s153, 1
        %s2640 = scalar_lea.sflag [#allocation3], %s2639
        %s2641 = sand.u32 %s153, 1
        %s2642 = smul.addr %s2641, 256
        %s2643 = scalar_lea.vmem [#allocation2], %s2642
        // Predicated region
        $region41: #{norm_mlp_forward.3} parent=39 // pred_check
          %p2644 = pneg %p163
        $region42: #{norm_mlp_forward.3} parent=39 // pred_check_branch
          %2646 = sbr.rel (%p2644) target = $region44
        $region43: #{norm_mlp_forward.3} parent=39 // pred_region
          %s2647 = smul.u32 4, %s24
          %2649 = vsyncadd %s2640, 0
          %s2650 = smul.addr %s23, 64
          %s2651 = sadd.s32 %s2647, %s2650
          %s2652 = smul.addr %s2651, 8
          %s2653 = scalar_lea.hbm %s5, %s2652
          %s2654 = sshll.u32 %s2643, 4
          %s2655 = int_to_ptr.vmem [resolvable:$true] %s2654
          %s2656 = sshll.u32 %s2653, 4
          %s2657 = int_to_ptr.hbm [resolvable:$true] %s2656
          %2662 = dma.vmem_to_hbm [thread:$0]  %s2655, 4096, %s2657, %s2640, 512, 1024, 32
        $region44: #{norm_mlp_forward.3} parent=39 // pred_fallthru
          _
      $region40: #{norm_mlp_forward.3} parent=5 // pred_fallthru
        _
      %p2663 = scmp.le.s32.totalorder 2, %s14
      // Predicated region
      $region45: #{norm_mlp_forward.3} parent=5 // pred_check
        %p2664 = pneg %p2663
      $region46: #{norm_mlp_forward.3} parent=5 // pred_check_branch
        %2666 = sbr.rel (%p2664) target = $region48
      $region47: #{norm_mlp_forward.3} parent=5 // pred_region
        %s2667 = ssub.s32 %s14, 2
        // Predicated region
        $region49: #{norm_mlp_forward.3} parent=47 // pred_check
          %p2668 = pneg %p169
        $region50: #{norm_mlp_forward.3} parent=47 // pred_check_branch
          %2670 = sbr.rel (%p2668) target = $region52
        $region51: #{norm_mlp_forward.3} parent=47 // pred_region
          %s2671 = sand.u32 %s154, 1
          %s2672 = scalar_lea.sflag [#allocation3], %s2671
          %s2673 = sand.u32 %s154, 1
          %s2674 = smul.addr %s2673, 256
          %s2675 = scalar_lea.vmem [#allocation2], %s2674
          %2677 = dma.done %s2672, 4096
        $region52: #{norm_mlp_forward.3} parent=47 // pred_fallthru
          _
      $region48: #{norm_mlp_forward.3} parent=5 // pred_fallthru
        _
    $region6: #{norm_mlp_forward.3} parent=1 // loop_footer
      %s18 = sadd.s32 1, %s14
    $region7: #{norm_mlp_forward.3} parent=1 // loop_footer_branch
      %13 = sbr.rel target = $region3
    $region8: #{norm_mlp_forward.3} parent=1 // loop_exit
      _
    %2678 = vsyncpa [#allocation3], 1
    %s2679 = scalar_lea.sflag [#allocation3], 1
    %2680 = vsyncpa %s2679, 1

// kernel: norm_mlp_forward.2
$region0: #{norm_mlp_forward.2}
  #allocation0 [shape = 'u32[]', space=smem, size = 0x4, offset = 0x4, fixed_abs, tag = 'smem constant byte address 0x4 - core index']
  #allocation1 [shape = 'u32[72,128]{1,0:T(1,128)}', space=vmem, size = 0x9000, scoped, tag = 'internal scratch']
  %s0 = inlined_call_operand.vmem [shape: f32[2,3,1024], index: 0, kind: input, shape index: {}]
  %s1 = inlined_call_operand.vmem [shape: f32[64,3], index: 1, kind: input, shape index: {}]
  %s2 = inlined_call_operand.vmem [shape: f32[64,1], index: 2, kind: input, shape index: {}]
  %s3 = inlined_call_operand.vmem [shape: f32[64,64], index: 3, kind: input, shape index: {}]
  %s4 = inlined_call_operand.vmem [shape: f32[2,2,128,1], index: 4, kind: output, shape index: {}]
  %s5 = sld [smem:[#allocation0]]
  $region49: #{norm_mlp_forward.2} parent=0
    _
  %s7 = ssub.s32 1, %s5
  %s8 = scalar_select 0, %s7, %s5
  loop: start=0, step=1, limit=6
  $region2: #{norm_mlp_forward.2} parent=0 // loop_pre_header
    _
  $region3: #{norm_mlp_forward.2} parent=0 // loop_header
    %s10 = sphi 0, %s14
    %p11 = scmp.ge.s32.totalorder %s10, 6
    %s17 = sphi 0, %s29
    %s18 = sphi 0, %s25
    %s19 = sphi 0, %s17
    %s20 = sphi 0, %s18
    %s21 = sphi 0, %s19
    %s22 = sphi 0, %s20
    %s34 = sphi 0, %s36
    %s37 = sphi 0, %s34
    %s38 = sphi 0, %s37
    %s54 = sphi 0, %s38
    %s58 = sphi 0, %s58
    %s60 = sphi 0, %s58
    %s61 = sphi 0, %s60
    %s75 = sphi 0, %s61
    %s79 = sphi 0, %s79
    %s81 = sphi 0, %s79
    %s82 = sphi 0, %s81
    %s96 = sphi 0, %s82
    %s100 = sphi 0, %s100
    %s102 = sphi 0, %s100
    %s103 = sphi 0, %s102
    %s117 = sphi 0, %s103
    %s125 = sphi 0, %s127
    %s128 = sphi 0, %s125
    %s129 = sphi 0, %s128
    %s145 = sphi 0, %s129
  $region4: #{norm_mlp_forward.2} parent=0 // loop_header_branch
    %13 = sbr.rel (%p11) target = $region8
  $region5: #{norm_mlp_forward.2} parent=0 // loop_body
    %s15 = ssub.s32 %s10, 1
    %s16 = ssub.s32 %s10, 2
    %s23 = sadd.s32 1, %s18
    %p24 = scmp.ge.s32.totalorder %s23, 2
    %s25 = scalar_select %p24, 0, %s23
    %s26 = sadd.s32 1, %s17
    %s27 = scalar_select %p24, %s26, %s17
    %p28 = scmp.ge.s32.totalorder %s27, 2
    %s29 = scalar_select %p28, 0, %s27
    %s30 = ssub.s32 %s17, %s29
    %s31 = ssub.s32 %s18, %s25
    %s32 = sor.u32 %s30, %s31
    %p33 = scmp.eq.s32.totalorder %s32, 0
    %s35 = sadd.s32 %s34, 1
    %s36 = scalar_select %p33, %s34, %s35
    %p39 = pneg %p33
    %p40 = scmp.eq.s32.totalorder %s10, 3
    %p41 = por %p39, %p40
    %p42 = scmp.ne.s32.totalorder %s34, %s37
    %p43 = scmp.eq.s32.totalorder %s10, 0
    %p44 = por %p42, %p43
    %p45 = scmp.ne.s32.totalorder %s34, %s37
    %p46 = scmp.eq.s32.totalorder %s15, 3
    %p47 = por %p45, %p46
    %p48 = scmp.ne.s32.totalorder %s37, %s38
    %p49 = scmp.eq.s32.totalorder %s15, 0
    %p50 = por %p48, %p49
    %p51 = scmp.ne.s32.totalorder %s37, %s38
    %p52 = scmp.eq.s32.totalorder %s16, 3
    %p53 = por %p51, %p52
    %p55 = scmp.ne.s32.totalorder %s38, %s54
    %p56 = scmp.eq.s32.totalorder %s16, 0
    %p57 = por %p55, %p56
    %s59 = sadd.s32 %s58, 1
    %p62 = scmp.eq.s32.totalorder %s10, 3
    %p63 = scmp.ne.s32.totalorder %s58, %s60
    %p64 = scmp.eq.s32.totalorder %s10, 0
    %p65 = por %p63, %p64
    %p66 = scmp.ne.s32.totalorder %s58, %s60
    %p67 = scmp.eq.s32.totalorder %s15, 3
    %p68 = por %p66, %p67
    %p69 = scmp.ne.s32.totalorder %s60, %s61
    %p70 = scmp.eq.s32.totalorder %s15, 0
    %p71 = por %p69, %p70
    %p72 = scmp.ne.s32.totalorder %s60, %s61
    %p73 = scmp.eq.s32.totalorder %s16, 3
    %p74 = por %p72, %p73
    %p76 = scmp.ne.s32.totalorder %s61, %s75
    %p77 = scmp.eq.s32.totalorder %s16, 0
    %p78 = por %p76, %p77
    %s80 = sadd.s32 %s79, 1
    %p83 = scmp.eq.s32.totalorder %s10, 3
    %p84 = scmp.ne.s32.totalorder %s79, %s81
    %p85 = scmp.eq.s32.totalorder %s10, 0
    %p86 = por %p84, %p85
    %p87 = scmp.ne.s32.totalorder %s79, %s81
    %p88 = scmp.eq.s32.totalorder %s15, 3
    %p89 = por %p87, %p88
    %p90 = scmp.ne.s32.totalorder %s81, %s82
    %p91 = scmp.eq.s32.totalorder %s15, 0
    %p92 = por %p90, %p91
    %p93 = scmp.ne.s32.totalorder %s81, %s82
    %p94 = scmp.eq.s32.totalorder %s16, 3
    %p95 = por %p93, %p94
    %p97 = scmp.ne.s32.totalorder %s82, %s96
    %p98 = scmp.eq.s32.totalorder %s16, 0
    %p99 = por %p97, %p98
    %s101 = sadd.s32 %s100, 1
    %p104 = scmp.eq.s32.totalorder %s10, 3
    %p105 = scmp.ne.s32.totalorder %s100, %s102
    %p106 = scmp.eq.s32.totalorder %s10, 0
    %p107 = por %p105, %p106
    %p108 = scmp.ne.s32.totalorder %s100, %s102
    %p109 = scmp.eq.s32.totalorder %s15, 3
    %p110 = por %p108, %p109
    %p111 = scmp.ne.s32.totalorder %s102, %s103
    %p112 = scmp.eq.s32.totalorder %s15, 0
    %p113 = por %p111, %p112
    %p114 = scmp.ne.s32.totalorder %s102, %s103
    %p115 = scmp.eq.s32.totalorder %s16, 3
    %p116 = por %p114, %p115
    %p118 = scmp.ne.s32.totalorder %s103, %s117
    %p119 = scmp.eq.s32.totalorder %s16, 0
    %p120 = por %p118, %p119
    %s121 = ssub.s32 %s17, %s29
    %s122 = ssub.s32 %s18, %s25
    %s123 = sor.u32 %s121, %s122
    %p124 = scmp.eq.s32.totalorder %s123, 0
    %s126 = sadd.s32 %s125, 1
    %s127 = scalar_select %p124, %s125, %s126
    %p130 = pneg %p124
    %p131 = scmp.eq.s32.totalorder %s10, 3
    %p132 = por %p130, %p131
    %p133 = scmp.ne.s32.totalorder %s125, %s128
    %p134 = scmp.eq.s32.totalorder %s10, 0
    %p135 = por %p133, %p134
    %p136 = scmp.ne.s32.totalorder %s125, %s128
    %p137 = scmp.eq.s32.totalorder %s15, 3
    %p138 = por %p136, %p137
    %p139 = scmp.ne.s32.totalorder %s128, %s129
    %p140 = scmp.eq.s32.totalorder %s15, 0
    %p141 = por %p139, %p140
    %p142 = scmp.ne.s32.totalorder %s128, %s129
    %p143 = scmp.eq.s32.totalorder %s16, 3
    %p144 = por %p142, %p143
    %p146 = scmp.ne.s32.totalorder %s129, %s145
    %p147 = scmp.eq.s32.totalorder %s16, 0
    %p148 = por %p146, %p147
    %p149 = scmp.le.s32.totalorder 1, %s10
    %p150 = scmp.lt.s32.totalorder %s10, 5
    %p151 = pnand %p149, %p150
    %p152 = pneg %p151
    // Predicated region
    $region9: #{norm_mlp_forward.2} parent=5 // pred_check
      _
    $region10: #{norm_mlp_forward.2} parent=5 // pred_check_branch
      %154 = sbr.rel (%p151) target = $region12
    $region11: #{norm_mlp_forward.2} parent=5 // pred_region
      %s155 = ssub.s32 %s10, 1
      // Predicated region
      $region13: #{norm_mlp_forward.2} parent=11 // pred_check
        %p156 = pneg %p71
      $region14: #{norm_mlp_forward.2} parent=11 // pred_check_branch
        %158 = sbr.rel (%p156) target = $region16
      $region15: #{norm_mlp_forward.2} parent=11 // pred_region
        _
      $region16: #{norm_mlp_forward.2} parent=11 // pred_fallthru
        _
      // Predicated region
      $region17: #{norm_mlp_forward.2} parent=11 // pred_check
        %p159 = pneg %p92
      $region18: #{norm_mlp_forward.2} parent=11 // pred_check_branch
        %161 = sbr.rel (%p159) target = $region20
      $region19: #{norm_mlp_forward.2} parent=11 // pred_region
        _
      $region20: #{norm_mlp_forward.2} parent=11 // pred_fallthru
        _
      // Predicated region
      $region21: #{norm_mlp_forward.2} parent=11 // pred_check
        %p162 = pneg %p113
      $region22: #{norm_mlp_forward.2} parent=11 // pred_check_branch
        %164 = sbr.rel (%p162) target = $region24
      $region23: #{norm_mlp_forward.2} parent=11 // pred_region
        _
      $region24: #{norm_mlp_forward.2} parent=11 // pred_fallthru
        _
    $region12: #{norm_mlp_forward.2} parent=5 // pred_fallthru
      _
    %p165 = scmp.lt.s32.totalorder %s10, 4
    // Predicated region
    $region25: #{norm_mlp_forward.2} parent=5 // pred_check
      %p166 = pneg %p165
    $region26: #{norm_mlp_forward.2} parent=5 // pred_check_branch
      %168 = sbr.rel (%p166) target = $region28
    $region27: #{norm_mlp_forward.2} parent=5 // pred_region
      // Predicated region
      $region29: #{norm_mlp_forward.2} parent=27 // pred_check
        %p169 = pneg %p44
      $region30: #{norm_mlp_forward.2} parent=27 // pred_check_branch
        %171 = sbr.rel (%p169) target = $region32
      $region31: #{norm_mlp_forward.2} parent=27 // pred_region
        %s172 = smul.u32 4, %s18
        %p173 = scmp.lt.s32.totalorder %s17, 1
        %s174 = scalar_select %p173, %s17, 1
        %p175 = scmp.lt.s32.totalorder %s172, 7
        %s176 = scalar_select %p175, %s172, 7
        %s177 = smul.addr %s174, 8
        %s178 = sadd.s32 %s176, %s177
        %s179 = smul.addr %s178, 4
        %s180 = scalar_lea.vmem %s0, %s179
        %s181 = smul.u32 4, %s18
      $region32: #{norm_mlp_forward.2} parent=27 // pred_fallthru
        _
    $region28: #{norm_mlp_forward.2} parent=5 // pred_fallthru
      _
    %p182 = scmp.le.s32.totalorder 1, %s10
    %p183 = scmp.lt.s32.totalorder %s10, 5
    %p184 = pnand %p182, %p183
    %p185 = pneg %p184
    // Predicated region
    $region33: #{norm_mlp_forward.2} parent=5 // pred_check
      _
    $region34: #{norm_mlp_forward.2} parent=5 // pred_check_branch
      %187 = sbr.rel (%p184) target = $region36
    $region35: #{norm_mlp_forward.2} parent=5 // pred_region
      %s188 = ssub.s32 %s10, 1
      %s189 = smul.u32 4, %s20
      %p190 = scmp.lt.s32.totalorder %s19, 1
      %s191 = scalar_select %p190, %s19, 1
      %p192 = scmp.lt.s32.totalorder %s189, 7
      %s193 = scalar_select %p192, %s189, 7
      %s194 = smul.addr %s191, 8
      %s195 = sadd.s32 %s193, %s194
      %s196 = smul.addr %s195, 4
      %s197 = scalar_lea.vmem %s0, %s196
      %p198 = pneg %p50
      %p199 = pneg %p47
      %p200 = pneg %p71
      %p201 = pneg %p68
      %p202 = pneg %p92
      %p203 = pneg %p89
      %p204 = pneg %p113
      %p205 = pneg %p110
      %p206 = pneg %p141
      %p207 = pneg %p138
      %p208 = scmp.lt.s32.totalorder %s19, 1
      %s209 = scalar_select %p208, %s19, 1
      %p210 = scmp.lt.s32.totalorder %s20, 1
      %s211 = scalar_select %p210, %s20, 1
      %s212 = smul.addr %s211, 16
      %s213 = smul.addr %s209, 32
      %s214 = sadd.s32 %s212, %s213
      %s215 = smul.addr %s214, 8
      %s216 = scalar_lea.vmem %s4, %s215
      %s217 = smul.u32 4, %s20
      %p218 = scmp.lt.s32.totalorder %s19, 1
      %s219 = scalar_select %p218, %s19, 1
      %p220 = scmp.lt.s32.totalorder %s217, 7
      %s221 = scalar_select %p220, %s217, 7
      %s222 = smul.addr %s219, 8
      %s223 = sadd.s32 %s221, %s222
      %s224 = smul.addr %s223, 4
      %s225 = scalar_lea.vmem %s0, %s224
      %s226 = smul.u32 4, %s20
      %p227 = scmp.lt.s32.totalorder %s19, 1
      %s228 = scalar_select %p227, %s19, 1
      %p229 = scmp.lt.s32.totalorder %s20, 1
      %s230 = scalar_select %p229, %s20, 1
      %s231 = smul.addr %s230, 16
      %s232 = smul.addr %s228, 32
      %s233 = sadd.s32 %s231, %s232
      %s234 = smul.addr %s233, 8
      %s235 = scalar_lea.vmem %s4, %s234
      %v236 = vld [vmem:[%s225] sm:$0x77]
      %v237 = vld [vmem:[%s225 + $0x8] sm:$0x77]
      %v238 = vld [vmem:[%s1] sm:$0xff]
      %v239 = vld [vmem:[%s1 + $0x8] sm:$0xff]
      %v240 = vld [vmem:[%s1 + $0x10] sm:$0xff]
      %v241 = vld [vmem:[%s1 + $0x18] sm:$0xff]
      %v242 = vld [vmem:[%s1 + $0x20] sm:$0xff]
      %v243 = vld [vmem:[%s1 + $0x28] sm:$0xff]
      %v244 = vld [vmem:[%s1 + $0x30] sm:$0xff]
      %v245 = vld [vmem:[%s1 + $0x38] sm:$0xff]
      %247 = vset.pattern.permute.xlu0 0
      %248 = vperm.xlu0 %247, %v238
      %v249 = vpop.permute.xlu0 %248
      %252 = vset.pattern.permute.xlu0 0
      %253 = vperm.xlu0 %252, %v239
      %v254 = vpop.permute.xlu0 %253
      %257 = vset.pattern.permute.xlu0 0
      %258 = vperm.xlu0 %257, %v240
      %v259 = vpop.permute.xlu0 %258
      %262 = vset.pattern.permute.xlu0 0
      %263 = vperm.xlu0 %262, %v241
      %v264 = vpop.permute.xlu0 %263
      %267 = vset.pattern.permute.xlu0 0
      %268 = vperm.xlu0 %267, %v242
      %v269 = vpop.permute.xlu0 %268
      %272 = vset.pattern.permute.xlu0 0
      %273 = vperm.xlu0 %272, %v243
      %v274 = vpop.permute.xlu0 %273
      %277 = vset.pattern.permute.xlu0 0
      %278 = vperm.xlu0 %277, %v244
      %v279 = vpop.permute.xlu0 %278
      %282 = vset.pattern.permute.xlu0 0
      %283 = vperm.xlu0 %282, %v245
      %v284 = vpop.permute.xlu0 %283
      %v288 = vperm.slane %v236, 0
      %v289 = vperm.slane %v236, 4
      %v290 = vperm.slane %v237, 0
      %v291 = vperm.slane %v237, 4
      %v296 = vperm.slane %v288, 0
      %v297 = vperm.slane %v289, 0
      %v298 = vperm.slane %v290, 0
      %v299 = vperm.slane %v291, 0
      %v300 = vmul.f32 %v249, %v296
      %v301 = vmul.f32 %v249, %v297
      %v302 = vmul.f32 %v249, %v298
      %v303 = vmul.f32 %v249, %v299
      %v304 = vmul.f32 %v254, %v296
      %v305 = vmul.f32 %v254, %v297
      %v306 = vmul.f32 %v254, %v298
      %v307 = vmul.f32 %v254, %v299
      %v308 = vmul.f32 %v259, %v296
      %v309 = vmul.f32 %v259, %v297
      %v310 = vmul.f32 %v259, %v298
      %v311 = vmul.f32 %v259, %v299
      %v312 = vmul.f32 %v264, %v296
      %v313 = vmul.f32 %v264, %v297
      %v314 = vmul.f32 %v264, %v298
      %v315 = vmul.f32 %v264, %v299
      %v316 = vmul.f32 %v269, %v296
      %v317 = vmul.f32 %v269, %v297
      %v318 = vmul.f32 %v269, %v298
      %v319 = vmul.f32 %v269, %v299
      %v320 = vmul.f32 %v274, %v296
      %v321 = vmul.f32 %v274, %v297
      %v322 = vmul.f32 %v274, %v298
      %v323 = vmul.f32 %v274, %v299
      %v324 = vmul.f32 %v279, %v296
      %v325 = vmul.f32 %v279, %v297
      %v326 = vmul.f32 %v279, %v298
      %v327 = vmul.f32 %v279, %v299
      %v328 = vmul.f32 %v284, %v296
      %v329 = vmul.f32 %v284, %v297
      %v330 = vmul.f32 %v284, %v298
      %v331 = vmul.f32 %v284, %v299
      %332 = vset.pattern.permute.xlu0 1
      %333 = vperm.xlu0 %332, %v238
      %v334 = vpop.permute.xlu0 %333
      %336 = vset.pattern.permute.xlu0 1
      %337 = vperm.xlu0 %336, %v239
      %v338 = vpop.permute.xlu0 %337
      %340 = vset.pattern.permute.xlu0 1
      %341 = vperm.xlu0 %340, %v240
      %v342 = vpop.permute.xlu0 %341
      %344 = vset.pattern.permute.xlu0 1
      %345 = vperm.xlu0 %344, %v241
      %v346 = vpop.permute.xlu0 %345
      %348 = vset.pattern.permute.xlu0 1
      %349 = vperm.xlu0 %348, %v242
      %v350 = vpop.permute.xlu0 %349
      %352 = vset.pattern.permute.xlu0 1
      %353 = vperm.xlu0 %352, %v243
      %v354 = vpop.permute.xlu0 %353
      %356 = vset.pattern.permute.xlu0 1
      %357 = vperm.xlu0 %356, %v244
      %v358 = vpop.permute.xlu0 %357
      %360 = vset.pattern.permute.xlu0 1
      %361 = vperm.xlu0 %360, %v245
      %v362 = vpop.permute.xlu0 %361
      %v364 = vperm.slane %v236, 1
      %v365 = vperm.slane %v236, 5
      %v366 = vperm.slane %v237, 1
      %v367 = vperm.slane %v237, 5
      %v372 = vperm.slane %v364, 1
      %v373 = vperm.slane %v365, 1
      %v374 = vperm.slane %v366, 1
      %v375 = vperm.slane %v367, 1
      %v376 = vmul.f32 %v334, %v372
      %v377 = vmul.f32 %v334, %v373
      %v378 = vmul.f32 %v334, %v374
      %v379 = vmul.f32 %v334, %v375
      %v380 = vmul.f32 %v338, %v372
      %v381 = vmul.f32 %v338, %v373
      %v382 = vmul.f32 %v338, %v374
      %v383 = vmul.f32 %v338, %v375
      %v384 = vmul.f32 %v342, %v372
      %v385 = vmul.f32 %v342, %v373
      %v386 = vmul.f32 %v342, %v374
      %v387 = vmul.f32 %v342, %v375
      %v388 = vmul.f32 %v346, %v372
      %v389 = vmul.f32 %v346, %v373
      %v390 = vmul.f32 %v346, %v374
      %v391 = vmul.f32 %v346, %v375
      %v392 = vmul.f32 %v350, %v372
      %v393 = vmul.f32 %v350, %v373
      %v394 = vmul.f32 %v350, %v374
      %v395 = vmul.f32 %v350, %v375
      %v396 = vmul.f32 %v354, %v372
      %v397 = vmul.f32 %v354, %v373
      %v398 = vmul.f32 %v354, %v374
      %v399 = vmul.f32 %v354, %v375
      %v400 = vmul.f32 %v358, %v372
      %v401 = vmul.f32 %v358, %v373
      %v402 = vmul.f32 %v358, %v374
      %v403 = vmul.f32 %v358, %v375
      %v404 = vmul.f32 %v362, %v372
      %v405 = vmul.f32 %v362, %v373
      %v406 = vmul.f32 %v362, %v374
      %v407 = vmul.f32 %v362, %v375
      %v408 = vadd.f32 %v300, %v376
      %v409 = vadd.f32 %v301, %v377
      %v410 = vadd.f32 %v302, %v378
      %v411 = vadd.f32 %v303, %v379
      %v412 = vadd.f32 %v304, %v380
      %v413 = vadd.f32 %v305, %v381
      %v414 = vadd.f32 %v306, %v382
      %v415 = vadd.f32 %v307, %v383
      %v416 = vadd.f32 %v308, %v384
      %v417 = vadd.f32 %v309, %v385
      %v418 = vadd.f32 %v310, %v386
      %v419 = vadd.f32 %v311, %v387
      %v420 = vadd.f32 %v312, %v388
      %v421 = vadd.f32 %v313, %v389
      %v422 = vadd.f32 %v314, %v390
      %v423 = vadd.f32 %v315, %v391
      %v424 = vadd.f32 %v316, %v392
      %v425 = vadd.f32 %v317, %v393
      %v426 = vadd.f32 %v318, %v394
      %v427 = vadd.f32 %v319, %v395
      %v428 = vadd.f32 %v320, %v396
      %v429 = vadd.f32 %v321, %v397
      %v430 = vadd.f32 %v322, %v398
      %v431 = vadd.f32 %v323, %v399
      %v432 = vadd.f32 %v324, %v400
      %v433 = vadd.f32 %v325, %v401
      %v434 = vadd.f32 %v326, %v402
      %v435 = vadd.f32 %v327, %v403
      %v436 = vadd.f32 %v328, %v404
      %v437 = vadd.f32 %v329, %v405
      %v438 = vadd.f32 %v330, %v406
      %v439 = vadd.f32 %v331, %v407
      %440 = vset.pattern.permute.xlu0 2
      %441 = vperm.xlu0 %440, %v238
      %v442 = vpop.permute.xlu0 %441
      %444 = vset.pattern.permute.xlu0 2
      %445 = vperm.xlu0 %444, %v239
      %v446 = vpop.permute.xlu0 %445
      %448 = vset.pattern.permute.xlu0 2
      %449 = vperm.xlu0 %448, %v240
      %v450 = vpop.permute.xlu0 %449
      %452 = vset.pattern.permute.xlu0 2
      %453 = vperm.xlu0 %452, %v241
      %v454 = vpop.permute.xlu0 %453
      %456 = vset.pattern.permute.xlu0 2
      %457 = vperm.xlu0 %456, %v242
      %v458 = vpop.permute.xlu0 %457
      %460 = vset.pattern.permute.xlu0 2
      %461 = vperm.xlu0 %460, %v243
      %v462 = vpop.permute.xlu0 %461
      %464 = vset.pattern.permute.xlu0 2
      %465 = vperm.xlu0 %464, %v244
      %v466 = vpop.permute.xlu0 %465
      %468 = vset.pattern.permute.xlu0 2
      %469 = vperm.xlu0 %468, %v245
      %v470 = vpop.permute.xlu0 %469
      %v472 = vperm.slane %v236, 2
      %v473 = vperm.slane %v236, 6
      %v474 = vperm.slane %v237, 2
      %v475 = vperm.slane %v237, 6
      %v480 = vperm.slane %v472, 2
      %v481 = vperm.slane %v473, 2
      %v482 = vperm.slane %v474, 2
      %v483 = vperm.slane %v475, 2
      %v484 = vmul.f32 %v442, %v480
      %v485 = vmul.f32 %v442, %v481
      %v486 = vmul.f32 %v442, %v482
      %v487 = vmul.f32 %v442, %v483
      %v488 = vmul.f32 %v446, %v480
      %v489 = vmul.f32 %v446, %v481
      %v490 = vmul.f32 %v446, %v482
      %v491 = vmul.f32 %v446, %v483
      %v492 = vmul.f32 %v450, %v480
      %v493 = vmul.f32 %v450, %v481
      %v494 = vmul.f32 %v450, %v482
      %v495 = vmul.f32 %v450, %v483
      %v496 = vmul.f32 %v454, %v480
      %v497 = vmul.f32 %v454, %v481
      %v498 = vmul.f32 %v454, %v482
      %v499 = vmul.f32 %v454, %v483
      %v500 = vmul.f32 %v458, %v480
      %v501 = vmul.f32 %v458, %v481
      %v502 = vmul.f32 %v458, %v482
      %v503 = vmul.f32 %v458, %v483
      %v504 = vmul.f32 %v462, %v480
      %v505 = vmul.f32 %v462, %v481
      %v506 = vmul.f32 %v462, %v482
      %v507 = vmul.f32 %v462, %v483
      %v508 = vmul.f32 %v466, %v480
      %v509 = vmul.f32 %v466, %v481
      %v510 = vmul.f32 %v466, %v482
      %v511 = vmul.f32 %v466, %v483
      %v512 = vmul.f32 %v470, %v480
      %v513 = vmul.f32 %v470, %v481
      %v514 = vmul.f32 %v470, %v482
      %v515 = vmul.f32 %v470, %v483
      %v516 = vadd.f32 %v408, %v484
      %v517 = vadd.f32 %v409, %v485
      %v518 = vadd.f32 %v410, %v486
      %v519 = vadd.f32 %v411, %v487
      %v520 = vadd.f32 %v412, %v488
      %v521 = vadd.f32 %v413, %v489
      %v522 = vadd.f32 %v414, %v490
      %v523 = vadd.f32 %v415, %v491
      %v524 = vadd.f32 %v416, %v492
      %v525 = vadd.f32 %v417, %v493
      %v526 = vadd.f32 %v418, %v494
      %v527 = vadd.f32 %v419, %v495
      %v528 = vadd.f32 %v420, %v496
      %v529 = vadd.f32 %v421, %v497
      %v530 = vadd.f32 %v422, %v498
      %v531 = vadd.f32 %v423, %v499
      %v532 = vadd.f32 %v424, %v500
      %v533 = vadd.f32 %v425, %v501
      %v534 = vadd.f32 %v426, %v502
      %v535 = vadd.f32 %v427, %v503
      %v536 = vadd.f32 %v428, %v504
      %v537 = vadd.f32 %v429, %v505
      %v538 = vadd.f32 %v430, %v506
      %v539 = vadd.f32 %v431, %v507
      %v540 = vadd.f32 %v432, %v508
      %v541 = vadd.f32 %v433, %v509
      %v542 = vadd.f32 %v434, %v510
      %v543 = vadd.f32 %v435, %v511
      %v544 = vadd.f32 %v436, %v512
      %v545 = vadd.f32 %v437, %v513
      %v546 = vadd.f32 %v438, %v514
      %v547 = vadd.f32 %v439, %v515
      %v548 = vld [vmem:[%s2] sm:$0xff]
      %v549 = vld [vmem:[%s2 + $0x8] sm:$0xff]
      %v550 = vld [vmem:[%s2 + $0x10] sm:$0xff]
      %v551 = vld [vmem:[%s2 + $0x18] sm:$0xff]
      %v552 = vld [vmem:[%s2 + $0x20] sm:$0xff]
      %v553 = vld [vmem:[%s2 + $0x28] sm:$0xff]
      %v554 = vld [vmem:[%s2 + $0x30] sm:$0xff]
      %v555 = vld [vmem:[%s2 + $0x38] sm:$0xff]
      %557 = vset.pattern.permute.xlu0 0
      %558 = vperm.xlu0 %557, %v548
      %v559 = vpop.permute.xlu0 %558
      %562 = vset.pattern.permute.xlu0 0
      %563 = vperm.xlu0 %562, %v549
      %v564 = vpop.permute.xlu0 %563
      %567 = vset.pattern.permute.xlu0 0
      %568 = vperm.xlu0 %567, %v550
      %v569 = vpop.permute.xlu0 %568
      %572 = vset.pattern.permute.xlu0 0
      %573 = vperm.xlu0 %572, %v551
      %v574 = vpop.permute.xlu0 %573
      %577 = vset.pattern.permute.xlu0 0
      %578 = vperm.xlu0 %577, %v552
      %v579 = vpop.permute.xlu0 %578
      %582 = vset.pattern.permute.xlu0 0
      %583 = vperm.xlu0 %582, %v553
      %v584 = vpop.permute.xlu0 %583
      %587 = vset.pattern.permute.xlu0 0
      %588 = vperm.xlu0 %587, %v554
      %v589 = vpop.permute.xlu0 %588
      %592 = vset.pattern.permute.xlu0 0
      %593 = vperm.xlu0 %592, %v555
      %v594 = vpop.permute.xlu0 %593
      %v596 = vadd.f32 %v516, %v559
      %v597 = vadd.f32 %v517, %v559
      %v598 = vadd.f32 %v518, %v559
      %v599 = vadd.f32 %v519, %v559
      %v600 = vadd.f32 %v520, %v564
      %v601 = vadd.f32 %v521, %v564
      %v602 = vadd.f32 %v522, %v564
      %v603 = vadd.f32 %v523, %v564
      %v604 = vadd.f32 %v524, %v569
      %v605 = vadd.f32 %v525, %v569
      %v606 = vadd.f32 %v526, %v569
      %v607 = vadd.f32 %v527, %v569
      %v608 = vadd.f32 %v528, %v574
      %v609 = vadd.f32 %v529, %v574
      %v610 = vadd.f32 %v530, %v574
      %v611 = vadd.f32 %v531, %v574
      %v612 = vadd.f32 %v532, %v579
      %v613 = vadd.f32 %v533, %v579
      %v614 = vadd.f32 %v534, %v579
      %v615 = vadd.f32 %v535, %v579
      %v616 = vadd.f32 %v536, %v584
      %v617 = vadd.f32 %v537, %v584
      %v618 = vadd.f32 %v538, %v584
      %v619 = vadd.f32 %v539, %v584
      %v620 = vadd.f32 %v540, %v589
      %v621 = vadd.f32 %v541, %v589
      %v622 = vadd.f32 %v542, %v589
      %v623 = vadd.f32 %v543, %v589
      %v624 = vadd.f32 %v544, %v594
      %v625 = vadd.f32 %v545, %v594
      %v626 = vadd.f32 %v546, %v594
      %v627 = vadd.f32 %v547, %v594
      %v628 = vmax.f32 %v596, 0.0
      %v629 = vmax.f32 %v597, 0.0
      %v630 = vmax.f32 %v598, 0.0
      %v631 = vmax.f32 %v599, 0.0
      %v632 = vmax.f32 %v600, 0.0
      %v633 = vmax.f32 %v601, 0.0
      %v634 = vmax.f32 %v602, 0.0
      %v635 = vmax.f32 %v603, 0.0
      %v636 = vmax.f32 %v604, 0.0
      %v637 = vmax.f32 %v605, 0.0
      %v638 = vmax.f32 %v606, 0.0
      %v639 = vmax.f32 %v607, 0.0
      %v640 = vmax.f32 %v608, 0.0
      %v641 = vmax.f32 %v609, 0.0
      %v642 = vmax.f32 %v610, 0.0
      %v643 = vmax.f32 %v611, 0.0
      %v644 = vmax.f32 %v612, 0.0
      %v645 = vmax.f32 %v613, 0.0
      %v646 = vmax.f32 %v614, 0.0
      %v647 = vmax.f32 %v615, 0.0
      %v648 = vmax.f32 %v616, 0.0
      %v649 = vmax.f32 %v617, 0.0
      %v650 = vmax.f32 %v618, 0.0
      %v651 = vmax.f32 %v619, 0.0
      %v652 = vmax.f32 %v620, 0.0
      %v653 = vmax.f32 %v621, 0.0
      %v654 = vmax.f32 %v622, 0.0
      %v655 = vmax.f32 %v623, 0.0
      %v656 = vmax.f32 %v624, 0.0
      %v657 = vmax.f32 %v625, 0.0
      %v658 = vmax.f32 %v626, 0.0
      %v659 = vmax.f32 %v627, 0.0
      %v660 = vld [vmem:[%s3] sm:$0xff]
      %v661 = vld [vmem:[%s3 + $0x8] sm:$0xff]
      %v662 = vld [vmem:[%s3 + $0x10] sm:$0xff]
      %v663 = vld [vmem:[%s3 + $0x18] sm:$0xff]
      %v664 = vld [vmem:[%s3 + $0x20] sm:$0xff]
      %v665 = vld [vmem:[%s3 + $0x28] sm:$0xff]
      %v666 = vld [vmem:[%s3 + $0x30] sm:$0xff]
      %v667 = vld [vmem:[%s3 + $0x38] sm:$0xff]
      %vm668 = vcmask 523264
      %v670 = vsel %vm668, %v660, 0
      %v673 = vsel %vm668, %v661, 0
      %v676 = vsel %vm668, %v662, 0
      %v679 = vsel %vm668, %v663, 0
      %v682 = vsel %vm668, %v664, 0
      %v685 = vsel %vm668, %v665, 0
      %v688 = vsel %vm668, %v666, 0
      %v691 = vsel %vm668, %v667, 0
      %693 = vmatpush.msra.mxu0 0.0
      %694 = vmatpush.msra.mxu0 0.0
      %695 = vmatpush.msra.mxu0 0.0
      %696 = vmatpush.msra.mxu0 0.0
      %697 = vmatpush.msra.mxu0 0.0
      %698 = vmatpush.msra.mxu0 0.0
      %699 = vmatpush.msra.mxu0 0.0
      %700 = vmatpush.msra.mxu0 0.0
      %v701 = vand.u32 %v656, 4294901760
      %702 = vmatpush.msra.mxu0 %v701
      %v703 = vand.u32 %v652, 4294901760
      %704 = vmatpush.msra.mxu0 %v703
      %v705 = vand.u32 %v648, 4294901760
      %706 = vmatpush.msra.mxu0 %v705
      %v707 = vand.u32 %v644, 4294901760
      %708 = vmatpush.msra.mxu0 %v707
      %v709 = vand.u32 %v640, 4294901760
      %710 = vmatpush.msra.mxu0 %v709
      %v711 = vand.u32 %v636, 4294901760
      %712 = vmatpush.msra.mxu0 %v711
      %v713 = vand.u32 %v632, 4294901760
      %714 = vmatpush.msra.mxu0 %v713
      %v715 = vand.u32 %v628, 4294901760
      %716 = vmatpush.msra.mxu0 %v715
      %v717 = vand.u32 %v670, 4294901760
      %v718 = vsub.f32 %v670, %v717
      %v719 = vand.u32 %v718, 4294901760
      %v720 = vsub.f32 %v718, %v719
      %v721 = vand.u32 %v720, 4294901760
      %722 = vmatmul.f32.gmra.mxu0 %v721
      %v723 = vpop.f32.mrf.mxu0
      %v724 = vadd.f32 0.0, %v723
      %v725 = vand.u32 %v673, 4294901760
      %v726 = vsub.f32 %v673, %v725
      %v727 = vand.u32 %v726, 4294901760
      %v728 = vsub.f32 %v726, %v727
      %v729 = vand.u32 %v728, 4294901760
      %730 = vmatmul.f32.gmra.mxu0 %v729
      %v731 = vpop.f32.mrf.mxu0
      %v732 = vadd.f32 0.0, %v731
      %v733 = vand.u32 %v676, 4294901760
      %v734 = vsub.f32 %v676, %v733
      %v735 = vand.u32 %v734, 4294901760
      %v736 = vsub.f32 %v734, %v735
      %v737 = vand.u32 %v736, 4294901760
      %738 = vmatmul.f32.gmra.mxu0 %v737
      %v739 = vpop.f32.mrf.mxu0
      %v740 = vadd.f32 0.0, %v739
      %v741 = vand.u32 %v679, 4294901760
      %v742 = vsub.f32 %v679, %v741
      %v743 = vand.u32 %v742, 4294901760
      %v744 = vsub.f32 %v742, %v743
      %v745 = vand.u32 %v744, 4294901760
      %746 = vmatmul.f32.gmra.mxu0 %v745
      %v747 = vpop.f32.mrf.mxu0
      %v748 = vadd.f32 0.0, %v747
      %v749 = vand.u32 %v682, 4294901760
      %v750 = vsub.f32 %v682, %v749
      %v751 = vand.u32 %v750, 4294901760
      %v752 = vsub.f32 %v750, %v751
      %v753 = vand.u32 %v752, 4294901760
      %754 = vmatmul.f32.gmra.mxu0 %v753
      %v755 = vpop.f32.mrf.mxu0
      %v756 = vadd.f32 0.0, %v755
      %v757 = vand.u32 %v685, 4294901760
      %v758 = vsub.f32 %v685, %v757
      %v759 = vand.u32 %v758, 4294901760
      %v760 = vsub.f32 %v758, %v759
      %v761 = vand.u32 %v760, 4294901760
      %762 = vmatmul.f32.gmra.mxu0 %v761
      %v763 = vpop.f32.mrf.mxu0
      %v764 = vadd.f32 0.0, %v763
      %v765 = vand.u32 %v688, 4294901760
      %v766 = vsub.f32 %v688, %v765
      %v767 = vand.u32 %v766, 4294901760
      %v768 = vsub.f32 %v766, %v767
      %v769 = vand.u32 %v768, 4294901760
      %770 = vmatmul.f32.gmra.mxu0 %v769
      %v771 = vpop.f32.mrf.mxu0
      %v772 = vadd.f32 0.0, %v771
      %v773 = vand.u32 %v691, 4294901760
      %v774 = vsub.f32 %v691, %v773
      %v775 = vand.u32 %v774, 4294901760
      %v776 = vsub.f32 %v774, %v775
      %v777 = vand.u32 %v776, 4294901760
      %778 = vmatmul.f32.gmra.mxu0 %v777
      %v779 = vpop.f32.mrf.mxu0
      %v780 = vadd.f32 0.0, %v779
      %781 = vdwg.mxu0
      %782 = vmatpush.msra.mxu0 0.0
      %783 = vmatpush.msra.mxu0 0.0
      %784 = vmatpush.msra.mxu0 0.0
      %785 = vmatpush.msra.mxu0 0.0
      %786 = vmatpush.msra.mxu0 0.0
      %787 = vmatpush.msra.mxu0 0.0
      %788 = vmatpush.msra.mxu0 0.0
      %789 = vmatpush.msra.mxu0 0.0
      %v790 = vand.u32 %v656, 4294901760
      %v791 = vsub.f32 %v656, %v790
      %v792 = vand.u32 %v791, 4294901760
      %v793 = vsub.f32 %v791, %v792
      %v794 = vand.u32 %v793, 4294901760
      %795 = vmatpush.msra.mxu0 %v794
      %v796 = vand.u32 %v652, 4294901760
      %v797 = vsub.f32 %v652, %v796
      %v798 = vand.u32 %v797, 4294901760
      %v799 = vsub.f32 %v797, %v798
      %v800 = vand.u32 %v799, 4294901760
      %801 = vmatpush.msra.mxu0 %v800
      %v802 = vand.u32 %v648, 4294901760
      %v803 = vsub.f32 %v648, %v802
      %v804 = vand.u32 %v803, 4294901760
      %v805 = vsub.f32 %v803, %v804
      %v806 = vand.u32 %v805, 4294901760
      %807 = vmatpush.msra.mxu0 %v806
      %v808 = vand.u32 %v644, 4294901760
      %v809 = vsub.f32 %v644, %v808
      %v810 = vand.u32 %v809, 4294901760
      %v811 = vsub.f32 %v809, %v810
      %v812 = vand.u32 %v811, 4294901760
      %813 = vmatpush.msra.mxu0 %v812
      %v814 = vand.u32 %v640, 4294901760
      %v815 = vsub.f32 %v640, %v814
      %v816 = vand.u32 %v815, 4294901760
      %v817 = vsub.f32 %v815, %v816
      %v818 = vand.u32 %v817, 4294901760
      %819 = vmatpush.msra.mxu0 %v818
      %v820 = vand.u32 %v636, 4294901760
      %v821 = vsub.f32 %v636, %v820
      %v822 = vand.u32 %v821, 4294901760
      %v823 = vsub.f32 %v821, %v822
      %v824 = vand.u32 %v823, 4294901760
      %825 = vmatpush.msra.mxu0 %v824
      %v826 = vand.u32 %v632, 4294901760
      %v827 = vsub.f32 %v632, %v826
      %v828 = vand.u32 %v827, 4294901760
      %v829 = vsub.f32 %v827, %v828
      %v830 = vand.u32 %v829, 4294901760
      %831 = vmatpush.msra.mxu0 %v830
      %v832 = vand.u32 %v628, 4294901760
      %v833 = vsub.f32 %v628, %v832
      %v834 = vand.u32 %v833, 4294901760
      %v835 = vsub.f32 %v833, %v834
      %v836 = vand.u32 %v835, 4294901760
      %837 = vmatpush.msra.mxu0 %v836
      %v838 = vand.u32 %v670, 4294901760
      %839 = vmatmul.f32.gmra.mxu0 %v838
      %v840 = vpop.f32.mrf.mxu0
      %v841 = vadd.f32 %v724, %v840
      %v842 = vand.u32 %v673, 4294901760
      %843 = vmatmul.f32.gmra.mxu0 %v842
      %v844 = vpop.f32.mrf.mxu0
      %v845 = vadd.f32 %v732, %v844
      %v846 = vand.u32 %v676, 4294901760
      %847 = vmatmul.f32.gmra.mxu0 %v846
      %v848 = vpop.f32.mrf.mxu0
      %v849 = vadd.f32 %v740, %v848
      %v850 = vand.u32 %v679, 4294901760
      %851 = vmatmul.f32.gmra.mxu0 %v850
      %v852 = vpop.f32.mrf.mxu0
      %v853 = vadd.f32 %v748, %v852
      %v854 = vand.u32 %v682, 4294901760
      %855 = vmatmul.f32.gmra.mxu0 %v854
      %v856 = vpop.f32.mrf.mxu0
      %v857 = vadd.f32 %v756, %v856
      %v858 = vand.u32 %v685, 4294901760
      %859 = vmatmul.f32.gmra.mxu0 %v858
      %v860 = vpop.f32.mrf.mxu0
      %v861 = vadd.f32 %v764, %v860
      %v862 = vand.u32 %v688, 4294901760
      %863 = vmatmul.f32.gmra.mxu0 %v862
      %v864 = vpop.f32.mrf.mxu0
      %v865 = vadd.f32 %v772, %v864
      %v866 = vand.u32 %v691, 4294901760
      %867 = vmatmul.f32.gmra.mxu0 %v866
      %v868 = vpop.f32.mrf.mxu0
      %v869 = vadd.f32 %v780, %v868
      %870 = vdwg.mxu0
      %871 = vmatpush.msra.mxu0 0.0
      %872 = vmatpush.msra.mxu0 0.0
      %873 = vmatpush.msra.mxu0 0.0
      %874 = vmatpush.msra.mxu0 0.0
      %875 = vmatpush.msra.mxu0 0.0
      %876 = vmatpush.msra.mxu0 0.0
      %877 = vmatpush.msra.mxu0 0.0
      %878 = vmatpush.msra.mxu0 0.0
      %v879 = vand.u32 %v656, 4294901760
      %v880 = vsub.f32 %v656, %v879
      %881 = vmatpush.msra.mxu0 %v880
      %v882 = vand.u32 %v652, 4294901760
      %v883 = vsub.f32 %v652, %v882
      %884 = vmatpush.msra.mxu0 %v883
      %v885 = vand.u32 %v648, 4294901760
      %v886 = vsub.f32 %v648, %v885
      %887 = vmatpush.msra.mxu0 %v886
      %v888 = vand.u32 %v644, 4294901760
      %v889 = vsub.f32 %v644, %v888
      %890 = vmatpush.msra.mxu0 %v889
      %v891 = vand.u32 %v640, 4294901760
      %v892 = vsub.f32 %v640, %v891
      %893 = vmatpush.msra.mxu0 %v892
      %v894 = vand.u32 %v636, 4294901760
      %v895 = vsub.f32 %v636, %v894
      %896 = vmatpush.msra.mxu0 %v895
      %v897 = vand.u32 %v632, 4294901760
      %v898 = vsub.f32 %v632, %v897
      %899 = vmatpush.msra.mxu0 %v898
      %v900 = vand.u32 %v628, 4294901760
      %v901 = vsub.f32 %v628, %v900
      %902 = vmatpush.msra.mxu0 %v901
      %v903 = vand.u32 %v670, 4294901760
      %v904 = vsub.f32 %v670, %v903
      %905 = vmatmul.f32.gmra.mxu0 %v904
      %v906 = vpop.f32.mrf.mxu0
      %v907 = vadd.f32 %v841, %v906
      %v908 = vand.u32 %v673, 4294901760
      %v909 = vsub.f32 %v673, %v908
      %910 = vmatmul.f32.gmra.mxu0 %v909
      %v911 = vpop.f32.mrf.mxu0
      %v912 = vadd.f32 %v845, %v911
      %v913 = vand.u32 %v676, 4294901760
      %v914 = vsub.f32 %v676, %v913
      %915 = vmatmul.f32.gmra.mxu0 %v914
      %v916 = vpop.f32.mrf.mxu0
      %v917 = vadd.f32 %v849, %v916
      %v918 = vand.u32 %v679, 4294901760
      %v919 = vsub.f32 %v679, %v918
      %920 = vmatmul.f32.gmra.mxu0 %v919
      %v921 = vpop.f32.mrf.mxu0
      %v922 = vadd.f32 %v853, %v921
      %v923 = vand.u32 %v682, 4294901760
      %v924 = vsub.f32 %v682, %v923
      %925 = vmatmul.f32.gmra.mxu0 %v924
      %v926 = vpop.f32.mrf.mxu0
      %v927 = vadd.f32 %v857, %v926
      %v928 = vand.u32 %v685, 4294901760
      %v929 = vsub.f32 %v685, %v928
      %930 = vmatmul.f32.gmra.mxu0 %v929
      %v931 = vpop.f32.mrf.mxu0
      %v932 = vadd.f32 %v861, %v931
      %v933 = vand.u32 %v688, 4294901760
      %v934 = vsub.f32 %v688, %v933
      %935 = vmatmul.f32.gmra.mxu0 %v934
      %v936 = vpop.f32.mrf.mxu0
      %v937 = vadd.f32 %v865, %v936
      %v938 = vand.u32 %v691, 4294901760
      %v939 = vsub.f32 %v691, %v938
      %940 = vmatmul.f32.gmra.mxu0 %v939
      %v941 = vpop.f32.mrf.mxu0
      %v942 = vadd.f32 %v869, %v941
      %943 = vdwg.mxu0
      %944 = vmatpush.msra.mxu0 0.0
      %945 = vmatpush.msra.mxu0 0.0
      %946 = vmatpush.msra.mxu0 0.0
      %947 = vmatpush.msra.mxu0 0.0
      %948 = vmatpush.msra.mxu0 0.0
      %949 = vmatpush.msra.mxu0 0.0
      %950 = vmatpush.msra.mxu0 0.0
      %951 = vmatpush.msra.mxu0 0.0
      %v952 = vand.u32 %v656, 4294901760
      %953 = vmatpush.msra.mxu0 %v952
      %v954 = vand.u32 %v652, 4294901760
      %955 = vmatpush.msra.mxu0 %v954
      %v956 = vand.u32 %v648, 4294901760
      %957 = vmatpush.msra.mxu0 %v956
      %v958 = vand.u32 %v644, 4294901760
      %959 = vmatpush.msra.mxu0 %v958
      %v960 = vand.u32 %v640, 4294901760
      %961 = vmatpush.msra.mxu0 %v960
      %v962 = vand.u32 %v636, 4294901760
      %963 = vmatpush.msra.mxu0 %v962
      %v964 = vand.u32 %v632, 4294901760
      %965 = vmatpush.msra.mxu0 %v964
      %v966 = vand.u32 %v628, 4294901760
      %967 = vmatpush.msra.mxu0 %v966
      %v968 = vand.u32 %v670, 4294901760
      %v969 = vsub.f32 %v670, %v968
      %v970 = vand.u32 %v969, 4294901760
      %971 = vmatmul.f32.gmra.mxu0 %v970
      %v972 = vpop.f32.mrf.mxu0
      %v973 = vadd.f32 %v907, %v972
      %v974 = vand.u32 %v673, 4294901760
      %v975 = vsub.f32 %v673, %v974
      %v976 = vand.u32 %v975, 4294901760
      %977 = vmatmul.f32.gmra.mxu0 %v976
      %v978 = vpop.f32.mrf.mxu0
      %v979 = vadd.f32 %v912, %v978
      %v980 = vand.u32 %v676, 4294901760
      %v981 = vsub.f32 %v676, %v980
      %v982 = vand.u32 %v981, 4294901760
      %983 = vmatmul.f32.gmra.mxu0 %v982
      %v984 = vpop.f32.mrf.mxu0
      %v985 = vadd.f32 %v917, %v984
      %v986 = vand.u32 %v679, 4294901760
      %v987 = vsub.f32 %v679, %v986
      %v988 = vand.u32 %v987, 4294901760
      %989 = vmatmul.f32.gmra.mxu0 %v988
      %v990 = vpop.f32.mrf.mxu0
      %v991 = vadd.f32 %v922, %v990
      %v992 = vand.u32 %v682, 4294901760
      %v993 = vsub.f32 %v682, %v992
      %v994 = vand.u32 %v993, 4294901760
      %995 = vmatmul.f32.gmra.mxu0 %v994
      %v996 = vpop.f32.mrf.mxu0
      %v997 = vadd.f32 %v927, %v996
      %v998 = vand.u32 %v685, 4294901760
      %v999 = vsub.f32 %v685, %v998
      %v1000 = vand.u32 %v999, 4294901760
      %1001 = vmatmul.f32.gmra.mxu0 %v1000
      %v1002 = vpop.f32.mrf.mxu0
      %v1003 = vadd.f32 %v932, %v1002
      %v1004 = vand.u32 %v688, 4294901760
      %v1005 = vsub.f32 %v688, %v1004
      %v1006 = vand.u32 %v1005, 4294901760
      %1007 = vmatmul.f32.gmra.mxu0 %v1006
      %v1008 = vpop.f32.mrf.mxu0
      %v1009 = vadd.f32 %v937, %v1008
      %v1010 = vand.u32 %v691, 4294901760
      %v1011 = vsub.f32 %v691, %v1010
      %v1012 = vand.u32 %v1011, 4294901760
      %1013 = vmatmul.f32.gmra.mxu0 %v1012
      %v1014 = vpop.f32.mrf.mxu0
      %v1015 = vadd.f32 %v942, %v1014
      %1016 = vdwg.mxu0
      %1017 = vmatpush.msra.mxu0 0.0
      %1018 = vmatpush.msra.mxu0 0.0
      %1019 = vmatpush.msra.mxu0 0.0
      %1020 = vmatpush.msra.mxu0 0.0
      %1021 = vmatpush.msra.mxu0 0.0
      %1022 = vmatpush.msra.mxu0 0.0
      %1023 = vmatpush.msra.mxu0 0.0
      %1024 = vmatpush.msra.mxu0 0.0
      %v1025 = vand.u32 %v656, 4294901760
      %v1026 = vsub.f32 %v656, %v1025
      %v1027 = vand.u32 %v1026, 4294901760
      %1028 = vmatpush.msra.mxu0 %v1027
      %v1029 = vand.u32 %v652, 4294901760
      %v1030 = vsub.f32 %v652, %v1029
      %v1031 = vand.u32 %v1030, 4294901760
      %1032 = vmatpush.msra.mxu0 %v1031
      %v1033 = vand.u32 %v648, 4294901760
      %v1034 = vsub.f32 %v648, %v1033
      %v1035 = vand.u32 %v1034, 4294901760
      %1036 = vmatpush.msra.mxu0 %v1035
      %v1037 = vand.u32 %v644, 4294901760
      %v1038 = vsub.f32 %v644, %v1037
      %v1039 = vand.u32 %v1038, 4294901760
      %1040 = vmatpush.msra.mxu0 %v1039
      %v1041 = vand.u32 %v640, 4294901760
      %v1042 = vsub.f32 %v640, %v1041
      %v1043 = vand.u32 %v1042, 4294901760
      %1044 = vmatpush.msra.mxu0 %v1043
      %v1045 = vand.u32 %v636, 4294901760
      %v1046 = vsub.f32 %v636, %v1045
      %v1047 = vand.u32 %v1046, 4294901760
      %1048 = vmatpush.msra.mxu0 %v1047
      %v1049 = vand.u32 %v632, 4294901760
      %v1050 = vsub.f32 %v632, %v1049
      %v1051 = vand.u32 %v1050, 4294901760
      %1052 = vmatpush.msra.mxu0 %v1051
      %v1053 = vand.u32 %v628, 4294901760
      %v1054 = vsub.f32 %v628, %v1053
      %v1055 = vand.u32 %v1054, 4294901760
      %1056 = vmatpush.msra.mxu0 %v1055
      %v1057 = vand.u32 %v670, 4294901760
      %1058 = vmatmul.f32.gmra.mxu0 %v1057
      %v1059 = vpop.f32.mrf.mxu0
      %v1060 = vadd.f32 %v973, %v1059
      %v1061 = vand.u32 %v673, 4294901760
      %1062 = vmatmul.f32.gmra.mxu0 %v1061
      %v1063 = vpop.f32.mrf.mxu0
      %v1064 = vadd.f32 %v979, %v1063
      %v1065 = vand.u32 %v676, 4294901760
      %1066 = vmatmul.f32.gmra.mxu0 %v1065
      %v1067 = vpop.f32.mrf.mxu0
      %v1068 = vadd.f32 %v985, %v1067
      %v1069 = vand.u32 %v679, 4294901760
      %1070 = vmatmul.f32.gmra.mxu0 %v1069
      %v1071 = vpop.f32.mrf.mxu0
      %v1072 = vadd.f32 %v991, %v1071
      %v1073 = vand.u32 %v682, 4294901760
      %1074 = vmatmul.f32.gmra.mxu0 %v1073
      %v1075 = vpop.f32.mrf.mxu0
      %v1076 = vadd.f32 %v997, %v1075
      %v1077 = vand.u32 %v685, 4294901760
      %1078 = vmatmul.f32.gmra.mxu0 %v1077
      %v1079 = vpop.f32.mrf.mxu0
      %v1080 = vadd.f32 %v1003, %v1079
      %v1081 = vand.u32 %v688, 4294901760
      %1082 = vmatmul.f32.gmra.mxu0 %v1081
      %v1083 = vpop.f32.mrf.mxu0
      %v1084 = vadd.f32 %v1009, %v1083
      %v1085 = vand.u32 %v691, 4294901760
      %1086 = vmatmul.f32.gmra.mxu0 %v1085
      %v1087 = vpop.f32.mrf.mxu0
      %v1088 = vadd.f32 %v1015, %v1087
      %1089 = vdwg.mxu0
      %1090 = vmatpush.msra.mxu0 0.0
      %1091 = vmatpush.msra.mxu0 0.0
      %1092 = vmatpush.msra.mxu0 0.0
      %1093 = vmatpush.msra.mxu0 0.0
      %1094 = vmatpush.msra.mxu0 0.0
      %1095 = vmatpush.msra.mxu0 0.0
      %1096 = vmatpush.msra.mxu0 0.0
      %1097 = vmatpush.msra.mxu0 0.0
      %v1098 = vand.u32 %v656, 4294901760
      %1099 = vmatpush.msra.mxu0 %v1098
      %v1100 = vand.u32 %v652, 4294901760
      %1101 = vmatpush.msra.mxu0 %v1100
      %v1102 = vand.u32 %v648, 4294901760
      %1103 = vmatpush.msra.mxu0 %v1102
      %v1104 = vand.u32 %v644, 4294901760
      %1105 = vmatpush.msra.mxu0 %v1104
      %v1106 = vand.u32 %v640, 4294901760
      %1107 = vmatpush.msra.mxu0 %v1106
      %v1108 = vand.u32 %v636, 4294901760
      %1109 = vmatpush.msra.mxu0 %v1108
      %v1110 = vand.u32 %v632, 4294901760
      %1111 = vmatpush.msra.mxu0 %v1110
      %v1112 = vand.u32 %v628, 4294901760
      %1113 = vmatpush.msra.mxu0 %v1112
      %v1114 = vand.u32 %v670, 4294901760
      %1115 = vmatmul.f32.gmra.mxu0 %v1114
      %v1116 = vpop.f32.mrf.mxu0
      %v1117 = vadd.f32 %v1060, %v1116
      %v1118 = vand.u32 %v673, 4294901760
      %1119 = vmatmul.f32.gmra.mxu0 %v1118
      %v1120 = vpop.f32.mrf.mxu0
      %v1121 = vadd.f32 %v1064, %v1120
      %v1122 = vand.u32 %v676, 4294901760
      %1123 = vmatmul.f32.gmra.mxu0 %v1122
      %v1124 = vpop.f32.mrf.mxu0
      %v1125 = vadd.f32 %v1068, %v1124
      %v1126 = vand.u32 %v679, 4294901760
      %1127 = vmatmul.f32.gmra.mxu0 %v1126
      %v1128 = vpop.f32.mrf.mxu0
      %v1129 = vadd.f32 %v1072, %v1128
      %v1130 = vand.u32 %v682, 4294901760
      %1131 = vmatmul.f32.gmra.mxu0 %v1130
      %v1132 = vpop.f32.mrf.mxu0
      %v1133 = vadd.f32 %v1076, %v1132
      %v1134 = vand.u32 %v685, 4294901760
      %1135 = vmatmul.f32.gmra.mxu0 %v1134
      %v1136 = vpop.f32.mrf.mxu0
      %v1137 = vadd.f32 %v1080, %v1136
      %v1138 = vand.u32 %v688, 4294901760
      %1139 = vmatmul.f32.gmra.mxu0 %v1138
      %v1140 = vpop.f32.mrf.mxu0
      %v1141 = vadd.f32 %v1084, %v1140
      %v1142 = vand.u32 %v691, 4294901760
      %1143 = vmatmul.f32.gmra.mxu0 %v1142
      %v1144 = vpop.f32.mrf.mxu0
      %v1145 = vadd.f32 %v1088, %v1144
      %1146 = vdwg.mxu0
      %1147 = vmatpush.msra.mxu0 0.0
      %1148 = vmatpush.msra.mxu0 0.0
      %1149 = vmatpush.msra.mxu0 0.0
      %1150 = vmatpush.msra.mxu0 0.0
      %1151 = vmatpush.msra.mxu0 0.0
      %1152 = vmatpush.msra.mxu0 0.0
      %1153 = vmatpush.msra.mxu0 0.0
      %1154 = vmatpush.msra.mxu0 0.0
      %v1155 = vand.u32 %v657, 4294901760
      %1156 = vmatpush.msra.mxu0 %v1155
      %v1157 = vand.u32 %v653, 4294901760
      %1158 = vmatpush.msra.mxu0 %v1157
      %v1159 = vand.u32 %v649, 4294901760
      %1160 = vmatpush.msra.mxu0 %v1159
      %v1161 = vand.u32 %v645, 4294901760
      %1162 = vmatpush.msra.mxu0 %v1161
      %v1163 = vand.u32 %v641, 4294901760
      %1164 = vmatpush.msra.mxu0 %v1163
      %v1165 = vand.u32 %v637, 4294901760
      %1166 = vmatpush.msra.mxu0 %v1165
      %v1167 = vand.u32 %v633, 4294901760
      %1168 = vmatpush.msra.mxu0 %v1167
      %v1169 = vand.u32 %v629, 4294901760
      %1170 = vmatpush.msra.mxu0 %v1169
      %v1171 = vand.u32 %v670, 4294901760
      %v1172 = vsub.f32 %v670, %v1171
      %v1173 = vand.u32 %v1172, 4294901760
      %v1174 = vsub.f32 %v1172, %v1173
      %v1175 = vand.u32 %v1174, 4294901760
      %1176 = vmatmul.f32.gmra.mxu0 %v1175
      %v1177 = vpop.f32.mrf.mxu0
      %v1178 = vadd.f32 0.0, %v1177
      %v1179 = vand.u32 %v673, 4294901760
      %v1180 = vsub.f32 %v673, %v1179
      %v1181 = vand.u32 %v1180, 4294901760
      %v1182 = vsub.f32 %v1180, %v1181
      %v1183 = vand.u32 %v1182, 4294901760
      %1184 = vmatmul.f32.gmra.mxu0 %v1183
      %v1185 = vpop.f32.mrf.mxu0
      %v1186 = vadd.f32 0.0, %v1185
      %v1187 = vand.u32 %v676, 4294901760
      %v1188 = vsub.f32 %v676, %v1187
      %v1189 = vand.u32 %v1188, 4294901760
      %v1190 = vsub.f32 %v1188, %v1189
      %v1191 = vand.u32 %v1190, 4294901760
      %1192 = vmatmul.f32.gmra.mxu0 %v1191
      %v1193 = vpop.f32.mrf.mxu0
      %v1194 = vadd.f32 0.0, %v1193
      %v1195 = vand.u32 %v679, 4294901760
      %v1196 = vsub.f32 %v679, %v1195
      %v1197 = vand.u32 %v1196, 4294901760
      %v1198 = vsub.f32 %v1196, %v1197
      %v1199 = vand.u32 %v1198, 4294901760
      %1200 = vmatmul.f32.gmra.mxu0 %v1199
      %v1201 = vpop.f32.mrf.mxu0
      %v1202 = vadd.f32 0.0, %v1201
      %v1203 = vand.u32 %v682, 4294901760
      %v1204 = vsub.f32 %v682, %v1203
      %v1205 = vand.u32 %v1204, 4294901760
      %v1206 = vsub.f32 %v1204, %v1205
      %v1207 = vand.u32 %v1206, 4294901760
      %1208 = vmatmul.f32.gmra.mxu0 %v1207
      %v1209 = vpop.f32.mrf.mxu0
      %v1210 = vadd.f32 0.0, %v1209
      %v1211 = vand.u32 %v685, 4294901760
      %v1212 = vsub.f32 %v685, %v1211
      %v1213 = vand.u32 %v1212, 4294901760
      %v1214 = vsub.f32 %v1212, %v1213
      %v1215 = vand.u32 %v1214, 4294901760
      %1216 = vmatmul.f32.gmra.mxu0 %v1215
      %v1217 = vpop.f32.mrf.mxu0
      %v1218 = vadd.f32 0.0, %v1217
      %v1219 = vand.u32 %v688, 4294901760
      %v1220 = vsub.f32 %v688, %v1219
      %v1221 = vand.u32 %v1220, 4294901760
      %v1222 = vsub.f32 %v1220, %v1221
      %v1223 = vand.u32 %v1222, 4294901760
      %1224 = vmatmul.f32.gmra.mxu0 %v1223
      %v1225 = vpop.f32.mrf.mxu0
      %v1226 = vadd.f32 0.0, %v1225
      %v1227 = vand.u32 %v691, 4294901760
      %v1228 = vsub.f32 %v691, %v1227
      %v1229 = vand.u32 %v1228, 4294901760
      %v1230 = vsub.f32 %v1228, %v1229
      %v1231 = vand.u32 %v1230, 4294901760
      %1232 = vmatmul.f32.gmra.mxu0 %v1231
      %v1233 = vpop.f32.mrf.mxu0
      %v1234 = vadd.f32 0.0, %v1233
      %1235 = vdwg.mxu0
      %1236 = vmatpush.msra.mxu0 0.0
      %1237 = vmatpush.msra.mxu0 0.0
      %1238 = vmatpush.msra.mxu0 0.0
      %1239 = vmatpush.msra.mxu0 0.0
      %1240 = vmatpush.msra.mxu0 0.0
      %1241 = vmatpush.msra.mxu0 0.0
      %1242 = vmatpush.msra.mxu0 0.0
      %1243 = vmatpush.msra.mxu0 0.0
      %v1244 = vand.u32 %v657, 4294901760
      %v1245 = vsub.f32 %v657, %v1244
      %v1246 = vand.u32 %v1245, 4294901760
      %v1247 = vsub.f32 %v1245, %v1246
      %v1248 = vand.u32 %v1247, 4294901760
      %1249 = vmatpush.msra.mxu0 %v1248
      %v1250 = vand.u32 %v653, 4294901760
      %v1251 = vsub.f32 %v653, %v1250
      %v1252 = vand.u32 %v1251, 4294901760
      %v1253 = vsub.f32 %v1251, %v1252
      %v1254 = vand.u32 %v1253, 4294901760
      %1255 = vmatpush.msra.mxu0 %v1254
      %v1256 = vand.u32 %v649, 4294901760
      %v1257 = vsub.f32 %v649, %v1256
      %v1258 = vand.u32 %v1257, 4294901760
      %v1259 = vsub.f32 %v1257, %v1258
      %v1260 = vand.u32 %v1259, 4294901760
      %1261 = vmatpush.msra.mxu0 %v1260
      %v1262 = vand.u32 %v645, 4294901760
      %v1263 = vsub.f32 %v645, %v1262
      %v1264 = vand.u32 %v1263, 4294901760
      %v1265 = vsub.f32 %v1263, %v1264
      %v1266 = vand.u32 %v1265, 4294901760
      %1267 = vmatpush.msra.mxu0 %v1266
      %v1268 = vand.u32 %v641, 4294901760
      %v1269 = vsub.f32 %v641, %v1268
      %v1270 = vand.u32 %v1269, 4294901760
      %v1271 = vsub.f32 %v1269, %v1270
      %v1272 = vand.u32 %v1271, 4294901760
      %1273 = vmatpush.msra.mxu0 %v1272
      %v1274 = vand.u32 %v637, 4294901760
      %v1275 = vsub.f32 %v637, %v1274
      %v1276 = vand.u32 %v1275, 4294901760
      %v1277 = vsub.f32 %v1275, %v1276
      %v1278 = vand.u32 %v1277, 4294901760
      %1279 = vmatpush.msra.mxu0 %v1278
      %v1280 = vand.u32 %v633, 4294901760
      %v1281 = vsub.f32 %v633, %v1280
      %v1282 = vand.u32 %v1281, 4294901760
      %v1283 = vsub.f32 %v1281, %v1282
      %v1284 = vand.u32 %v1283, 4294901760
      %1285 = vmatpush.msra.mxu0 %v1284
      %v1286 = vand.u32 %v629, 4294901760
      %v1287 = vsub.f32 %v629, %v1286
      %v1288 = vand.u32 %v1287, 4294901760
      %v1289 = vsub.f32 %v1287, %v1288
      %v1290 = vand.u32 %v1289, 4294901760
      %1291 = vmatpush.msra.mxu0 %v1290
      %v1292 = vand.u32 %v670, 4294901760
      %1293 = vmatmul.f32.gmra.mxu0 %v1292
      %v1294 = vpop.f32.mrf.mxu0
      %v1295 = vadd.f32 %v1178, %v1294
      %v1296 = vand.u32 %v673, 4294901760
      %1297 = vmatmul.f32.gmra.mxu0 %v1296
      %v1298 = vpop.f32.mrf.mxu0
      %v1299 = vadd.f32 %v1186, %v1298
      %v1300 = vand.u32 %v676, 4294901760
      %1301 = vmatmul.f32.gmra.mxu0 %v1300
      %v1302 = vpop.f32.mrf.mxu0
      %v1303 = vadd.f32 %v1194, %v1302
      %v1304 = vand.u32 %v679, 4294901760
      %1305 = vmatmul.f32.gmra.mxu0 %v1304
      %v1306 = vpop.f32.mrf.mxu0
      %v1307 = vadd.f32 %v1202, %v1306
      %v1308 = vand.u32 %v682, 4294901760
      %1309 = vmatmul.f32.gmra.mxu0 %v1308
      %v1310 = vpop.f32.mrf.mxu0
      %v1311 = vadd.f32 %v1210, %v1310
      %v1312 = vand.u32 %v685, 4294901760
      %1313 = vmatmul.f32.gmra.mxu0 %v1312
      %v1314 = vpop.f32.mrf.mxu0
      %v1315 = vadd.f32 %v1218, %v1314
      %v1316 = vand.u32 %v688, 4294901760
      %1317 = vmatmul.f32.gmra.mxu0 %v1316
      %v1318 = vpop.f32.mrf.mxu0
      %v1319 = vadd.f32 %v1226, %v1318
      %v1320 = vand.u32 %v691, 4294901760
      %1321 = vmatmul.f32.gmra.mxu0 %v1320
      %v1322 = vpop.f32.mrf.mxu0
      %v1323 = vadd.f32 %v1234, %v1322
      %1324 = vdwg.mxu0
      %1325 = vmatpush.msra.mxu0 0.0
      %1326 = vmatpush.msra.mxu0 0.0
      %1327 = vmatpush.msra.mxu0 0.0
      %1328 = vmatpush.msra.mxu0 0.0
      %1329 = vmatpush.msra.mxu0 0.0
      %1330 = vmatpush.msra.mxu0 0.0
      %1331 = vmatpush.msra.mxu0 0.0
      %1332 = vmatpush.msra.mxu0 0.0
      %v1333 = vand.u32 %v657, 4294901760
      %v1334 = vsub.f32 %v657, %v1333
      %1335 = vmatpush.msra.mxu0 %v1334
      %v1336 = vand.u32 %v653, 4294901760
      %v1337 = vsub.f32 %v653, %v1336
      %1338 = vmatpush.msra.mxu0 %v1337
      %v1339 = vand.u32 %v649, 4294901760
      %v1340 = vsub.f32 %v649, %v1339
      %1341 = vmatpush.msra.mxu0 %v1340
      %v1342 = vand.u32 %v645, 4294901760
      %v1343 = vsub.f32 %v645, %v1342
      %1344 = vmatpush.msra.mxu0 %v1343
      %v1345 = vand.u32 %v641, 4294901760
      %v1346 = vsub.f32 %v641, %v1345
      %1347 = vmatpush.msra.mxu0 %v1346
      %v1348 = vand.u32 %v637, 4294901760
      %v1349 = vsub.f32 %v637, %v1348
      %1350 = vmatpush.msra.mxu0 %v1349
      %v1351 = vand.u32 %v633, 4294901760
      %v1352 = vsub.f32 %v633, %v1351
      %1353 = vmatpush.msra.mxu0 %v1352
      %v1354 = vand.u32 %v629, 4294901760
      %v1355 = vsub.f32 %v629, %v1354
      %1356 = vmatpush.msra.mxu0 %v1355
      %v1357 = vand.u32 %v670, 4294901760
      %v1358 = vsub.f32 %v670, %v1357
      %1359 = vmatmul.f32.gmra.mxu0 %v1358
      %v1360 = vpop.f32.mrf.mxu0
      %v1361 = vadd.f32 %v1295, %v1360
      %v1362 = vand.u32 %v673, 4294901760
      %v1363 = vsub.f32 %v673, %v1362
      %1364 = vmatmul.f32.gmra.mxu0 %v1363
      %v1365 = vpop.f32.mrf.mxu0
      %v1366 = vadd.f32 %v1299, %v1365
      %v1367 = vand.u32 %v676, 4294901760
      %v1368 = vsub.f32 %v676, %v1367
      %1369 = vmatmul.f32.gmra.mxu0 %v1368
      %v1370 = vpop.f32.mrf.mxu0
      %v1371 = vadd.f32 %v1303, %v1370
      %v1372 = vand.u32 %v679, 4294901760
      %v1373 = vsub.f32 %v679, %v1372
      %1374 = vmatmul.f32.gmra.mxu0 %v1373
      %v1375 = vpop.f32.mrf.mxu0
      %v1376 = vadd.f32 %v1307, %v1375
      %v1377 = vand.u32 %v682, 4294901760
      %v1378 = vsub.f32 %v682, %v1377
      %1379 = vmatmul.f32.gmra.mxu0 %v1378
      %v1380 = vpop.f32.mrf.mxu0
      %v1381 = vadd.f32 %v1311, %v1380
      %v1382 = vand.u32 %v685, 4294901760
      %v1383 = vsub.f32 %v685, %v1382
      %1384 = vmatmul.f32.gmra.mxu0 %v1383
      %v1385 = vpop.f32.mrf.mxu0
      %v1386 = vadd.f32 %v1315, %v1385
      %v1387 = vand.u32 %v688, 4294901760
      %v1388 = vsub.f32 %v688, %v1387
      %1389 = vmatmul.f32.gmra.mxu0 %v1388
      %v1390 = vpop.f32.mrf.mxu0
      %v1391 = vadd.f32 %v1319, %v1390
      %v1392 = vand.u32 %v691, 4294901760
      %v1393 = vsub.f32 %v691, %v1392
      %1394 = vmatmul.f32.gmra.mxu0 %v1393
      %v1395 = vpop.f32.mrf.mxu0
      %v1396 = vadd.f32 %v1323, %v1395
      %1397 = vdwg.mxu0
      %1398 = vmatpush.msra.mxu0 0.0
      %1399 = vmatpush.msra.mxu0 0.0
      %1400 = vmatpush.msra.mxu0 0.0
      %1401 = vmatpush.msra.mxu0 0.0
      %1402 = vmatpush.msra.mxu0 0.0
      %1403 = vmatpush.msra.mxu0 0.0
      %1404 = vmatpush.msra.mxu0 0.0
      %1405 = vmatpush.msra.mxu0 0.0
      %v1406 = vand.u32 %v657, 4294901760
      %1407 = vmatpush.msra.mxu0 %v1406
      %v1408 = vand.u32 %v653, 4294901760
      %1409 = vmatpush.msra.mxu0 %v1408
      %v1410 = vand.u32 %v649, 4294901760
      %1411 = vmatpush.msra.mxu0 %v1410
      %v1412 = vand.u32 %v645, 4294901760
      %1413 = vmatpush.msra.mxu0 %v1412
      %v1414 = vand.u32 %v641, 4294901760
      %1415 = vmatpush.msra.mxu0 %v1414
      %v1416 = vand.u32 %v637, 4294901760
      %1417 = vmatpush.msra.mxu0 %v1416
      %v1418 = vand.u32 %v633, 4294901760
      %1419 = vmatpush.msra.mxu0 %v1418
      %v1420 = vand.u32 %v629, 4294901760
      %1421 = vmatpush.msra.mxu0 %v1420
      %v1422 = vand.u32 %v670, 4294901760
      %v1423 = vsub.f32 %v670, %v1422
      %v1424 = vand.u32 %v1423, 4294901760
      %1425 = vmatmul.f32.gmra.mxu0 %v1424
      %v1426 = vpop.f32.mrf.mxu0
      %v1427 = vadd.f32 %v1361, %v1426
      %v1428 = vand.u32 %v673, 4294901760
      %v1429 = vsub.f32 %v673, %v1428
      %v1430 = vand.u32 %v1429, 4294901760
      %1431 = vmatmul.f32.gmra.mxu0 %v1430
      %v1432 = vpop.f32.mrf.mxu0
      %v1433 = vadd.f32 %v1366, %v1432
      %v1434 = vand.u32 %v676, 4294901760
      %v1435 = vsub.f32 %v676, %v1434
      %v1436 = vand.u32 %v1435, 4294901760
      %1437 = vmatmul.f32.gmra.mxu0 %v1436
      %v1438 = vpop.f32.mrf.mxu0
      %v1439 = vadd.f32 %v1371, %v1438
      %v1440 = vand.u32 %v679, 4294901760
      %v1441 = vsub.f32 %v679, %v1440
      %v1442 = vand.u32 %v1441, 4294901760
      %1443 = vmatmul.f32.gmra.mxu0 %v1442
      %v1444 = vpop.f32.mrf.mxu0
      %v1445 = vadd.f32 %v1376, %v1444
      %v1446 = vand.u32 %v682, 4294901760
      %v1447 = vsub.f32 %v682, %v1446
      %v1448 = vand.u32 %v1447, 4294901760
      %1449 = vmatmul.f32.gmra.mxu0 %v1448
      %v1450 = vpop.f32.mrf.mxu0
      %v1451 = vadd.f32 %v1381, %v1450
      %v1452 = vand.u32 %v685, 4294901760
      %v1453 = vsub.f32 %v685, %v1452
      %v1454 = vand.u32 %v1453, 4294901760
      %1455 = vmatmul.f32.gmra.mxu0 %v1454
      %v1456 = vpop.f32.mrf.mxu0
      %v1457 = vadd.f32 %v1386, %v1456
      %v1458 = vand.u32 %v688, 4294901760
      %v1459 = vsub.f32 %v688, %v1458
      %v1460 = vand.u32 %v1459, 4294901760
      %1461 = vmatmul.f32.gmra.mxu0 %v1460
      %v1462 = vpop.f32.mrf.mxu0
      %v1463 = vadd.f32 %v1391, %v1462
      %v1464 = vand.u32 %v691, 4294901760
      %v1465 = vsub.f32 %v691, %v1464
      %v1466 = vand.u32 %v1465, 4294901760
      %1467 = vmatmul.f32.gmra.mxu0 %v1466
      %v1468 = vpop.f32.mrf.mxu0
      %v1469 = vadd.f32 %v1396, %v1468
      %1470 = vdwg.mxu0
      %1471 = vmatpush.msra.mxu0 0.0
      %1472 = vmatpush.msra.mxu0 0.0
      %1473 = vmatpush.msra.mxu0 0.0
      %1474 = vmatpush.msra.mxu0 0.0
      %1475 = vmatpush.msra.mxu0 0.0
      %1476 = vmatpush.msra.mxu0 0.0
      %1477 = vmatpush.msra.mxu0 0.0
      %1478 = vmatpush.msra.mxu0 0.0
      %v1479 = vand.u32 %v657, 4294901760
      %v1480 = vsub.f32 %v657, %v1479
      %v1481 = vand.u32 %v1480, 4294901760
      %1482 = vmatpush.msra.mxu0 %v1481
      %v1483 = vand.u32 %v653, 4294901760
      %v1484 = vsub.f32 %v653, %v1483
      %v1485 = vand.u32 %v1484, 4294901760
      %1486 = vmatpush.msra.mxu0 %v1485
      %v1487 = vand.u32 %v649, 4294901760
      %v1488 = vsub.f32 %v649, %v1487
      %v1489 = vand.u32 %v1488, 4294901760
      %1490 = vmatpush.msra.mxu0 %v1489
      %v1491 = vand.u32 %v645, 4294901760
      %v1492 = vsub.f32 %v645, %v1491
      %v1493 = vand.u32 %v1492, 4294901760
      %1494 = vmatpush.msra.mxu0 %v1493
      %v1495 = vand.u32 %v641, 4294901760
      %v1496 = vsub.f32 %v641, %v1495
      %v1497 = vand.u32 %v1496, 4294901760
      %1498 = vmatpush.msra.mxu0 %v1497
      %v1499 = vand.u32 %v637, 4294901760
      %v1500 = vsub.f32 %v637, %v1499
      %v1501 = vand.u32 %v1500, 4294901760
      %1502 = vmatpush.msra.mxu0 %v1501
      %v1503 = vand.u32 %v633, 4294901760
      %v1504 = vsub.f32 %v633, %v1503
      %v1505 = vand.u32 %v1504, 4294901760
      %1506 = vmatpush.msra.mxu0 %v1505
      %v1507 = vand.u32 %v629, 4294901760
      %v1508 = vsub.f32 %v629, %v1507
      %v1509 = vand.u32 %v1508, 4294901760
      %1510 = vmatpush.msra.mxu0 %v1509
      %v1511 = vand.u32 %v670, 4294901760
      %1512 = vmatmul.f32.gmra.mxu0 %v1511
      %v1513 = vpop.f32.mrf.mxu0
      %v1514 = vadd.f32 %v1427, %v1513
      %v1515 = vand.u32 %v673, 4294901760
      %1516 = vmatmul.f32.gmra.mxu0 %v1515
      %v1517 = vpop.f32.mrf.mxu0
      %v1518 = vadd.f32 %v1433, %v1517
      %v1519 = vand.u32 %v676, 4294901760
      %1520 = vmatmul.f32.gmra.mxu0 %v1519
      %v1521 = vpop.f32.mrf.mxu0
      %v1522 = vadd.f32 %v1439, %v1521
      %v1523 = vand.u32 %v679, 4294901760
      %1524 = vmatmul.f32.gmra.mxu0 %v1523
      %v1525 = vpop.f32.mrf.mxu0
      %v1526 = vadd.f32 %v1445, %v1525
      %v1527 = vand.u32 %v682, 4294901760
      %1528 = vmatmul.f32.gmra.mxu0 %v1527
      %v1529 = vpop.f32.mrf.mxu0
      %v1530 = vadd.f32 %v1451, %v1529
      %v1531 = vand.u32 %v685, 4294901760
      %1532 = vmatmul.f32.gmra.mxu0 %v1531
      %v1533 = vpop.f32.mrf.mxu0
      %v1534 = vadd.f32 %v1457, %v1533
      %v1535 = vand.u32 %v688, 4294901760
      %1536 = vmatmul.f32.gmra.mxu0 %v1535
      %v1537 = vpop.f32.mrf.mxu0
      %v1538 = vadd.f32 %v1463, %v1537
      %v1539 = vand.u32 %v691, 4294901760
      %1540 = vmatmul.f32.gmra.mxu0 %v1539
      %v1541 = vpop.f32.mrf.mxu0
      %v1542 = vadd.f32 %v1469, %v1541
      %1543 = vdwg.mxu0
      %1544 = vmatpush.msra.mxu0 0.0
      %1545 = vmatpush.msra.mxu0 0.0
      %1546 = vmatpush.msra.mxu0 0.0
      %1547 = vmatpush.msra.mxu0 0.0
      %1548 = vmatpush.msra.mxu0 0.0
      %1549 = vmatpush.msra.mxu0 0.0
      %1550 = vmatpush.msra.mxu0 0.0
      %1551 = vmatpush.msra.mxu0 0.0
      %v1552 = vand.u32 %v657, 4294901760
      %1553 = vmatpush.msra.mxu0 %v1552
      %v1554 = vand.u32 %v653, 4294901760
      %1555 = vmatpush.msra.mxu0 %v1554
      %v1556 = vand.u32 %v649, 4294901760
      %1557 = vmatpush.msra.mxu0 %v1556
      %v1558 = vand.u32 %v645, 4294901760
      %1559 = vmatpush.msra.mxu0 %v1558
      %v1560 = vand.u32 %v641, 4294901760
      %1561 = vmatpush.msra.mxu0 %v1560
      %v1562 = vand.u32 %v637, 4294901760
      %1563 = vmatpush.msra.mxu0 %v1562
      %v1564 = vand.u32 %v633, 4294901760
      %1565 = vmatpush.msra.mxu0 %v1564
      %v1566 = vand.u32 %v629, 4294901760
      %1567 = vmatpush.msra.mxu0 %v1566
      %v1568 = vand.u32 %v670, 4294901760
      %1569 = vmatmul.f32.gmra.mxu0 %v1568
      %v1570 = vpop.f32.mrf.mxu0
      %v1571 = vadd.f32 %v1514, %v1570
      %v1572 = vand.u32 %v673, 4294901760
      %1573 = vmatmul.f32.gmra.mxu0 %v1572
      %v1574 = vpop.f32.mrf.mxu0
      %v1575 = vadd.f32 %v1518, %v1574
      %v1576 = vand.u32 %v676, 4294901760
      %1577 = vmatmul.f32.gmra.mxu0 %v1576
      %v1578 = vpop.f32.mrf.mxu0
      %v1579 = vadd.f32 %v1522, %v1578
      %v1580 = vand.u32 %v679, 4294901760
      %1581 = vmatmul.f32.gmra.mxu0 %v1580
      %v1582 = vpop.f32.mrf.mxu0
      %v1583 = vadd.f32 %v1526, %v1582
      %v1584 = vand.u32 %v682, 4294901760
      %1585 = vmatmul.f32.gmra.mxu0 %v1584
      %v1586 = vpop.f32.mrf.mxu0
      %v1587 = vadd.f32 %v1530, %v1586
      %v1588 = vand.u32 %v685, 4294901760
      %1589 = vmatmul.f32.gmra.mxu0 %v1588
      %v1590 = vpop.f32.mrf.mxu0
      %v1591 = vadd.f32 %v1534, %v1590
      %v1592 = vand.u32 %v688, 4294901760
      %1593 = vmatmul.f32.gmra.mxu0 %v1592
      %v1594 = vpop.f32.mrf.mxu0
      %v1595 = vadd.f32 %v1538, %v1594
      %v1596 = vand.u32 %v691, 4294901760
      %1597 = vmatmul.f32.gmra.mxu0 %v1596
      %v1598 = vpop.f32.mrf.mxu0
      %v1599 = vadd.f32 %v1542, %v1598
      %1600 = vdwg.mxu0
      %1601 = vmatpush.msra.mxu0 0.0
      %1602 = vmatpush.msra.mxu0 0.0
      %1603 = vmatpush.msra.mxu0 0.0
      %1604 = vmatpush.msra.mxu0 0.0
      %1605 = vmatpush.msra.mxu0 0.0
      %1606 = vmatpush.msra.mxu0 0.0
      %1607 = vmatpush.msra.mxu0 0.0
      %1608 = vmatpush.msra.mxu0 0.0
      %v1609 = vand.u32 %v658, 4294901760
      %1610 = vmatpush.msra.mxu0 %v1609
      %v1611 = vand.u32 %v654, 4294901760
      %1612 = vmatpush.msra.mxu0 %v1611
      %v1613 = vand.u32 %v650, 4294901760
      %1614 = vmatpush.msra.mxu0 %v1613
      %v1615 = vand.u32 %v646, 4294901760
      %1616 = vmatpush.msra.mxu0 %v1615
      %v1617 = vand.u32 %v642, 4294901760
      %1618 = vmatpush.msra.mxu0 %v1617
      %v1619 = vand.u32 %v638, 4294901760
      %1620 = vmatpush.msra.mxu0 %v1619
      %v1621 = vand.u32 %v634, 4294901760
      %1622 = vmatpush.msra.mxu0 %v1621
      %v1623 = vand.u32 %v630, 4294901760
      %1624 = vmatpush.msra.mxu0 %v1623
      %v1625 = vand.u32 %v670, 4294901760
      %v1626 = vsub.f32 %v670, %v1625
      %v1627 = vand.u32 %v1626, 4294901760
      %v1628 = vsub.f32 %v1626, %v1627
      %v1629 = vand.u32 %v1628, 4294901760
      %1630 = vmatmul.f32.gmra.mxu0 %v1629
      %v1631 = vpop.f32.mrf.mxu0
      %v1632 = vadd.f32 0.0, %v1631
      %v1633 = vand.u32 %v673, 4294901760
      %v1634 = vsub.f32 %v673, %v1633
      %v1635 = vand.u32 %v1634, 4294901760
      %v1636 = vsub.f32 %v1634, %v1635
      %v1637 = vand.u32 %v1636, 4294901760
      %1638 = vmatmul.f32.gmra.mxu0 %v1637
      %v1639 = vpop.f32.mrf.mxu0
      %v1640 = vadd.f32 0.0, %v1639
      %v1641 = vand.u32 %v676, 4294901760
      %v1642 = vsub.f32 %v676, %v1641
      %v1643 = vand.u32 %v1642, 4294901760
      %v1644 = vsub.f32 %v1642, %v1643
      %v1645 = vand.u32 %v1644, 4294901760
      %1646 = vmatmul.f32.gmra.mxu0 %v1645
      %v1647 = vpop.f32.mrf.mxu0
      %v1648 = vadd.f32 0.0, %v1647
      %v1649 = vand.u32 %v679, 4294901760
      %v1650 = vsub.f32 %v679, %v1649
      %v1651 = vand.u32 %v1650, 4294901760
      %v1652 = vsub.f32 %v1650, %v1651
      %v1653 = vand.u32 %v1652, 4294901760
      %1654 = vmatmul.f32.gmra.mxu0 %v1653
      %v1655 = vpop.f32.mrf.mxu0
      %v1656 = vadd.f32 0.0, %v1655
      %v1657 = vand.u32 %v682, 4294901760
      %v1658 = vsub.f32 %v682, %v1657
      %v1659 = vand.u32 %v1658, 4294901760
      %v1660 = vsub.f32 %v1658, %v1659
      %v1661 = vand.u32 %v1660, 4294901760
      %1662 = vmatmul.f32.gmra.mxu0 %v1661
      %v1663 = vpop.f32.mrf.mxu0
      %v1664 = vadd.f32 0.0, %v1663
      %v1665 = vand.u32 %v685, 4294901760
      %v1666 = vsub.f32 %v685, %v1665
      %v1667 = vand.u32 %v1666, 4294901760
      %v1668 = vsub.f32 %v1666, %v1667
      %v1669 = vand.u32 %v1668, 4294901760
      %1670 = vmatmul.f32.gmra.mxu0 %v1669
      %v1671 = vpop.f32.mrf.mxu0
      %v1672 = vadd.f32 0.0, %v1671
      %v1673 = vand.u32 %v688, 4294901760
      %v1674 = vsub.f32 %v688, %v1673
      %v1675 = vand.u32 %v1674, 4294901760
      %v1676 = vsub.f32 %v1674, %v1675
      %v1677 = vand.u32 %v1676, 4294901760
      %1678 = vmatmul.f32.gmra.mxu0 %v1677
      %v1679 = vpop.f32.mrf.mxu0
      %v1680 = vadd.f32 0.0, %v1679
      %v1681 = vand.u32 %v691, 4294901760
      %v1682 = vsub.f32 %v691, %v1681
      %v1683 = vand.u32 %v1682, 4294901760
      %v1684 = vsub.f32 %v1682, %v1683
      %v1685 = vand.u32 %v1684, 4294901760
      %1686 = vmatmul.f32.gmra.mxu0 %v1685
      %v1687 = vpop.f32.mrf.mxu0
      %v1688 = vadd.f32 0.0, %v1687
      %1689 = vdwg.mxu0
      %1690 = vmatpush.msra.mxu0 0.0
      %1691 = vmatpush.msra.mxu0 0.0
      %1692 = vmatpush.msra.mxu0 0.0
      %1693 = vmatpush.msra.mxu0 0.0
      %1694 = vmatpush.msra.mxu0 0.0
      %1695 = vmatpush.msra.mxu0 0.0
      %1696 = vmatpush.msra.mxu0 0.0
      %1697 = vmatpush.msra.mxu0 0.0
      %v1698 = vand.u32 %v658, 4294901760
      %v1699 = vsub.f32 %v658, %v1698
      %v1700 = vand.u32 %v1699, 4294901760
      %v1701 = vsub.f32 %v1699, %v1700
      %v1702 = vand.u32 %v1701, 4294901760
      %1703 = vmatpush.msra.mxu0 %v1702
      %v1704 = vand.u32 %v654, 4294901760
      %v1705 = vsub.f32 %v654, %v1704
      %v1706 = vand.u32 %v1705, 4294901760
      %v1707 = vsub.f32 %v1705, %v1706
      %v1708 = vand.u32 %v1707, 4294901760
      %1709 = vmatpush.msra.mxu0 %v1708
      %v1710 = vand.u32 %v650, 4294901760
      %v1711 = vsub.f32 %v650, %v1710
      %v1712 = vand.u32 %v1711, 4294901760
      %v1713 = vsub.f32 %v1711, %v1712
      %v1714 = vand.u32 %v1713, 4294901760
      %1715 = vmatpush.msra.mxu0 %v1714
      %v1716 = vand.u32 %v646, 4294901760
      %v1717 = vsub.f32 %v646, %v1716
      %v1718 = vand.u32 %v1717, 4294901760
      %v1719 = vsub.f32 %v1717, %v1718
      %v1720 = vand.u32 %v1719, 4294901760
      %1721 = vmatpush.msra.mxu0 %v1720
      %v1722 = vand.u32 %v642, 4294901760
      %v1723 = vsub.f32 %v642, %v1722
      %v1724 = vand.u32 %v1723, 4294901760
      %v1725 = vsub.f32 %v1723, %v1724
      %v1726 = vand.u32 %v1725, 4294901760
      %1727 = vmatpush.msra.mxu0 %v1726
      %v1728 = vand.u32 %v638, 4294901760
      %v1729 = vsub.f32 %v638, %v1728
      %v1730 = vand.u32 %v1729, 4294901760
      %v1731 = vsub.f32 %v1729, %v1730
      %v1732 = vand.u32 %v1731, 4294901760
      %1733 = vmatpush.msra.mxu0 %v1732
      %v1734 = vand.u32 %v634, 4294901760
      %v1735 = vsub.f32 %v634, %v1734
      %v1736 = vand.u32 %v1735, 4294901760
      %v1737 = vsub.f32 %v1735, %v1736
      %v1738 = vand.u32 %v1737, 4294901760
      %1739 = vmatpush.msra.mxu0 %v1738
      %v1740 = vand.u32 %v630, 4294901760
      %v1741 = vsub.f32 %v630, %v1740
      %v1742 = vand.u32 %v1741, 4294901760
      %v1743 = vsub.f32 %v1741, %v1742
      %v1744 = vand.u32 %v1743, 4294901760
      %1745 = vmatpush.msra.mxu0 %v1744
      %v1746 = vand.u32 %v670, 4294901760
      %1747 = vmatmul.f32.gmra.mxu0 %v1746
      %v1748 = vpop.f32.mrf.mxu0
      %v1749 = vadd.f32 %v1632, %v1748
      %v1750 = vand.u32 %v673, 4294901760
      %1751 = vmatmul.f32.gmra.mxu0 %v1750
      %v1752 = vpop.f32.mrf.mxu0
      %v1753 = vadd.f32 %v1640, %v1752
      %v1754 = vand.u32 %v676, 4294901760
      %1755 = vmatmul.f32.gmra.mxu0 %v1754
      %v1756 = vpop.f32.mrf.mxu0
      %v1757 = vadd.f32 %v1648, %v1756
      %v1758 = vand.u32 %v679, 4294901760
      %1759 = vmatmul.f32.gmra.mxu0 %v1758
      %v1760 = vpop.f32.mrf.mxu0
      %v1761 = vadd.f32 %v1656, %v1760
      %v1762 = vand.u32 %v682, 4294901760
      %1763 = vmatmul.f32.gmra.mxu0 %v1762
      %v1764 = vpop.f32.mrf.mxu0
      %v1765 = vadd.f32 %v1664, %v1764
      %v1766 = vand.u32 %v685, 4294901760
      %1767 = vmatmul.f32.gmra.mxu0 %v1766
      %v1768 = vpop.f32.mrf.mxu0
      %v1769 = vadd.f32 %v1672, %v1768
      %v1770 = vand.u32 %v688, 4294901760
      %1771 = vmatmul.f32.gmra.mxu0 %v1770
      %v1772 = vpop.f32.mrf.mxu0
      %v1773 = vadd.f32 %v1680, %v1772
      %v1774 = vand.u32 %v691, 4294901760
      %1775 = vmatmul.f32.gmra.mxu0 %v1774
      %v1776 = vpop.f32.mrf.mxu0
      %v1777 = vadd.f32 %v1688, %v1776
      %1778 = vdwg.mxu0
      %1779 = vmatpush.msra.mxu0 0.0
      %1780 = vmatpush.msra.mxu0 0.0
      %1781 = vmatpush.msra.mxu0 0.0
      %1782 = vmatpush.msra.mxu0 0.0
      %1783 = vmatpush.msra.mxu0 0.0
      %1784 = vmatpush.msra.mxu0 0.0
      %1785 = vmatpush.msra.mxu0 0.0
      %1786 = vmatpush.msra.mxu0 0.0
      %v1787 = vand.u32 %v658, 4294901760
      %v1788 = vsub.f32 %v658, %v1787
      %1789 = vmatpush.msra.mxu0 %v1788
      %v1790 = vand.u32 %v654, 4294901760
      %v1791 = vsub.f32 %v654, %v1790
      %1792 = vmatpush.msra.mxu0 %v1791
      %v1793 = vand.u32 %v650, 4294901760
      %v1794 = vsub.f32 %v650, %v1793
      %1795 = vmatpush.msra.mxu0 %v1794
      %v1796 = vand.u32 %v646, 4294901760
      %v1797 = vsub.f32 %v646, %v1796
      %1798 = vmatpush.msra.mxu0 %v1797
      %v1799 = vand.u32 %v642, 4294901760
      %v1800 = vsub.f32 %v642, %v1799
      %1801 = vmatpush.msra.mxu0 %v1800
      %v1802 = vand.u32 %v638, 4294901760
      %v1803 = vsub.f32 %v638, %v1802
      %1804 = vmatpush.msra.mxu0 %v1803
      %v1805 = vand.u32 %v634, 4294901760
      %v1806 = vsub.f32 %v634, %v1805
      %1807 = vmatpush.msra.mxu0 %v1806
      %v1808 = vand.u32 %v630, 4294901760
      %v1809 = vsub.f32 %v630, %v1808
      %1810 = vmatpush.msra.mxu0 %v1809
      %v1811 = vand.u32 %v670, 4294901760
      %v1812 = vsub.f32 %v670, %v1811
      %1813 = vmatmul.f32.gmra.mxu0 %v1812
      %v1814 = vpop.f32.mrf.mxu0
      %v1815 = vadd.f32 %v1749, %v1814
      %v1816 = vand.u32 %v673, 4294901760
      %v1817 = vsub.f32 %v673, %v1816
      %1818 = vmatmul.f32.gmra.mxu0 %v1817
      %v1819 = vpop.f32.mrf.mxu0
      %v1820 = vadd.f32 %v1753, %v1819
      %v1821 = vand.u32 %v676, 4294901760
      %v1822 = vsub.f32 %v676, %v1821
      %1823 = vmatmul.f32.gmra.mxu0 %v1822
      %v1824 = vpop.f32.mrf.mxu0
      %v1825 = vadd.f32 %v1757, %v1824
      %v1826 = vand.u32 %v679, 4294901760
      %v1827 = vsub.f32 %v679, %v1826
      %1828 = vmatmul.f32.gmra.mxu0 %v1827
      %v1829 = vpop.f32.mrf.mxu0
      %v1830 = vadd.f32 %v1761, %v1829
      %v1831 = vand.u32 %v682, 4294901760
      %v1832 = vsub.f32 %v682, %v1831
      %1833 = vmatmul.f32.gmra.mxu0 %v1832
      %v1834 = vpop.f32.mrf.mxu0
      %v1835 = vadd.f32 %v1765, %v1834
      %v1836 = vand.u32 %v685, 4294901760
      %v1837 = vsub.f32 %v685, %v1836
      %1838 = vmatmul.f32.gmra.mxu0 %v1837
      %v1839 = vpop.f32.mrf.mxu0
      %v1840 = vadd.f32 %v1769, %v1839
      %v1841 = vand.u32 %v688, 4294901760
      %v1842 = vsub.f32 %v688, %v1841
      %1843 = vmatmul.f32.gmra.mxu0 %v1842
      %v1844 = vpop.f32.mrf.mxu0
      %v1845 = vadd.f32 %v1773, %v1844
      %v1846 = vand.u32 %v691, 4294901760
      %v1847 = vsub.f32 %v691, %v1846
      %1848 = vmatmul.f32.gmra.mxu0 %v1847
      %v1849 = vpop.f32.mrf.mxu0
      %v1850 = vadd.f32 %v1777, %v1849
      %1851 = vdwg.mxu0
      %1852 = vmatpush.msra.mxu0 0.0
      %1853 = vmatpush.msra.mxu0 0.0
      %1854 = vmatpush.msra.mxu0 0.0
      %1855 = vmatpush.msra.mxu0 0.0
      %1856 = vmatpush.msra.mxu0 0.0
      %1857 = vmatpush.msra.mxu0 0.0
      %1858 = vmatpush.msra.mxu0 0.0
      %1859 = vmatpush.msra.mxu0 0.0
      %v1860 = vand.u32 %v658, 4294901760
      %1861 = vmatpush.msra.mxu0 %v1860
      %v1862 = vand.u32 %v654, 4294901760
      %1863 = vmatpush.msra.mxu0 %v1862
      %v1864 = vand.u32 %v650, 4294901760
      %1865 = vmatpush.msra.mxu0 %v1864
      %v1866 = vand.u32 %v646, 4294901760
      %1867 = vmatpush.msra.mxu0 %v1866
      %v1868 = vand.u32 %v642, 4294901760
      %1869 = vmatpush.msra.mxu0 %v1868
      %v1870 = vand.u32 %v638, 4294901760
      %1871 = vmatpush.msra.mxu0 %v1870
      %v1872 = vand.u32 %v634, 4294901760
      %1873 = vmatpush.msra.mxu0 %v1872
      %v1874 = vand.u32 %v630, 4294901760
      %1875 = vmatpush.msra.mxu0 %v1874
      %v1876 = vand.u32 %v670, 4294901760
      %v1877 = vsub.f32 %v670, %v1876
      %v1878 = vand.u32 %v1877, 4294901760
      %1879 = vmatmul.f32.gmra.mxu0 %v1878
      %v1880 = vpop.f32.mrf.mxu0
      %v1881 = vadd.f32 %v1815, %v1880
      %v1882 = vand.u32 %v673, 4294901760
      %v1883 = vsub.f32 %v673, %v1882
      %v1884 = vand.u32 %v1883, 4294901760
      %1885 = vmatmul.f32.gmra.mxu0 %v1884
      %v1886 = vpop.f32.mrf.mxu0
      %v1887 = vadd.f32 %v1820, %v1886
      %v1888 = vand.u32 %v676, 4294901760
      %v1889 = vsub.f32 %v676, %v1888
      %v1890 = vand.u32 %v1889, 4294901760
      %1891 = vmatmul.f32.gmra.mxu0 %v1890
      %v1892 = vpop.f32.mrf.mxu0
      %v1893 = vadd.f32 %v1825, %v1892
      %v1894 = vand.u32 %v679, 4294901760
      %v1895 = vsub.f32 %v679, %v1894
      %v1896 = vand.u32 %v1895, 4294901760
      %1897 = vmatmul.f32.gmra.mxu0 %v1896
      %v1898 = vpop.f32.mrf.mxu0
      %v1899 = vadd.f32 %v1830, %v1898
      %v1900 = vand.u32 %v682, 4294901760
      %v1901 = vsub.f32 %v682, %v1900
      %v1902 = vand.u32 %v1901, 4294901760
      %1903 = vmatmul.f32.gmra.mxu0 %v1902
      %v1904 = vpop.f32.mrf.mxu0
      %v1905 = vadd.f32 %v1835, %v1904
      %v1906 = vand.u32 %v685, 4294901760
      %v1907 = vsub.f32 %v685, %v1906
      %v1908 = vand.u32 %v1907, 4294901760
      %1909 = vmatmul.f32.gmra.mxu0 %v1908
      %v1910 = vpop.f32.mrf.mxu0
      %v1911 = vadd.f32 %v1840, %v1910
      %v1912 = vand.u32 %v688, 4294901760
      %v1913 = vsub.f32 %v688, %v1912
      %v1914 = vand.u32 %v1913, 4294901760
      %1915 = vmatmul.f32.gmra.mxu0 %v1914
      %v1916 = vpop.f32.mrf.mxu0
      %v1917 = vadd.f32 %v1845, %v1916
      %v1918 = vand.u32 %v691, 4294901760
      %v1919 = vsub.f32 %v691, %v1918
      %v1920 = vand.u32 %v1919, 4294901760
      %1921 = vmatmul.f32.gmra.mxu0 %v1920
      %v1922 = vpop.f32.mrf.mxu0
      %v1923 = vadd.f32 %v1850, %v1922
      %1924 = vdwg.mxu0
      %1925 = vmatpush.msra.mxu0 0.0
      %1926 = vmatpush.msra.mxu0 0.0
      %1927 = vmatpush.msra.mxu0 0.0
      %1928 = vmatpush.msra.mxu0 0.0
      %1929 = vmatpush.msra.mxu0 0.0
      %1930 = vmatpush.msra.mxu0 0.0
      %1931 = vmatpush.msra.mxu0 0.0
      %1932 = vmatpush.msra.mxu0 0.0
      %v1933 = vand.u32 %v658, 4294901760
      %v1934 = vsub.f32 %v658, %v1933
      %v1935 = vand.u32 %v1934, 4294901760
      %1936 = vmatpush.msra.mxu0 %v1935
      %v1937 = vand.u32 %v654, 4294901760
      %v1938 = vsub.f32 %v654, %v1937
      %v1939 = vand.u32 %v1938, 4294901760
      %1940 = vmatpush.msra.mxu0 %v1939
      %v1941 = vand.u32 %v650, 4294901760
      %v1942 = vsub.f32 %v650, %v1941
      %v1943 = vand.u32 %v1942, 4294901760
      %1944 = vmatpush.msra.mxu0 %v1943
      %v1945 = vand.u32 %v646, 4294901760
      %v1946 = vsub.f32 %v646, %v1945
      %v1947 = vand.u32 %v1946, 4294901760
      %1948 = vmatpush.msra.mxu0 %v1947
      %v1949 = vand.u32 %v642, 4294901760
      %v1950 = vsub.f32 %v642, %v1949
      %v1951 = vand.u32 %v1950, 4294901760
      %1952 = vmatpush.msra.mxu0 %v1951
      %v1953 = vand.u32 %v638, 4294901760
      %v1954 = vsub.f32 %v638, %v1953
      %v1955 = vand.u32 %v1954, 4294901760
      %1956 = vmatpush.msra.mxu0 %v1955
      %v1957 = vand.u32 %v634, 4294901760
      %v1958 = vsub.f32 %v634, %v1957
      %v1959 = vand.u32 %v1958, 4294901760
      %1960 = vmatpush.msra.mxu0 %v1959
      %v1961 = vand.u32 %v630, 4294901760
      %v1962 = vsub.f32 %v630, %v1961
      %v1963 = vand.u32 %v1962, 4294901760
      %1964 = vmatpush.msra.mxu0 %v1963
      %v1965 = vand.u32 %v670, 4294901760
      %1966 = vmatmul.f32.gmra.mxu0 %v1965
      %v1967 = vpop.f32.mrf.mxu0
      %v1968 = vadd.f32 %v1881, %v1967
      %v1969 = vand.u32 %v673, 4294901760
      %1970 = vmatmul.f32.gmra.mxu0 %v1969
      %v1971 = vpop.f32.mrf.mxu0
      %v1972 = vadd.f32 %v1887, %v1971
      %v1973 = vand.u32 %v676, 4294901760
      %1974 = vmatmul.f32.gmra.mxu0 %v1973
      %v1975 = vpop.f32.mrf.mxu0
      %v1976 = vadd.f32 %v1893, %v1975
      %v1977 = vand.u32 %v679, 4294901760
      %1978 = vmatmul.f32.gmra.mxu0 %v1977
      %v1979 = vpop.f32.mrf.mxu0
      %v1980 = vadd.f32 %v1899, %v1979
      %v1981 = vand.u32 %v682, 4294901760
      %1982 = vmatmul.f32.gmra.mxu0 %v1981
      %v1983 = vpop.f32.mrf.mxu0
      %v1984 = vadd.f32 %v1905, %v1983
      %v1985 = vand.u32 %v685, 4294901760
      %1986 = vmatmul.f32.gmra.mxu0 %v1985
      %v1987 = vpop.f32.mrf.mxu0
      %v1988 = vadd.f32 %v1911, %v1987
      %v1989 = vand.u32 %v688, 4294901760
      %1990 = vmatmul.f32.gmra.mxu0 %v1989
      %v1991 = vpop.f32.mrf.mxu0
      %v1992 = vadd.f32 %v1917, %v1991
      %v1993 = vand.u32 %v691, 4294901760
      %1994 = vmatmul.f32.gmra.mxu0 %v1993
      %v1995 = vpop.f32.mrf.mxu0
      %v1996 = vadd.f32 %v1923, %v1995
      %1997 = vdwg.mxu0
      %1998 = vmatpush.msra.mxu0 0.0
      %1999 = vmatpush.msra.mxu0 0.0
      %2000 = vmatpush.msra.mxu0 0.0
      %2001 = vmatpush.msra.mxu0 0.0
      %2002 = vmatpush.msra.mxu0 0.0
      %2003 = vmatpush.msra.mxu0 0.0
      %2004 = vmatpush.msra.mxu0 0.0
      %2005 = vmatpush.msra.mxu0 0.0
      %v2006 = vand.u32 %v658, 4294901760
      %2007 = vmatpush.msra.mxu0 %v2006
      %v2008 = vand.u32 %v654, 4294901760
      %2009 = vmatpush.msra.mxu0 %v2008
      %v2010 = vand.u32 %v650, 4294901760
      %2011 = vmatpush.msra.mxu0 %v2010
      %v2012 = vand.u32 %v646, 4294901760
      %2013 = vmatpush.msra.mxu0 %v2012
      %v2014 = vand.u32 %v642, 4294901760
      %2015 = vmatpush.msra.mxu0 %v2014
      %v2016 = vand.u32 %v638, 4294901760
      %2017 = vmatpush.msra.mxu0 %v2016
      %v2018 = vand.u32 %v634, 4294901760
      %2019 = vmatpush.msra.mxu0 %v2018
      %v2020 = vand.u32 %v630, 4294901760
      %2021 = vmatpush.msra.mxu0 %v2020
      %v2022 = vand.u32 %v670, 4294901760
      %2023 = vmatmul.f32.gmra.mxu0 %v2022
      %v2024 = vpop.f32.mrf.mxu0
      %v2025 = vadd.f32 %v1968, %v2024
      %v2026 = vand.u32 %v673, 4294901760
      %2027 = vmatmul.f32.gmra.mxu0 %v2026
      %v2028 = vpop.f32.mrf.mxu0
      %v2029 = vadd.f32 %v1972, %v2028
      %v2030 = vand.u32 %v676, 4294901760
      %2031 = vmatmul.f32.gmra.mxu0 %v2030
      %v2032 = vpop.f32.mrf.mxu0
      %v2033 = vadd.f32 %v1976, %v2032
      %v2034 = vand.u32 %v679, 4294901760
      %2035 = vmatmul.f32.gmra.mxu0 %v2034
      %v2036 = vpop.f32.mrf.mxu0
      %v2037 = vadd.f32 %v1980, %v2036
      %v2038 = vand.u32 %v682, 4294901760
      %2039 = vmatmul.f32.gmra.mxu0 %v2038
      %v2040 = vpop.f32.mrf.mxu0
      %v2041 = vadd.f32 %v1984, %v2040
      %v2042 = vand.u32 %v685, 4294901760
      %2043 = vmatmul.f32.gmra.mxu0 %v2042
      %v2044 = vpop.f32.mrf.mxu0
      %v2045 = vadd.f32 %v1988, %v2044
      %v2046 = vand.u32 %v688, 4294901760
      %2047 = vmatmul.f32.gmra.mxu0 %v2046
      %v2048 = vpop.f32.mrf.mxu0
      %v2049 = vadd.f32 %v1992, %v2048
      %v2050 = vand.u32 %v691, 4294901760
      %2051 = vmatmul.f32.gmra.mxu0 %v2050
      %v2052 = vpop.f32.mrf.mxu0
      %v2053 = vadd.f32 %v1996, %v2052
      %2054 = vdwg.mxu0
      %2055 = vmatpush.msra.mxu0 0.0
      %2056 = vmatpush.msra.mxu0 0.0
      %2057 = vmatpush.msra.mxu0 0.0
      %2058 = vmatpush.msra.mxu0 0.0
      %2059 = vmatpush.msra.mxu0 0.0
      %2060 = vmatpush.msra.mxu0 0.0
      %2061 = vmatpush.msra.mxu0 0.0
      %2062 = vmatpush.msra.mxu0 0.0
      %v2063 = vand.u32 %v659, 4294901760
      %2064 = vmatpush.msra.mxu0 %v2063
      %v2065 = vand.u32 %v655, 4294901760
      %2066 = vmatpush.msra.mxu0 %v2065
      %v2067 = vand.u32 %v651, 4294901760
      %2068 = vmatpush.msra.mxu0 %v2067
      %v2069 = vand.u32 %v647, 4294901760
      %2070 = vmatpush.msra.mxu0 %v2069
      %v2071 = vand.u32 %v643, 4294901760
      %2072 = vmatpush.msra.mxu0 %v2071
      %v2073 = vand.u32 %v639, 4294901760
      %2074 = vmatpush.msra.mxu0 %v2073
      %v2075 = vand.u32 %v635, 4294901760
      %2076 = vmatpush.msra.mxu0 %v2075
      %v2077 = vand.u32 %v631, 4294901760
      %2078 = vmatpush.msra.mxu0 %v2077
      %v2079 = vand.u32 %v670, 4294901760
      %v2080 = vsub.f32 %v670, %v2079
      %v2081 = vand.u32 %v2080, 4294901760
      %v2082 = vsub.f32 %v2080, %v2081
      %v2083 = vand.u32 %v2082, 4294901760
      %2084 = vmatmul.f32.gmra.mxu0 %v2083
      %v2085 = vpop.f32.mrf.mxu0
      %v2086 = vadd.f32 0.0, %v2085
      %v2087 = vand.u32 %v673, 4294901760
      %v2088 = vsub.f32 %v673, %v2087
      %v2089 = vand.u32 %v2088, 4294901760
      %v2090 = vsub.f32 %v2088, %v2089
      %v2091 = vand.u32 %v2090, 4294901760
      %2092 = vmatmul.f32.gmra.mxu0 %v2091
      %v2093 = vpop.f32.mrf.mxu0
      %v2094 = vadd.f32 0.0, %v2093
      %v2095 = vand.u32 %v676, 4294901760
      %v2096 = vsub.f32 %v676, %v2095
      %v2097 = vand.u32 %v2096, 4294901760
      %v2098 = vsub.f32 %v2096, %v2097
      %v2099 = vand.u32 %v2098, 4294901760
      %2100 = vmatmul.f32.gmra.mxu0 %v2099
      %v2101 = vpop.f32.mrf.mxu0
      %v2102 = vadd.f32 0.0, %v2101
      %v2103 = vand.u32 %v679, 4294901760
      %v2104 = vsub.f32 %v679, %v2103
      %v2105 = vand.u32 %v2104, 4294901760
      %v2106 = vsub.f32 %v2104, %v2105
      %v2107 = vand.u32 %v2106, 4294901760
      %2108 = vmatmul.f32.gmra.mxu0 %v2107
      %v2109 = vpop.f32.mrf.mxu0
      %v2110 = vadd.f32 0.0, %v2109
      %v2111 = vand.u32 %v682, 4294901760
      %v2112 = vsub.f32 %v682, %v2111
      %v2113 = vand.u32 %v2112, 4294901760
      %v2114 = vsub.f32 %v2112, %v2113
      %v2115 = vand.u32 %v2114, 4294901760
      %2116 = vmatmul.f32.gmra.mxu0 %v2115
      %v2117 = vpop.f32.mrf.mxu0
      %v2118 = vadd.f32 0.0, %v2117
      %v2119 = vand.u32 %v685, 4294901760
      %v2120 = vsub.f32 %v685, %v2119
      %v2121 = vand.u32 %v2120, 4294901760
      %v2122 = vsub.f32 %v2120, %v2121
      %v2123 = vand.u32 %v2122, 4294901760
      %2124 = vmatmul.f32.gmra.mxu0 %v2123
      %v2125 = vpop.f32.mrf.mxu0
      %v2126 = vadd.f32 0.0, %v2125
      %v2127 = vand.u32 %v688, 4294901760
      %v2128 = vsub.f32 %v688, %v2127
      %v2129 = vand.u32 %v2128, 4294901760
      %v2130 = vsub.f32 %v2128, %v2129
      %v2131 = vand.u32 %v2130, 4294901760
      %2132 = vmatmul.f32.gmra.mxu0 %v2131
      %v2133 = vpop.f32.mrf.mxu0
      %v2134 = vadd.f32 0.0, %v2133
      %v2135 = vand.u32 %v691, 4294901760
      %v2136 = vsub.f32 %v691, %v2135
      %v2137 = vand.u32 %v2136, 4294901760
      %v2138 = vsub.f32 %v2136, %v2137
      %v2139 = vand.u32 %v2138, 4294901760
      %2140 = vmatmul.f32.gmra.mxu0 %v2139
      %v2141 = vpop.f32.mrf.mxu0
      %v2142 = vadd.f32 0.0, %v2141
      %2143 = vdwg.mxu0
      %2144 = vmatpush.msra.mxu0 0.0
      %2145 = vmatpush.msra.mxu0 0.0
      %2146 = vmatpush.msra.mxu0 0.0
      %2147 = vmatpush.msra.mxu0 0.0
      %2148 = vmatpush.msra.mxu0 0.0
      %2149 = vmatpush.msra.mxu0 0.0
      %2150 = vmatpush.msra.mxu0 0.0
      %2151 = vmatpush.msra.mxu0 0.0
      %v2152 = vand.u32 %v659, 4294901760
      %v2153 = vsub.f32 %v659, %v2152
      %v2154 = vand.u32 %v2153, 4294901760
      %v2155 = vsub.f32 %v2153, %v2154
      %v2156 = vand.u32 %v2155, 4294901760
      %2157 = vmatpush.msra.mxu0 %v2156
      %v2158 = vand.u32 %v655, 4294901760
      %v2159 = vsub.f32 %v655, %v2158
      %v2160 = vand.u32 %v2159, 4294901760
      %v2161 = vsub.f32 %v2159, %v2160
      %v2162 = vand.u32 %v2161, 4294901760
      %2163 = vmatpush.msra.mxu0 %v2162
      %v2164 = vand.u32 %v651, 4294901760
      %v2165 = vsub.f32 %v651, %v2164
      %v2166 = vand.u32 %v2165, 4294901760
      %v2167 = vsub.f32 %v2165, %v2166
      %v2168 = vand.u32 %v2167, 4294901760
      %2169 = vmatpush.msra.mxu0 %v2168
      %v2170 = vand.u32 %v647, 4294901760
      %v2171 = vsub.f32 %v647, %v2170
      %v2172 = vand.u32 %v2171, 4294901760
      %v2173 = vsub.f32 %v2171, %v2172
      %v2174 = vand.u32 %v2173, 4294901760
      %2175 = vmatpush.msra.mxu0 %v2174
      %v2176 = vand.u32 %v643, 4294901760
      %v2177 = vsub.f32 %v643, %v2176
      %v2178 = vand.u32 %v2177, 4294901760
      %v2179 = vsub.f32 %v2177, %v2178
      %v2180 = vand.u32 %v2179, 4294901760
      %2181 = vmatpush.msra.mxu0 %v2180
      %v2182 = vand.u32 %v639, 4294901760
      %v2183 = vsub.f32 %v639, %v2182
      %v2184 = vand.u32 %v2183, 4294901760
      %v2185 = vsub.f32 %v2183, %v2184
      %v2186 = vand.u32 %v2185, 4294901760
      %2187 = vmatpush.msra.mxu0 %v2186
      %v2188 = vand.u32 %v635, 4294901760
      %v2189 = vsub.f32 %v635, %v2188
      %v2190 = vand.u32 %v2189, 4294901760
      %v2191 = vsub.f32 %v2189, %v2190
      %v2192 = vand.u32 %v2191, 4294901760
      %2193 = vmatpush.msra.mxu0 %v2192
      %v2194 = vand.u32 %v631, 4294901760
      %v2195 = vsub.f32 %v631, %v2194
      %v2196 = vand.u32 %v2195, 4294901760
      %v2197 = vsub.f32 %v2195, %v2196
      %v2198 = vand.u32 %v2197, 4294901760
      %2199 = vmatpush.msra.mxu0 %v2198
      %v2200 = vand.u32 %v670, 4294901760
      %2201 = vmatmul.f32.gmra.mxu0 %v2200
      %v2202 = vpop.f32.mrf.mxu0
      %v2203 = vadd.f32 %v2086, %v2202
      %v2204 = vand.u32 %v673, 4294901760
      %2205 = vmatmul.f32.gmra.mxu0 %v2204
      %v2206 = vpop.f32.mrf.mxu0
      %v2207 = vadd.f32 %v2094, %v2206
      %v2208 = vand.u32 %v676, 4294901760
      %2209 = vmatmul.f32.gmra.mxu0 %v2208
      %v2210 = vpop.f32.mrf.mxu0
      %v2211 = vadd.f32 %v2102, %v2210
      %v2212 = vand.u32 %v679, 4294901760
      %2213 = vmatmul.f32.gmra.mxu0 %v2212
      %v2214 = vpop.f32.mrf.mxu0
      %v2215 = vadd.f32 %v2110, %v2214
      %v2216 = vand.u32 %v682, 4294901760
      %2217 = vmatmul.f32.gmra.mxu0 %v2216
      %v2218 = vpop.f32.mrf.mxu0
      %v2219 = vadd.f32 %v2118, %v2218
      %v2220 = vand.u32 %v685, 4294901760
      %2221 = vmatmul.f32.gmra.mxu0 %v2220
      %v2222 = vpop.f32.mrf.mxu0
      %v2223 = vadd.f32 %v2126, %v2222
      %v2224 = vand.u32 %v688, 4294901760
      %2225 = vmatmul.f32.gmra.mxu0 %v2224
      %v2226 = vpop.f32.mrf.mxu0
      %v2227 = vadd.f32 %v2134, %v2226
      %v2228 = vand.u32 %v691, 4294901760
      %2229 = vmatmul.f32.gmra.mxu0 %v2228
      %v2230 = vpop.f32.mrf.mxu0
      %v2231 = vadd.f32 %v2142, %v2230
      %2232 = vdwg.mxu0
      %2233 = vmatpush.msra.mxu0 0.0
      %2234 = vmatpush.msra.mxu0 0.0
      %2235 = vmatpush.msra.mxu0 0.0
      %2236 = vmatpush.msra.mxu0 0.0
      %2237 = vmatpush.msra.mxu0 0.0
      %2238 = vmatpush.msra.mxu0 0.0
      %2239 = vmatpush.msra.mxu0 0.0
      %2240 = vmatpush.msra.mxu0 0.0
      %v2241 = vand.u32 %v659, 4294901760
      %v2242 = vsub.f32 %v659, %v2241
      %2243 = vmatpush.msra.mxu0 %v2242
      %v2244 = vand.u32 %v655, 4294901760
      %v2245 = vsub.f32 %v655, %v2244
      %2246 = vmatpush.msra.mxu0 %v2245
      %v2247 = vand.u32 %v651, 4294901760
      %v2248 = vsub.f32 %v651, %v2247
      %2249 = vmatpush.msra.mxu0 %v2248
      %v2250 = vand.u32 %v647, 4294901760
      %v2251 = vsub.f32 %v647, %v2250
      %2252 = vmatpush.msra.mxu0 %v2251
      %v2253 = vand.u32 %v643, 4294901760
      %v2254 = vsub.f32 %v643, %v2253
      %2255 = vmatpush.msra.mxu0 %v2254
      %v2256 = vand.u32 %v639, 4294901760
      %v2257 = vsub.f32 %v639, %v2256
      %2258 = vmatpush.msra.mxu0 %v2257
      %v2259 = vand.u32 %v635, 4294901760
      %v2260 = vsub.f32 %v635, %v2259
      %2261 = vmatpush.msra.mxu0 %v2260
      %v2262 = vand.u32 %v631, 4294901760
      %v2263 = vsub.f32 %v631, %v2262
      %2264 = vmatpush.msra.mxu0 %v2263
      %v2265 = vand.u32 %v670, 4294901760
      %v2266 = vsub.f32 %v670, %v2265
      %2267 = vmatmul.f32.gmra.mxu0 %v2266
      %v2268 = vpop.f32.mrf.mxu0
      %v2269 = vadd.f32 %v2203, %v2268
      %v2270 = vand.u32 %v673, 4294901760
      %v2271 = vsub.f32 %v673, %v2270
      %2272 = vmatmul.f32.gmra.mxu0 %v2271
      %v2273 = vpop.f32.mrf.mxu0
      %v2274 = vadd.f32 %v2207, %v2273
      %v2275 = vand.u32 %v676, 4294901760
      %v2276 = vsub.f32 %v676, %v2275
      %2277 = vmatmul.f32.gmra.mxu0 %v2276
      %v2278 = vpop.f32.mrf.mxu0
      %v2279 = vadd.f32 %v2211, %v2278
      %v2280 = vand.u32 %v679, 4294901760
      %v2281 = vsub.f32 %v679, %v2280
      %2282 = vmatmul.f32.gmra.mxu0 %v2281
      %v2283 = vpop.f32.mrf.mxu0
      %v2284 = vadd.f32 %v2215, %v2283
      %v2285 = vand.u32 %v682, 4294901760
      %v2286 = vsub.f32 %v682, %v2285
      %2287 = vmatmul.f32.gmra.mxu0 %v2286
      %v2288 = vpop.f32.mrf.mxu0
      %v2289 = vadd.f32 %v2219, %v2288
      %v2290 = vand.u32 %v685, 4294901760
      %v2291 = vsub.f32 %v685, %v2290
      %2292 = vmatmul.f32.gmra.mxu0 %v2291
      %v2293 = vpop.f32.mrf.mxu0
      %v2294 = vadd.f32 %v2223, %v2293
      %v2295 = vand.u32 %v688, 4294901760
      %v2296 = vsub.f32 %v688, %v2295
      %2297 = vmatmul.f32.gmra.mxu0 %v2296
      %v2298 = vpop.f32.mrf.mxu0
      %v2299 = vadd.f32 %v2227, %v2298
      %v2300 = vand.u32 %v691, 4294901760
      %v2301 = vsub.f32 %v691, %v2300
      %2302 = vmatmul.f32.gmra.mxu0 %v2301
      %v2303 = vpop.f32.mrf.mxu0
      %v2304 = vadd.f32 %v2231, %v2303
      %2305 = vdwg.mxu0
      %2306 = vmatpush.msra.mxu0 0.0
      %2307 = vmatpush.msra.mxu0 0.0
      %2308 = vmatpush.msra.mxu0 0.0
      %2309 = vmatpush.msra.mxu0 0.0
      %2310 = vmatpush.msra.mxu0 0.0
      %2311 = vmatpush.msra.mxu0 0.0
      %2312 = vmatpush.msra.mxu0 0.0
      %2313 = vmatpush.msra.mxu0 0.0
      %v2314 = vand.u32 %v659, 4294901760
      %2315 = vmatpush.msra.mxu0 %v2314
      %v2316 = vand.u32 %v655, 4294901760
      %2317 = vmatpush.msra.mxu0 %v2316
      %v2318 = vand.u32 %v651, 4294901760
      %2319 = vmatpush.msra.mxu0 %v2318
      %v2320 = vand.u32 %v647, 4294901760
      %2321 = vmatpush.msra.mxu0 %v2320
      %v2322 = vand.u32 %v643, 4294901760
      %2323 = vmatpush.msra.mxu0 %v2322
      %v2324 = vand.u32 %v639, 4294901760
      %2325 = vmatpush.msra.mxu0 %v2324
      %v2326 = vand.u32 %v635, 4294901760
      %2327 = vmatpush.msra.mxu0 %v2326
      %v2328 = vand.u32 %v631, 4294901760
      %2329 = vmatpush.msra.mxu0 %v2328
      %v2330 = vand.u32 %v670, 4294901760
      %v2331 = vsub.f32 %v670, %v2330
      %v2332 = vand.u32 %v2331, 4294901760
      %2333 = vmatmul.f32.gmra.mxu0 %v2332
      %v2334 = vpop.f32.mrf.mxu0
      %v2335 = vadd.f32 %v2269, %v2334
      %v2336 = vand.u32 %v673, 4294901760
      %v2337 = vsub.f32 %v673, %v2336
      %v2338 = vand.u32 %v2337, 4294901760
      %2339 = vmatmul.f32.gmra.mxu0 %v2338
      %v2340 = vpop.f32.mrf.mxu0
      %v2341 = vadd.f32 %v2274, %v2340
      %v2342 = vand.u32 %v676, 4294901760
      %v2343 = vsub.f32 %v676, %v2342
      %v2344 = vand.u32 %v2343, 4294901760
      %2345 = vmatmul.f32.gmra.mxu0 %v2344
      %v2346 = vpop.f32.mrf.mxu0
      %v2347 = vadd.f32 %v2279, %v2346
      %v2348 = vand.u32 %v679, 4294901760
      %v2349 = vsub.f32 %v679, %v2348
      %v2350 = vand.u32 %v2349, 4294901760
      %2351 = vmatmul.f32.gmra.mxu0 %v2350
      %v2352 = vpop.f32.mrf.mxu0
      %v2353 = vadd.f32 %v2284, %v2352
      %v2354 = vand.u32 %v682, 4294901760
      %v2355 = vsub.f32 %v682, %v2354
      %v2356 = vand.u32 %v2355, 4294901760
      %2357 = vmatmul.f32.gmra.mxu0 %v2356
      %v2358 = vpop.f32.mrf.mxu0
      %v2359 = vadd.f32 %v2289, %v2358
      %v2360 = vand.u32 %v685, 4294901760
      %v2361 = vsub.f32 %v685, %v2360
      %v2362 = vand.u32 %v2361, 4294901760
      %2363 = vmatmul.f32.gmra.mxu0 %v2362
      %v2364 = vpop.f32.mrf.mxu0
      %v2365 = vadd.f32 %v2294, %v2364
      %v2366 = vand.u32 %v688, 4294901760
      %v2367 = vsub.f32 %v688, %v2366
      %v2368 = vand.u32 %v2367, 4294901760
      %2369 = vmatmul.f32.gmra.mxu0 %v2368
      %v2370 = vpop.f32.mrf.mxu0
      %v2371 = vadd.f32 %v2299, %v2370
      %v2372 = vand.u32 %v691, 4294901760
      %v2373 = vsub.f32 %v691, %v2372
      %v2374 = vand.u32 %v2373, 4294901760
      %2375 = vmatmul.f32.gmra.mxu0 %v2374
      %v2376 = vpop.f32.mrf.mxu0
      %v2377 = vadd.f32 %v2304, %v2376
      %2378 = vdwg.mxu0
      %2379 = vmatpush.msra.mxu0 0.0
      %2380 = vmatpush.msra.mxu0 0.0
      %2381 = vmatpush.msra.mxu0 0.0
      %2382 = vmatpush.msra.mxu0 0.0
      %2383 = vmatpush.msra.mxu0 0.0
      %2384 = vmatpush.msra.mxu0 0.0
      %2385 = vmatpush.msra.mxu0 0.0
      %2386 = vmatpush.msra.mxu0 0.0
      %v2387 = vand.u32 %v659, 4294901760
      %v2388 = vsub.f32 %v659, %v2387
      %v2389 = vand.u32 %v2388, 4294901760
      %2390 = vmatpush.msra.mxu0 %v2389
      %v2391 = vand.u32 %v655, 4294901760
      %v2392 = vsub.f32 %v655, %v2391
      %v2393 = vand.u32 %v2392, 4294901760
      %2394 = vmatpush.msra.mxu0 %v2393
      %v2395 = vand.u32 %v651, 4294901760
      %v2396 = vsub.f32 %v651, %v2395
      %v2397 = vand.u32 %v2396, 4294901760
      %2398 = vmatpush.msra.mxu0 %v2397
      %v2399 = vand.u32 %v647, 4294901760
      %v2400 = vsub.f32 %v647, %v2399
      %v2401 = vand.u32 %v2400, 4294901760
      %2402 = vmatpush.msra.mxu0 %v2401
      %v2403 = vand.u32 %v643, 4294901760
      %v2404 = vsub.f32 %v643, %v2403
      %v2405 = vand.u32 %v2404, 4294901760
      %2406 = vmatpush.msra.mxu0 %v2405
      %v2407 = vand.u32 %v639, 4294901760
      %v2408 = vsub.f32 %v639, %v2407
      %v2409 = vand.u32 %v2408, 4294901760
      %2410 = vmatpush.msra.mxu0 %v2409
      %v2411 = vand.u32 %v635, 4294901760
      %v2412 = vsub.f32 %v635, %v2411
      %v2413 = vand.u32 %v2412, 4294901760
      %2414 = vmatpush.msra.mxu0 %v2413
      %v2415 = vand.u32 %v631, 4294901760
      %v2416 = vsub.f32 %v631, %v2415
      %v2417 = vand.u32 %v2416, 4294901760
      %2418 = vmatpush.msra.mxu0 %v2417
      %v2419 = vand.u32 %v670, 4294901760
      %2420 = vmatmul.f32.gmra.mxu0 %v2419
      %v2421 = vpop.f32.mrf.mxu0
      %v2422 = vadd.f32 %v2335, %v2421
      %v2423 = vand.u32 %v673, 4294901760
      %2424 = vmatmul.f32.gmra.mxu0 %v2423
      %v2425 = vpop.f32.mrf.mxu0
      %v2426 = vadd.f32 %v2341, %v2425
      %v2427 = vand.u32 %v676, 4294901760
      %2428 = vmatmul.f32.gmra.mxu0 %v2427
      %v2429 = vpop.f32.mrf.mxu0
      %v2430 = vadd.f32 %v2347, %v2429
      %v2431 = vand.u32 %v679, 4294901760
      %2432 = vmatmul.f32.gmra.mxu0 %v2431
      %v2433 = vpop.f32.mrf.mxu0
      %v2434 = vadd.f32 %v2353, %v2433
      %v2435 = vand.u32 %v682, 4294901760
      %2436 = vmatmul.f32.gmra.mxu0 %v2435
      %v2437 = vpop.f32.mrf.mxu0
      %v2438 = vadd.f32 %v2359, %v2437
      %v2439 = vand.u32 %v685, 4294901760
      %2440 = vmatmul.f32.gmra.mxu0 %v2439
      %v2441 = vpop.f32.mrf.mxu0
      %v2442 = vadd.f32 %v2365, %v2441
      %v2443 = vand.u32 %v688, 4294901760
      %2444 = vmatmul.f32.gmra.mxu0 %v2443
      %v2445 = vpop.f32.mrf.mxu0
      %v2446 = vadd.f32 %v2371, %v2445
      %v2447 = vand.u32 %v691, 4294901760
      %2448 = vmatmul.f32.gmra.mxu0 %v2447
      %v2449 = vpop.f32.mrf.mxu0
      %v2450 = vadd.f32 %v2377, %v2449
      %2451 = vdwg.mxu0
      %2452 = vmatpush.msra.mxu0 0.0
      %2453 = vmatpush.msra.mxu0 0.0
      %2454 = vmatpush.msra.mxu0 0.0
      %2455 = vmatpush.msra.mxu0 0.0
      %2456 = vmatpush.msra.mxu0 0.0
      %2457 = vmatpush.msra.mxu0 0.0
      %2458 = vmatpush.msra.mxu0 0.0
      %2459 = vmatpush.msra.mxu0 0.0
      %v2460 = vand.u32 %v659, 4294901760
      %2461 = vmatpush.msra.mxu0 %v2460
      %v2462 = vand.u32 %v655, 4294901760
      %2463 = vmatpush.msra.mxu0 %v2462
      %v2464 = vand.u32 %v651, 4294901760
      %2465 = vmatpush.msra.mxu0 %v2464
      %v2466 = vand.u32 %v647, 4294901760
      %2467 = vmatpush.msra.mxu0 %v2466
      %v2468 = vand.u32 %v643, 4294901760
      %2469 = vmatpush.msra.mxu0 %v2468
      %v2470 = vand.u32 %v639, 4294901760
      %2471 = vmatpush.msra.mxu0 %v2470
      %v2472 = vand.u32 %v635, 4294901760
      %2473 = vmatpush.msra.mxu0 %v2472
      %v2474 = vand.u32 %v631, 4294901760
      %2475 = vmatpush.msra.mxu0 %v2474
      %v2476 = vand.u32 %v670, 4294901760
      %2477 = vmatmul.f32.gmra.mxu0 %v2476
      %v2478 = vpop.f32.mrf.mxu0
      %v2479 = vadd.f32 %v2422, %v2478
      %v2480 = vand.u32 %v673, 4294901760
      %2481 = vmatmul.f32.gmra.mxu0 %v2480
      %v2482 = vpop.f32.mrf.mxu0
      %v2483 = vadd.f32 %v2426, %v2482
      %v2484 = vand.u32 %v676, 4294901760
      %2485 = vmatmul.f32.gmra.mxu0 %v2484
      %v2486 = vpop.f32.mrf.mxu0
      %v2487 = vadd.f32 %v2430, %v2486
      %v2488 = vand.u32 %v679, 4294901760
      %2489 = vmatmul.f32.gmra.mxu0 %v2488
      %v2490 = vpop.f32.mrf.mxu0
      %v2491 = vadd.f32 %v2434, %v2490
      %v2492 = vand.u32 %v682, 4294901760
      %2493 = vmatmul.f32.gmra.mxu0 %v2492
      %v2494 = vpop.f32.mrf.mxu0
      %v2495 = vadd.f32 %v2438, %v2494
      %v2496 = vand.u32 %v685, 4294901760
      %2497 = vmatmul.f32.gmra.mxu0 %v2496
      %v2498 = vpop.f32.mrf.mxu0
      %v2499 = vadd.f32 %v2442, %v2498
      %v2500 = vand.u32 %v688, 4294901760
      %2501 = vmatmul.f32.gmra.mxu0 %v2500
      %v2502 = vpop.f32.mrf.mxu0
      %v2503 = vadd.f32 %v2446, %v2502
      %v2504 = vand.u32 %v691, 4294901760
      %2505 = vmatmul.f32.gmra.mxu0 %v2504
      %v2506 = vpop.f32.mrf.mxu0
      %v2507 = vadd.f32 %v2450, %v2506
      %2508 = vdwg.mxu0
      %v2509 = vadd.f32 %v1117, %v1571
      %v2510 = vadd.f32 %v2509, %v2025
      %v2511 = vadd.f32 %v2510, %v2479
      %2512 = vadd.xlane.f32.xlu0 %v2511
      %v2513 = vpop.xlane.xlu0 %2512
      %v2514 = vadd.f32 %v1121, %v1575
      %v2515 = vadd.f32 %v2514, %v2029
      %v2516 = vadd.f32 %v2515, %v2483
      %2517 = vadd.xlane.f32.xlu0 %v2516
      %v2518 = vpop.xlane.xlu0 %2517
      %v2519 = vadd.f32 %v1125, %v1579
      %v2520 = vadd.f32 %v2519, %v2033
      %v2521 = vadd.f32 %v2520, %v2487
      %2522 = vadd.xlane.f32.xlu0 %v2521
      %v2523 = vpop.xlane.xlu0 %2522
      %v2524 = vadd.f32 %v1129, %v1583
      %v2525 = vadd.f32 %v2524, %v2037
      %v2526 = vadd.f32 %v2525, %v2491
      %2527 = vadd.xlane.f32.xlu0 %v2526
      %v2528 = vpop.xlane.xlu0 %2527
      %v2529 = vadd.f32 %v1133, %v1587
      %v2530 = vadd.f32 %v2529, %v2041
      %v2531 = vadd.f32 %v2530, %v2495
      %2532 = vadd.xlane.f32.xlu0 %v2531
      %v2533 = vpop.xlane.xlu0 %2532
      %v2534 = vadd.f32 %v1137, %v1591
      %v2535 = vadd.f32 %v2534, %v2045
      %v2536 = vadd.f32 %v2535, %v2499
      %2537 = vadd.xlane.f32.xlu0 %v2536
      %v2538 = vpop.xlane.xlu0 %2537
      %v2539 = vadd.f32 %v1141, %v1595
      %v2540 = vadd.f32 %v2539, %v2049
      %v2541 = vadd.f32 %v2540, %v2503
      %2542 = vadd.xlane.f32.xlu0 %v2541
      %v2543 = vpop.xlane.xlu0 %2542
      %v2544 = vadd.f32 %v1145, %v1599
      %v2545 = vadd.f32 %v2544, %v2053
      %v2546 = vadd.f32 %v2545, %v2507
      %2547 = vadd.xlane.f32.xlu0 %v2546
      %v2548 = vpop.xlane.xlu0 %2547
      %vm2549 = vcmask 7168
      %2550 = vst.msk [vmem:[%s235] sm:$0xff] %vm2549, %v2513
      %2551 = vst.msk [vmem:[%s235 + $0x8] sm:$0xff] %vm2549, %v2518
      %2552 = vst.msk [vmem:[%s235 + $0x10] sm:$0xff] %vm2549, %v2523
      %2553 = vst.msk [vmem:[%s235 + $0x18] sm:$0xff] %vm2549, %v2528
      %2554 = vst.msk [vmem:[%s235 + $0x20] sm:$0xff] %vm2549, %v2533
      %2555 = vst.msk [vmem:[%s235 + $0x28] sm:$0xff] %vm2549, %v2538
      %2556 = vst.msk [vmem:[%s235 + $0x30] sm:$0xff] %vm2549, %v2543
      %2557 = vst.msk [vmem:[%s235 + $0x38] sm:$0xff] %vm2549, %v2548
      %v2558 = vmul.f32 %v1117, %v1117
      %v2559 = vmul.f32 %v1571, %v1571
      %v2560 = vmul.f32 %v2025, %v2025
      %v2561 = vmul.f32 %v2479, %v2479
      %v2562 = vmul.f32 %v1121, %v1121
      %v2563 = vmul.f32 %v1575, %v1575
      %v2564 = vmul.f32 %v2029, %v2029
      %v2565 = vmul.f32 %v2483, %v2483
      %v2566 = vmul.f32 %v1125, %v1125
      %v2567 = vmul.f32 %v1579, %v1579
      %v2568 = vmul.f32 %v2033, %v2033
      %v2569 = vmul.f32 %v2487, %v2487
      %v2570 = vmul.f32 %v1129, %v1129
      %v2571 = vmul.f32 %v1583, %v1583
      %v2572 = vmul.f32 %v2037, %v2037
      %v2573 = vmul.f32 %v2491, %v2491
      %v2574 = vmul.f32 %v1133, %v1133
      %v2575 = vmul.f32 %v1587, %v1587
      %v2576 = vmul.f32 %v2041, %v2041
      %v2577 = vmul.f32 %v2495, %v2495
      %v2578 = vmul.f32 %v1137, %v1137
      %v2579 = vmul.f32 %v1591, %v1591
      %v2580 = vmul.f32 %v2045, %v2045
      %v2581 = vmul.f32 %v2499, %v2499
      %v2582 = vmul.f32 %v1141, %v1141
      %v2583 = vmul.f32 %v1595, %v1595
      %v2584 = vmul.f32 %v2049, %v2049
      %v2585 = vmul.f32 %v2503, %v2503
      %v2586 = vmul.f32 %v1145, %v1145
      %v2587 = vmul.f32 %v1599, %v1599
      %v2588 = vmul.f32 %v2053, %v2053
      %v2589 = vmul.f32 %v2507, %v2507
      %v2590 = vadd.f32 %v2558, %v2559
      %v2591 = vadd.f32 %v2590, %v2560
      %v2592 = vadd.f32 %v2591, %v2561
      %2593 = vadd.xlane.f32.xlu0 %v2592
      %v2594 = vpop.xlane.xlu0 %2593
      %v2595 = vadd.f32 %v2562, %v2563
      %v2596 = vadd.f32 %v2595, %v2564
      %v2597 = vadd.f32 %v2596, %v2565
      %2598 = vadd.xlane.f32.xlu0 %v2597
      %v2599 = vpop.xlane.xlu0 %2598
      %v2600 = vadd.f32 %v2566, %v2567
      %v2601 = vadd.f32 %v2600, %v2568
      %v2602 = vadd.f32 %v2601, %v2569
      %2603 = vadd.xlane.f32.xlu0 %v2602
      %v2604 = vpop.xlane.xlu0 %2603
      %v2605 = vadd.f32 %v2570, %v2571
      %v2606 = vadd.f32 %v2605, %v2572
      %v2607 = vadd.f32 %v2606, %v2573
      %2608 = vadd.xlane.f32.xlu0 %v2607
      %v2609 = vpop.xlane.xlu0 %2608
      %v2610 = vadd.f32 %v2574, %v2575
      %v2611 = vadd.f32 %v2610, %v2576
      %v2612 = vadd.f32 %v2611, %v2577
      %2613 = vadd.xlane.f32.xlu0 %v2612
      %v2614 = vpop.xlane.xlu0 %2613
      %v2615 = vadd.f32 %v2578, %v2579
      %v2616 = vadd.f32 %v2615, %v2580
      %v2617 = vadd.f32 %v2616, %v2581
      %2618 = vadd.xlane.f32.xlu0 %v2617
      %v2619 = vpop.xlane.xlu0 %2618
      %v2620 = vadd.f32 %v2582, %v2583
      %v2621 = vadd.f32 %v2620, %v2584
      %v2622 = vadd.f32 %v2621, %v2585
      %2623 = vadd.xlane.f32.xlu0 %v2622
      %v2624 = vpop.xlane.xlu0 %2623
      %v2625 = vadd.f32 %v2586, %v2587
      %v2626 = vadd.f32 %v2625, %v2588
      %v2627 = vadd.f32 %v2626, %v2589
      %2628 = vadd.xlane.f32.xlu0 %v2627
      %v2629 = vpop.xlane.xlu0 %2628
      %2630 = vst.msk [vmem:[%s235 + $0x40] sm:$0xff] %vm2549, %v2594
      %2631 = vst.msk [vmem:[%s235 + $0x48] sm:$0xff] %vm2549, %v2599
      %2632 = vst.msk [vmem:[%s235 + $0x50] sm:$0xff] %vm2549, %v2604
      %2633 = vst.msk [vmem:[%s235 + $0x58] sm:$0xff] %vm2549, %v2609
      %2634 = vst.msk [vmem:[%s235 + $0x60] sm:$0xff] %vm2549, %v2614
      %2635 = vst.msk [vmem:[%s235 + $0x68] sm:$0xff] %vm2549, %v2619
      %2636 = vst.msk [vmem:[%s235 + $0x70] sm:$0xff] %vm2549, %v2624
      %2637 = vst.msk [vmem:[%s235 + $0x78] sm:$0xff] %vm2549, %v2629
      %p2638 = scmp.lt.s32.totalorder %s19, 1
      %s2639 = scalar_select %p2638, %s19, 1
      %p2640 = scmp.lt.s32.totalorder %s20, 1
      %s2641 = scalar_select %p2640, %s20, 1
      %s2642 = smul.addr %s2641, 16
      %s2643 = smul.addr %s2639, 32
      %s2644 = sadd.s32 %s2642, %s2643
      %s2645 = smul.addr %s2644, 8
      %s2646 = scalar_lea.vmem %s4, %s2645
      // Predicated region
      $region37: #{norm_mlp_forward.2} parent=35 // pred_check
        %p2647 = pneg %p138
      $region38: #{norm_mlp_forward.2} parent=35 // pred_check_branch
        %2649 = sbr.rel (%p2647) target = $region40
      $region39: #{norm_mlp_forward.2} parent=35 // pred_region
        _
      $region40: #{norm_mlp_forward.2} parent=35 // pred_fallthru
        _
    $region36: #{norm_mlp_forward.2} parent=5 // pred_fallthru
      _
    %p2650 = scmp.le.s32.totalorder 2, %s10
    // Predicated region
    $region41: #{norm_mlp_forward.2} parent=5 // pred_check
      %p2651 = pneg %p2650
    $region42: #{norm_mlp_forward.2} parent=5 // pred_check_branch
      %2653 = sbr.rel (%p2651) target = $region44
    $region43: #{norm_mlp_forward.2} parent=5 // pred_region
      %s2654 = ssub.s32 %s10, 2
      // Predicated region
      $region45: #{norm_mlp_forward.2} parent=43 // pred_check
        %p2655 = pneg %p144
      $region46: #{norm_mlp_forward.2} parent=43 // pred_check_branch
        %2657 = sbr.rel (%p2655) target = $region48
      $region47: #{norm_mlp_forward.2} parent=43 // pred_region
        %p2658 = scmp.lt.s32.totalorder %s21, 1
        %s2659 = scalar_select %p2658, %s21, 1
        %p2660 = scmp.lt.s32.totalorder %s22, 1
        %s2661 = scalar_select %p2660, %s22, 1
        %s2662 = smul.addr %s2661, 16
        %s2663 = smul.addr %s2659, 32
        %s2664 = sadd.s32 %s2662, %s2663
        %s2665 = smul.addr %s2664, 8
        %s2666 = scalar_lea.vmem %s4, %s2665
      $region48: #{norm_mlp_forward.2} parent=43 // pred_fallthru
        _
    $region44: #{norm_mlp_forward.2} parent=5 // pred_fallthru
      _
  $region6: #{norm_mlp_forward.2} parent=0 // loop_footer
    %s14 = sadd.s32 1, %s10
  $region7: #{norm_mlp_forward.2} parent=0 // loop_footer_branch
    %9 = sbr.rel target = $region3
  $region8: #{norm_mlp_forward.2} parent=0 // loop_exit
    _

</llo_original>
